<compile_context>
chip_gen: v7x
topology: tpu7x:2x2x1
jax: 0.10.0
libtpu: 0.0.40
codegen_flags: <defaults>
</compile_context>

<pallas_src>
import functools

import jax
import jax.numpy as jnp
import numpy as np
from jax.experimental import pallas as pl
from jax.experimental.pallas import tpu as pltpu

N_CHANNELS = 4          # n_channels  -> feature dim F = 2 * n_channels = 8
NUM_LAYERS = 5
BATCH = 2
TIME = 8


def _round_up(a, b):
    return (a + b - 1) // b * b


def _nlin_core_kernel(x_ref, w_ref, b_ref, o_ref, *, num_layers):
    # x_ref: (blk_r, LANE) packed activations (PACK feature-vectors per row).
    # w_ref: (L, LANE, LANE) block-diagonal weights (PACK copies of W^T).
    # b_ref: (L, 1, LANE)   lane-tiled biases.
    h = x_ref[...].astype(jnp.float32)                       # (blk_r, LANE)
    for l in range(num_layers):                              # static unroll: 5 MXU dots
        z = jnp.dot(h, w_ref[l],
                    preferred_element_type=jnp.float32,
                    precision=jax.lax.Precision.HIGHEST) + b_ref[l]
        h = z * jax.nn.sigmoid(z)                            # SiLU (EUP exp, VPU mul)
    o_ref[...] = h.astype(o_ref.dtype)


@functools.partial(jax.jit, static_argnames=("rows_per_tile",))
def nlin_core_forward(x, weights, biases, *, rows_per_tile=4096):
    """NlinCore forward.

    x:       (B, T, C, 2) float32
    weights: (L, 2C, 2C)  torch nn.Linear (out, in) layout
    biases:  (L, 2C)
    """
    B, T, C, two = x.shape
    assert two == 2
    L, F, F2 = weights.shape
    assert F == F2 == 2 * C
    M = B * T

    # Packed lane-dense layout: (M, F) -> (R, PACK*F), PACK*F == 128 when F | 128.
    PACK = (128 // F) if (F <= 128 and 128 % F == 0) else 1
    LANE = PACK * F

    x_flat = x.reshape(M, F)
    Mp = _round_up(M, PACK)
    R = Mp // PACK
    if R < 8:                       # tiny input: give the MXU a full 8-row tile
        R = 8
        Mp = R * PACK
    if Mp != M:                     # ragged tail only: small one-off pad
        x_flat = jnp.pad(x_flat, ((0, Mp - M), (0, 0)))
    x_packed = x_flat.reshape(R, LANE)                       # free reshape

    # Block-diagonal weights: Wbig[l, p*F + j, p*F + i] = W[l, i, j]  (kron(I, W^T)).
    eye = jnp.eye(PACK, dtype=weights.dtype)
    w_big = jnp.einsum("pq,lij->lpjqi", eye, weights).reshape(L, LANE, LANE)
    b_big = jnp.tile(biases, (1, PACK)).reshape(L, 1, LANE)

    # Row tiling: keep >=2 grid steps when there is enough work (two v7x TCs),
    # cap tile size for VMEM; blocks are multiples of 8 rows, remainder blocks
    # are masked by Pallas on store (rows are independent, so over-compute is safe).
    rows_per_tile = max(8, (rows_per_tile // 8) * 8)
    if R < 16:
        blk_r = 8
    else:
        blk_r = min(_round_up(pl.cdiv(R, 2), 8), rows_per_tile)
    grid = (pl.cdiv(R, blk_r),)

    kernel = functools.partial(_nlin_core_kernel, num_layers=L)
    out_packed = pl.pallas_call(
        kernel,
        out_shape=jax.ShapeDtypeStruct((R, LANE), x.dtype),
        grid_spec=pltpu.PrefetchScalarGridSpec(
            num_scalar_prefetch=0,
            grid=grid,
            in_specs=[
                pl.BlockSpec((blk_r, LANE), lambda i: (i, 0)),     # activation tile
                pl.BlockSpec((L, LANE, LANE), lambda i: (0, 0, 0)),  # all weights (invariant)
                pl.BlockSpec((L, 1, LANE), lambda i: (0, 0, 0)),     # all biases
            ],
            out_specs=pl.BlockSpec((blk_r, LANE), lambda i: (i, 0)),
        ),
        compiler_params=pltpu.CompilerParams(
            dimension_semantics=("parallel",)),                    # shard row tiles over TCs
    )(x_packed, w_big, b_big)

    out_flat = out_packed.reshape(Mp, F)                           # free reshape
    if Mp != M:
        out_flat = out_flat[:M]
    return out_flat.reshape(B, T, C, 2)


def _reference_forward(x, weights, biases):
    B, T, C, _ = x.shape
    h = np.asarray(x, dtype=np.float32).reshape(B * T, 2 * C)
    w = np.asarray(weights, dtype=np.float32)
    bb = np.asarray(biases, dtype=np.float32)
    for l in range(w.shape[0]):
        h = h @ w[l].T + bb[l]
        h = h * (1.0 / (1.0 + np.exp(-h)))
    return h.reshape(B, T, C, 2)


if __name__ == "__main__":
    key = jax.random.PRNGKey(0)
    k_x, k_w, k_b, k_x2 = jax.random.split(key, 4)
    F = 2 * N_CHANNELS

    # --- Test 1: module-spec parameters (identity weights, zero bias) ------
    x = jax.random.normal(k_x, (BATCH, TIME, N_CHANNELS, 2), dtype=jnp.float32)
    w_eye = jnp.broadcast_to(jnp.eye(F, dtype=jnp.float32), (NUM_LAYERS, F, F))
    b_zero = jnp.zeros((NUM_LAYERS, F), dtype=jnp.float32)
    out = jax.block_until_ready(nlin_core_forward(x, w_eye, b_zero))
    np.testing.assert_allclose(np.asarray(out),
                               _reference_forward(x, w_eye, b_zero),
                               rtol=1e-4, atol=1e-4)

    # --- Test 2: random weights/biases (catches W-vs-W.T / packing / bias) -
    w_rnd = 0.3 * jax.random.normal(k_w, (NUM_LAYERS, F, F), dtype=jnp.float32)
    b_rnd = 0.1 * jax.random.normal(k_b, (NUM_LAYERS, F), dtype=jnp.float32)
    out2 = jax.block_until_ready(nlin_core_forward(x, w_rnd, b_rnd))
    np.testing.assert_allclose(np.asarray(out2),
                               _reference_forward(x, w_rnd, b_rnd),
                               rtol=1e-4, atol=1e-4)

    # --- Test 3: ragged M (600 rows) + multi-step grid with remainder block -
    x_big = jax.random.normal(k_x2, (2, 300, N_CHANNELS, 2), dtype=jnp.float32)
    out3 = jax.block_until_ready(
        nlin_core_forward(x_big, w_rnd, b_rnd, rows_per_tile=16))
    np.testing.assert_allclose(np.asarray(out3),
                               _reference_forward(x_big, w_rnd, b_rnd),
                               rtol=1e-4, atol=1e-4)

    print("KERNEL_OK")
</pallas_src>

<mosaic_0001>
module attributes {stable_mosaic.version = 11 : i64} {
  func.func @_nlin_core_kernel(%arg0: i32, %arg1: memref<8x128xf32, #tpu.memory_space<vmem>>, %arg2: memref<5x128x128xf32, #tpu.memory_space<vmem>>, %arg3: memref<5x1x128xf32, #tpu.memory_space<vmem>>, %arg4: memref<8x128xf32, #tpu.memory_space<vmem>>) attributes {dimension_semantics = [#tpu.dimension_semantics<parallel>], iteration_bounds = array<i64: 1>, scalar_prefetch = 0 : i64, scratch_operands = 0 : i64, tpu.core_type = #tpu.core_type<tc>, window_params = [{transform_indices = @transform_0, window_bounds = array<i64: 8, 128>}, {pipeline_mode = #tpu.pipeline_mode<synchronous>, transform_indices = @transform_1, window_bounds = array<i64: 5, 128, 128>}, {pipeline_mode = #tpu.pipeline_mode<synchronous>, transform_indices = @transform_2, window_bounds = array<i64: 5, 1, 128>}, {transform_indices = @transform_3, window_bounds = array<i64: 8, 128>}]} {
    %c0 = arith.constant 0 : index
    %c0_0 = arith.constant 0 : index
    %0 = vector.load %arg1[%c0, %c0_0] : memref<8x128xf32, #tpu.memory_space<vmem>>, vector<8x128xf32>
    %c0_1 = arith.constant 0 : index
    %c0_2 = arith.constant 0 : index
    %c0_3 = arith.constant 0 : index
    %1 = vector.load %arg2[%c0_1, %c0_2, %c0_3] : memref<5x128x128xf32, #tpu.memory_space<vmem>>, vector<1x128x128xf32>
    %2 = vector.shape_cast %1 : vector<1x128x128xf32> to vector<128x128xf32>
    %cst = arith.constant dense<0.000000e+00> : vector<8x128xf32>
    %3 = tpu.matmul %0, %2, %cst {dimension_numbers = #tpu.dot_dimension_numbers<[1], [0], [0], [1], [0, 0, 1, 1], [], []>, precision = #tpu.contract_precision<fp32>} : vector<8x128xf32>, vector<128x128xf32>, vector<8x128xf32> -> vector<8x128xf32>
    %c0_4 = arith.constant 0 : index
    %c0_5 = arith.constant 0 : index
    %c0_6 = arith.constant 0 : index
    %4 = vector.load %arg3[%c0_4, %c0_5, %c0_6] : memref<5x1x128xf32, #tpu.memory_space<vmem>>, vector<1x1x128xf32>
    %5 = vector.shape_cast %4 : vector<1x1x128xf32> to vector<1x128xf32>
    %6 = vector.broadcast %5 : vector<1x128xf32> to vector<8x128xf32>
    %7 = arith.addf %3, %6 : vector<8x128xf32>
    %8 = arith.negf %7 : vector<8x128xf32>
    %9 = math.exp %8 : vector<8x128xf32>
    %cst_7 = arith.constant 1.000000e+00 : f32
    %10 = vector.broadcast %cst_7 : f32 to vector<8x128xf32>
    %11 = arith.addf %10, %9 : vector<8x128xf32>
    %12 = arith.divf %10, %11 : vector<8x128xf32>
    %13 = arith.mulf %7, %12 : vector<8x128xf32>
    %c1 = arith.constant 1 : index
    %c0_8 = arith.constant 0 : index
    %c0_9 = arith.constant 0 : index
    %14 = vector.load %arg2[%c1, %c0_8, %c0_9] : memref<5x128x128xf32, #tpu.memory_space<vmem>>, vector<1x128x128xf32>
    %15 = vector.shape_cast %14 : vector<1x128x128xf32> to vector<128x128xf32>
    %cst_10 = arith.constant dense<0.000000e+00> : vector<8x128xf32>
    %16 = tpu.matmul %13, %15, %cst_10 {dimension_numbers = #tpu.dot_dimension_numbers<[1], [0], [0], [1], [0, 0, 1, 1], [], []>, precision = #tpu.contract_precision<fp32>} : vector<8x128xf32>, vector<128x128xf32>, vector<8x128xf32> -> vector<8x128xf32>
    %c1_11 = arith.constant 1 : index
    %c0_12 = arith.constant 0 : index
    %c0_13 = arith.constant 0 : index
    %17 = vector.load %arg3[%c1_11, %c0_12, %c0_13] : memref<5x1x128xf32, #tpu.memory_space<vmem>>, vector<1x1x128xf32>
    %18 = vector.shape_cast %17 : vector<1x1x128xf32> to vector<1x128xf32>
    %19 = vector.broadcast %18 : vector<1x128xf32> to vector<8x128xf32>
    %20 = arith.addf %16, %19 : vector<8x128xf32>
    %21 = arith.negf %20 : vector<8x128xf32>
    %22 = math.exp %21 : vector<8x128xf32>
    %cst_14 = arith.constant 1.000000e+00 : f32
    %23 = vector.broadcast %cst_14 : f32 to vector<8x128xf32>
    %24 = arith.addf %23, %22 : vector<8x128xf32>
    %25 = arith.divf %23, %24 : vector<8x128xf32>
    %26 = arith.mulf %20, %25 : vector<8x128xf32>
    %c2 = arith.constant 2 : index
    %c0_15 = arith.constant 0 : index
    %c0_16 = arith.constant 0 : index
    %27 = vector.load %arg2[%c2, %c0_15, %c0_16] : memref<5x128x128xf32, #tpu.memory_space<vmem>>, vector<1x128x128xf32>
    %28 = vector.shape_cast %27 : vector<1x128x128xf32> to vector<128x128xf32>
    %cst_17 = arith.constant dense<0.000000e+00> : vector<8x128xf32>
    %29 = tpu.matmul %26, %28, %cst_17 {dimension_numbers = #tpu.dot_dimension_numbers<[1], [0], [0], [1], [0, 0, 1, 1], [], []>, precision = #tpu.contract_precision<fp32>} : vector<8x128xf32>, vector<128x128xf32>, vector<8x128xf32> -> vector<8x128xf32>
    %c2_18 = arith.constant 2 : index
    %c0_19 = arith.constant 0 : index
    %c0_20 = arith.constant 0 : index
    %30 = vector.load %arg3[%c2_18, %c0_19, %c0_20] : memref<5x1x128xf32, #tpu.memory_space<vmem>>, vector<1x1x128xf32>
    %31 = vector.shape_cast %30 : vector<1x1x128xf32> to vector<1x128xf32>
    %32 = vector.broadcast %31 : vector<1x128xf32> to vector<8x128xf32>
    %33 = arith.addf %29, %32 : vector<8x128xf32>
    %34 = arith.negf %33 : vector<8x128xf32>
    %35 = math.exp %34 : vector<8x128xf32>
    %cst_21 = arith.constant 1.000000e+00 : f32
    %36 = vector.broadcast %cst_21 : f32 to vector<8x128xf32>
    %37 = arith.addf %36, %35 : vector<8x128xf32>
    %38 = arith.divf %36, %37 : vector<8x128xf32>
    %39 = arith.mulf %33, %38 : vector<8x128xf32>
    %c3 = arith.constant 3 : index
    %c0_22 = arith.constant 0 : index
    %c0_23 = arith.constant 0 : index
    %40 = vector.load %arg2[%c3, %c0_22, %c0_23] : memref<5x128x128xf32, #tpu.memory_space<vmem>>, vector<1x128x128xf32>
    %41 = vector.shape_cast %40 : vector<1x128x128xf32> to vector<128x128xf32>
    %cst_24 = arith.constant dense<0.000000e+00> : vector<8x128xf32>
    %42 = tpu.matmul %39, %41, %cst_24 {dimension_numbers = #tpu.dot_dimension_numbers<[1], [0], [0], [1], [0, 0, 1, 1], [], []>, precision = #tpu.contract_precision<fp32>} : vector<8x128xf32>, vector<128x128xf32>, vector<8x128xf32> -> vector<8x128xf32>
    %c3_25 = arith.constant 3 : index
    %c0_26 = arith.constant 0 : index
    %c0_27 = arith.constant 0 : index
    %43 = vector.load %arg3[%c3_25, %c0_26, %c0_27] : memref<5x1x128xf32, #tpu.memory_space<vmem>>, vector<1x1x128xf32>
    %44 = vector.shape_cast %43 : vector<1x1x128xf32> to vector<1x128xf32>
    %45 = vector.broadcast %44 : vector<1x128xf32> to vector<8x128xf32>
    %46 = arith.addf %42, %45 : vector<8x128xf32>
    %47 = arith.negf %46 : vector<8x128xf32>
    %48 = math.exp %47 : vector<8x128xf32>
    %cst_28 = arith.constant 1.000000e+00 : f32
    %49 = vector.broadcast %cst_28 : f32 to vector<8x128xf32>
    %50 = arith.addf %49, %48 : vector<8x128xf32>
    %51 = arith.divf %49, %50 : vector<8x128xf32>
    %52 = arith.mulf %46, %51 : vector<8x128xf32>
    %c4 = arith.constant 4 : index
    %c0_29 = arith.constant 0 : index
    %c0_30 = arith.constant 0 : index
    %53 = vector.load %arg2[%c4, %c0_29, %c0_30] : memref<5x128x128xf32, #tpu.memory_space<vmem>>, vector<1x128x128xf32>
    %54 = vector.shape_cast %53 : vector<1x128x128xf32> to vector<128x128xf32>
    %cst_31 = arith.constant dense<0.000000e+00> : vector<8x128xf32>
    %55 = tpu.matmul %52, %54, %cst_31 {dimension_numbers = #tpu.dot_dimension_numbers<[1], [0], [0], [1], [0, 0, 1, 1], [], []>, precision = #tpu.contract_precision<fp32>} : vector<8x128xf32>, vector<128x128xf32>, vector<8x128xf32> -> vector<8x128xf32>
    %c4_32 = arith.constant 4 : index
    %c0_33 = arith.constant 0 : index
    %c0_34 = arith.constant 0 : index
    %56 = vector.load %arg3[%c4_32, %c0_33, %c0_34] : memref<5x1x128xf32, #tpu.memory_space<vmem>>, vector<1x1x128xf32>
    %57 = vector.shape_cast %56 : vector<1x1x128xf32> to vector<1x128xf32>
    %58 = vector.broadcast %57 : vector<1x128xf32> to vector<8x128xf32>
    %59 = arith.addf %55, %58 : vector<8x128xf32>
    %60 = arith.negf %59 : vector<8x128xf32>
    %61 = math.exp %60 : vector<8x128xf32>
    %cst_35 = arith.constant 1.000000e+00 : f32
    %62 = vector.broadcast %cst_35 : f32 to vector<8x128xf32>
    %63 = arith.addf %62, %61 : vector<8x128xf32>
    %64 = arith.divf %62, %63 : vector<8x128xf32>
    %65 = arith.mulf %59, %64 : vector<8x128xf32>
    %c0_36 = arith.constant 0 : index
    %c0_37 = arith.constant 0 : index
    %66 = vector.load %arg4[%c0_36, %c0_37] : memref<8x128xf32, #tpu.memory_space<vmem>>, vector<8x128xf32>
    tpu.vector_store %arg4[%c0_36, %c0_37], %65 {strides = array<i32>} : memref<8x128xf32, #tpu.memory_space<vmem>>, vector<8x128xf32>,
    return
  }
  func.func @transform_0(%arg0: i32) -> (i32, i32) {
    %c0_i32 = arith.constant 0 : i32
    %c0_i32_0 = arith.constant 0 : i32
    return %arg0, %c0_i32 : i32, i32
  }
  func.func @transform_1(%arg0: i32) -> (i32, i32, i32) {
    %c0_i32 = arith.constant 0 : i32
    %c0_i32_0 = arith.constant 0 : i32
    %c0_i32_1 = arith.constant 0 : i32
    %c0_i32_2 = arith.constant 0 : i32
    return %c0_i32, %c0_i32_0, %c0_i32_1 : i32, i32, i32
  }
  func.func @transform_2(%arg0: i32) -> (i32, i32, i32) {
    %c0_i32 = arith.constant 0 : i32
    %c0_i32_0 = arith.constant 0 : i32
    %c0_i32_1 = arith.constant 0 : i32
    %c0_i32_2 = arith.constant 0 : i32
    return %c0_i32, %c0_i32_0, %c0_i32_1 : i32, i32, i32
  }
  func.func @transform_3(%arg0: i32) -> (i32, i32) {
    %c0_i32 = arith.constant 0 : i32
    %c0_i32_0 = arith.constant 0 : i32
    return %arg0, %c0_i32 : i32, i32
  }
}

</mosaic_0001>

<llo_original>
// kernel: nlin_core_forward.1
$region0: #{nlin_core_forward.1}
  #allocation0 [shape = 'u32[]', space=smem, size = 0x4, offset = 0x4, fixed_abs, tag = 'smem constant byte address 0x4 - core index']
  #allocation1 [shape = 'u32[144,128]{1,0:T(1,128)}', space=vmem, size = 0x12000, scoped, tag = 'internal scratch']
  %s0 = inlined_call_operand.vmem [shape: f32[8,128], index: 0, kind: input, shape index: {}]
  %s1 = inlined_call_operand.vmem [shape: f32[5,128,128], index: 1, kind: input, shape index: {}]
  %s2 = inlined_call_operand.vmem [shape: f32[5,1,128], index: 2, kind: input, shape index: {}]
  %s3 = inlined_call_operand.vmem [shape: f32[8,128], index: 3, kind: output, shape index: {}]
  %s4 = sld [smem:[#allocation0]]
  $region22: #{nlin_core_forward.1} parent=0
    _
  %s6 = ssub.s32 1, %s4
  %s7 = scalar_select 0, %s6, %s4
  // Predicated region
  $region2: #{nlin_core_forward.1} parent=0 // pred_check
    _
  $region3: #{nlin_core_forward.1} parent=0 // pred_check_branch
    %9 = sbr.rel (0) target = $region5
  $region4: #{nlin_core_forward.1} parent=0 // pred_region
    _
  $region5: #{nlin_core_forward.1} parent=0 // pred_fallthru
    _
  // Predicated region
  $region6: #{nlin_core_forward.1} parent=0 // pred_check
    _
  $region7: #{nlin_core_forward.1} parent=0 // pred_check_branch
    %11 = sbr.rel (0) target = $region9
  $region8: #{nlin_core_forward.1} parent=0 // pred_region
    _
  $region9: #{nlin_core_forward.1} parent=0 // pred_fallthru
    _
  // Predicated region
  $region10: #{nlin_core_forward.1} parent=0 // pred_check
    _
  $region11: #{nlin_core_forward.1} parent=0 // pred_check_branch
    %13 = sbr.rel (0) target = $region13
  $region12: #{nlin_core_forward.1} parent=0 // pred_region
    _
  $region13: #{nlin_core_forward.1} parent=0 // pred_fallthru
    _
  %v14 = vld [vmem:[%s0] sm:$0xff]
  %v15 = vld [vmem:[%s1] sm:$0xff]
  %v16 = vld [vmem:[%s1 + $0x8] sm:$0xff]
  %v17 = vld [vmem:[%s1 + $0x10] sm:$0xff]
  %v18 = vld [vmem:[%s1 + $0x18] sm:$0xff]
  %v19 = vld [vmem:[%s1 + $0x20] sm:$0xff]
  %v20 = vld [vmem:[%s1 + $0x28] sm:$0xff]
  %v21 = vld [vmem:[%s1 + $0x30] sm:$0xff]
  %v22 = vld [vmem:[%s1 + $0x38] sm:$0xff]
  %v23 = vld [vmem:[%s1 + $0x40] sm:$0xff]
  %v24 = vld [vmem:[%s1 + $0x48] sm:$0xff]
  %v25 = vld [vmem:[%s1 + $0x50] sm:$0xff]
  %v26 = vld [vmem:[%s1 + $0x58] sm:$0xff]
  %v27 = vld [vmem:[%s1 + $0x60] sm:$0xff]
  %v28 = vld [vmem:[%s1 + $0x68] sm:$0xff]
  %v29 = vld [vmem:[%s1 + $0x70] sm:$0xff]
  %v30 = vld [vmem:[%s1 + $0x78] sm:$0xff]
  %v31 = vld [vmem:[%s2] sm:$0x1]
  %v33 = vlaneseq
  %v34 = vshrl.u32 %v33, 7
  %v35 = vsub.s32 0, %v34
  %v36 = vrot.slane %v31, %v35
  %38 = vmatprep.subr.mxu0 0.0
  %v39 = vand.u32 %v15, 4294901760
  %40 = vmatpush1.msra.mxu0 %v39
  %41 = vmatprep.subr.mxu0 0.0
  %v42 = vand.u32 %v16, 4294901760
  %43 = vmatpush1.msra.mxu0 %v42
  %44 = vmatprep.subr.mxu0 0.0
  %v45 = vand.u32 %v17, 4294901760
  %46 = vmatpush1.msra.mxu0 %v45
  %47 = vmatprep.subr.mxu0 0.0
  %v48 = vand.u32 %v18, 4294901760
  %49 = vmatpush1.msra.mxu0 %v48
  %50 = vmatprep.subr.mxu0 0.0
  %v51 = vand.u32 %v19, 4294901760
  %52 = vmatpush1.msra.mxu0 %v51
  %53 = vmatprep.subr.mxu0 0.0
  %v54 = vand.u32 %v20, 4294901760
  %55 = vmatpush1.msra.mxu0 %v54
  %56 = vmatprep.subr.mxu0 0.0
  %v57 = vand.u32 %v21, 4294901760
  %58 = vmatpush1.msra.mxu0 %v57
  %59 = vmatprep.subr.mxu0 0.0
  %v60 = vand.u32 %v22, 4294901760
  %61 = vmatpush1.msra.mxu0 %v60
  %62 = vmatprep.subr.mxu0 0.0
  %v63 = vand.u32 %v23, 4294901760
  %64 = vmatpush1.msra.mxu0 %v63
  %65 = vmatprep.subr.mxu0 0.0
  %v66 = vand.u32 %v24, 4294901760
  %67 = vmatpush1.msra.mxu0 %v66
  %68 = vmatprep.subr.mxu0 0.0
  %v69 = vand.u32 %v25, 4294901760
  %70 = vmatpush1.msra.mxu0 %v69
  %71 = vmatprep.subr.mxu0 0.0
  %v72 = vand.u32 %v26, 4294901760
  %73 = vmatpush1.msra.mxu0 %v72
  %74 = vmatprep.subr.mxu0 0.0
  %v75 = vand.u32 %v27, 4294901760
  %76 = vmatpush1.msra.mxu0 %v75
  %77 = vmatprep.subr.mxu0 0.0
  %v78 = vand.u32 %v28, 4294901760
  %79 = vmatpush1.msra.mxu0 %v78
  %80 = vmatprep.subr.mxu0 0.0
  %v81 = vand.u32 %v29, 4294901760
  %82 = vmatpush1.msra.mxu0 %v81
  %83 = vmatprep.subr.mxu0 0.0
  %v84 = vand.u32 %v30, 4294901760
  %85 = vmatpush1.msra.mxu0 %v84
  %86 = vmatprep.subr.mxu0 0.0
  %87 = vmatpush1.msra.mxu0 0.0
  %88 = vmatprep.subr.mxu0 0.0
  %89 = vmatpush1.msra.mxu0 0.0
  %90 = vmatprep.subr.mxu0 0.0
  %91 = vmatpush1.msra.mxu0 0.0
  %92 = vmatprep.subr.mxu0 0.0
  %93 = vmatpush1.msra.mxu0 0.0
  %94 = vmatprep.subr.mxu0 0.0
  %95 = vmatpush1.msra.mxu0 0.0
  %96 = vmatprep.subr.mxu0 0.0
  %97 = vmatpush1.msra.mxu0 0.0
  %98 = vmatprep.subr.mxu0 0.0
  %99 = vmatpush1.msra.mxu0 0.0
  %100 = vmatprep.subr.mxu0 0.0
  %101 = vmatpush1.msra.mxu0 0.0
  %102 = vmatprep.subr.mxu0 0.0
  %103 = vmatpush1.msra.mxu0 0.0
  %104 = vmatprep.subr.mxu0 0.0
  %105 = vmatpush1.msra.mxu0 0.0
  %106 = vmatprep.subr.mxu0 0.0
  %107 = vmatpush1.msra.mxu0 0.0
  %108 = vmatprep.subr.mxu0 0.0
  %109 = vmatpush1.msra.mxu0 0.0
  %110 = vmatprep.subr.mxu0 0.0
  %111 = vmatpush1.msra.mxu0 0.0
  %112 = vmatprep.subr.mxu0 0.0
  %113 = vmatpush1.msra.mxu0 0.0
  %114 = vmatprep.subr.mxu0 0.0
  %115 = vmatpush1.msra.mxu0 0.0
  %116 = vmatprep.subr.mxu0 0.0
  %117 = vmatpush1.msra.mxu0 0.0
  %118 = vmatprep.mubr.f32.mxu0 0.0
  %v119 = vand.u32 %v14, 4294901760
  %v120 = vsub.f32 %v14, %v119
  %v121 = vand.u32 %v120, 4294901760
  %v122 = vsub.f32 %v120, %v121
  %v123 = vand.u32 %v122, 4294901760
  %124 = vmatmul.mubr.f32.gmra.mrb[0].mxu0 %v123
  %v125 = vpop.f32.mrb[0].mxu0
  %v126 = vadd.f32 %v36, %v125
  %v127 = vpop.f32.mrb[0].mxu0
  %128 = vdwg.mxu0
  %129 = vmatprep.subr.mxu0 0.0
  %v130 = vand.u32 %v15, 4294901760
  %v131 = vsub.f32 %v15, %v130
  %v132 = vand.u32 %v131, 4294901760
  %v133 = vsub.f32 %v131, %v132
  %v134 = vand.u32 %v133, 4294901760
  %135 = vmatpush1.msra.mxu0 %v134
  %136 = vmatprep.subr.mxu0 0.0
  %v137 = vand.u32 %v16, 4294901760
  %v138 = vsub.f32 %v16, %v137
  %v139 = vand.u32 %v138, 4294901760
  %v140 = vsub.f32 %v138, %v139
  %v141 = vand.u32 %v140, 4294901760
  %142 = vmatpush1.msra.mxu0 %v141
  %143 = vmatprep.subr.mxu0 0.0
  %v144 = vand.u32 %v17, 4294901760
  %v145 = vsub.f32 %v17, %v144
  %v146 = vand.u32 %v145, 4294901760
  %v147 = vsub.f32 %v145, %v146
  %v148 = vand.u32 %v147, 4294901760
  %149 = vmatpush1.msra.mxu0 %v148
  %150 = vmatprep.subr.mxu0 0.0
  %v151 = vand.u32 %v18, 4294901760
  %v152 = vsub.f32 %v18, %v151
  %v153 = vand.u32 %v152, 4294901760
  %v154 = vsub.f32 %v152, %v153
  %v155 = vand.u32 %v154, 4294901760
  %156 = vmatpush1.msra.mxu0 %v155
  %157 = vmatprep.subr.mxu0 0.0
  %v158 = vand.u32 %v19, 4294901760
  %v159 = vsub.f32 %v19, %v158
  %v160 = vand.u32 %v159, 4294901760
  %v161 = vsub.f32 %v159, %v160
  %v162 = vand.u32 %v161, 4294901760
  %163 = vmatpush1.msra.mxu0 %v162
  %164 = vmatprep.subr.mxu0 0.0
  %v165 = vand.u32 %v20, 4294901760
  %v166 = vsub.f32 %v20, %v165
  %v167 = vand.u32 %v166, 4294901760
  %v168 = vsub.f32 %v166, %v167
  %v169 = vand.u32 %v168, 4294901760
  %170 = vmatpush1.msra.mxu0 %v169
  %171 = vmatprep.subr.mxu0 0.0
  %v172 = vand.u32 %v21, 4294901760
  %v173 = vsub.f32 %v21, %v172
  %v174 = vand.u32 %v173, 4294901760
  %v175 = vsub.f32 %v173, %v174
  %v176 = vand.u32 %v175, 4294901760
  %177 = vmatpush1.msra.mxu0 %v176
  %178 = vmatprep.subr.mxu0 0.0
  %v179 = vand.u32 %v22, 4294901760
  %v180 = vsub.f32 %v22, %v179
  %v181 = vand.u32 %v180, 4294901760
  %v182 = vsub.f32 %v180, %v181
  %v183 = vand.u32 %v182, 4294901760
  %184 = vmatpush1.msra.mxu0 %v183
  %185 = vmatprep.subr.mxu0 0.0
  %v186 = vand.u32 %v23, 4294901760
  %v187 = vsub.f32 %v23, %v186
  %v188 = vand.u32 %v187, 4294901760
  %v189 = vsub.f32 %v187, %v188
  %v190 = vand.u32 %v189, 4294901760
  %191 = vmatpush1.msra.mxu0 %v190
  %192 = vmatprep.subr.mxu0 0.0
  %v193 = vand.u32 %v24, 4294901760
  %v194 = vsub.f32 %v24, %v193
  %v195 = vand.u32 %v194, 4294901760
  %v196 = vsub.f32 %v194, %v195
  %v197 = vand.u32 %v196, 4294901760
  %198 = vmatpush1.msra.mxu0 %v197
  %199 = vmatprep.subr.mxu0 0.0
  %v200 = vand.u32 %v25, 4294901760
  %v201 = vsub.f32 %v25, %v200
  %v202 = vand.u32 %v201, 4294901760
  %v203 = vsub.f32 %v201, %v202
  %v204 = vand.u32 %v203, 4294901760
  %205 = vmatpush1.msra.mxu0 %v204
  %206 = vmatprep.subr.mxu0 0.0
  %v207 = vand.u32 %v26, 4294901760
  %v208 = vsub.f32 %v26, %v207
  %v209 = vand.u32 %v208, 4294901760
  %v210 = vsub.f32 %v208, %v209
  %v211 = vand.u32 %v210, 4294901760
  %212 = vmatpush1.msra.mxu0 %v211
  %213 = vmatprep.subr.mxu0 0.0
  %v214 = vand.u32 %v27, 4294901760
  %v215 = vsub.f32 %v27, %v214
  %v216 = vand.u32 %v215, 4294901760
  %v217 = vsub.f32 %v215, %v216
  %v218 = vand.u32 %v217, 4294901760
  %219 = vmatpush1.msra.mxu0 %v218
  %220 = vmatprep.subr.mxu0 0.0
  %v221 = vand.u32 %v28, 4294901760
  %v222 = vsub.f32 %v28, %v221
  %v223 = vand.u32 %v222, 4294901760
  %v224 = vsub.f32 %v222, %v223
  %v225 = vand.u32 %v224, 4294901760
  %226 = vmatpush1.msra.mxu0 %v225
  %227 = vmatprep.subr.mxu0 0.0
  %v228 = vand.u32 %v29, 4294901760
  %v229 = vsub.f32 %v29, %v228
  %v230 = vand.u32 %v229, 4294901760
  %v231 = vsub.f32 %v229, %v230
  %v232 = vand.u32 %v231, 4294901760
  %233 = vmatpush1.msra.mxu0 %v232
  %234 = vmatprep.subr.mxu0 0.0
  %v235 = vand.u32 %v30, 4294901760
  %v236 = vsub.f32 %v30, %v235
  %v237 = vand.u32 %v236, 4294901760
  %v238 = vsub.f32 %v236, %v237
  %v239 = vand.u32 %v238, 4294901760
  %240 = vmatpush1.msra.mxu0 %v239
  %241 = vmatprep.subr.mxu0 0.0
  %242 = vmatpush1.msra.mxu0 0.0
  %243 = vmatprep.subr.mxu0 0.0
  %244 = vmatpush1.msra.mxu0 0.0
  %245 = vmatprep.subr.mxu0 0.0
  %246 = vmatpush1.msra.mxu0 0.0
  %247 = vmatprep.subr.mxu0 0.0
  %248 = vmatpush1.msra.mxu0 0.0
  %249 = vmatprep.subr.mxu0 0.0
  %250 = vmatpush1.msra.mxu0 0.0
  %251 = vmatprep.subr.mxu0 0.0
  %252 = vmatpush1.msra.mxu0 0.0
  %253 = vmatprep.subr.mxu0 0.0
  %254 = vmatpush1.msra.mxu0 0.0
  %255 = vmatprep.subr.mxu0 0.0
  %256 = vmatpush1.msra.mxu0 0.0
  %257 = vmatprep.subr.mxu0 0.0
  %258 = vmatpush1.msra.mxu0 0.0
  %259 = vmatprep.subr.mxu0 0.0
  %260 = vmatpush1.msra.mxu0 0.0
  %261 = vmatprep.subr.mxu0 0.0
  %262 = vmatpush1.msra.mxu0 0.0
  %263 = vmatprep.subr.mxu0 0.0
  %264 = vmatpush1.msra.mxu0 0.0
  %265 = vmatprep.subr.mxu0 0.0
  %266 = vmatpush1.msra.mxu0 0.0
  %267 = vmatprep.subr.mxu0 0.0
  %268 = vmatpush1.msra.mxu0 0.0
  %269 = vmatprep.subr.mxu0 0.0
  %270 = vmatpush1.msra.mxu0 0.0
  %271 = vmatprep.subr.mxu0 0.0
  %272 = vmatpush1.msra.mxu0 0.0
  %273 = vmatprep.mubr.f32.mxu0 0.0
  %v274 = vand.u32 %v14, 4294901760
  %275 = vmatmul.mubr.f32.gmra.mrb[0].mxu0 %v274
  %v276 = vpop.f32.mrb[0].mxu0
  %v277 = vadd.f32 %v126, %v276
  %v278 = vpop.f32.mrb[0].mxu0
  %279 = vdwg.mxu0
  %280 = vmatprep.subr.mxu0 0.0
  %v281 = vand.u32 %v15, 4294901760
  %v282 = vsub.f32 %v15, %v281
  %283 = vmatpush1.msra.mxu0 %v282
  %284 = vmatprep.subr.mxu0 0.0
  %v285 = vand.u32 %v16, 4294901760
  %v286 = vsub.f32 %v16, %v285
  %287 = vmatpush1.msra.mxu0 %v286
  %288 = vmatprep.subr.mxu0 0.0
  %v289 = vand.u32 %v17, 4294901760
  %v290 = vsub.f32 %v17, %v289
  %291 = vmatpush1.msra.mxu0 %v290
  %292 = vmatprep.subr.mxu0 0.0
  %v293 = vand.u32 %v18, 4294901760
  %v294 = vsub.f32 %v18, %v293
  %295 = vmatpush1.msra.mxu0 %v294
  %296 = vmatprep.subr.mxu0 0.0
  %v297 = vand.u32 %v19, 4294901760
  %v298 = vsub.f32 %v19, %v297
  %299 = vmatpush1.msra.mxu0 %v298
  %300 = vmatprep.subr.mxu0 0.0
  %v301 = vand.u32 %v20, 4294901760
  %v302 = vsub.f32 %v20, %v301
  %303 = vmatpush1.msra.mxu0 %v302
  %304 = vmatprep.subr.mxu0 0.0
  %v305 = vand.u32 %v21, 4294901760
  %v306 = vsub.f32 %v21, %v305
  %307 = vmatpush1.msra.mxu0 %v306
  %308 = vmatprep.subr.mxu0 0.0
  %v309 = vand.u32 %v22, 4294901760
  %v310 = vsub.f32 %v22, %v309
  %311 = vmatpush1.msra.mxu0 %v310
  %312 = vmatprep.subr.mxu0 0.0
  %v313 = vand.u32 %v23, 4294901760
  %v314 = vsub.f32 %v23, %v313
  %315 = vmatpush1.msra.mxu0 %v314
  %316 = vmatprep.subr.mxu0 0.0
  %v317 = vand.u32 %v24, 4294901760
  %v318 = vsub.f32 %v24, %v317
  %319 = vmatpush1.msra.mxu0 %v318
  %320 = vmatprep.subr.mxu0 0.0
  %v321 = vand.u32 %v25, 4294901760
  %v322 = vsub.f32 %v25, %v321
  %323 = vmatpush1.msra.mxu0 %v322
  %324 = vmatprep.subr.mxu0 0.0
  %v325 = vand.u32 %v26, 4294901760
  %v326 = vsub.f32 %v26, %v325
  %327 = vmatpush1.msra.mxu0 %v326
  %328 = vmatprep.subr.mxu0 0.0
  %v329 = vand.u32 %v27, 4294901760
  %v330 = vsub.f32 %v27, %v329
  %331 = vmatpush1.msra.mxu0 %v330
  %332 = vmatprep.subr.mxu0 0.0
  %v333 = vand.u32 %v28, 4294901760
  %v334 = vsub.f32 %v28, %v333
  %335 = vmatpush1.msra.mxu0 %v334
  %336 = vmatprep.subr.mxu0 0.0
  %v337 = vand.u32 %v29, 4294901760
  %v338 = vsub.f32 %v29, %v337
  %339 = vmatpush1.msra.mxu0 %v338
  %340 = vmatprep.subr.mxu0 0.0
  %v341 = vand.u32 %v30, 4294901760
  %v342 = vsub.f32 %v30, %v341
  %343 = vmatpush1.msra.mxu0 %v342
  %344 = vmatprep.subr.mxu0 0.0
  %345 = vmatpush1.msra.mxu0 0.0
  %346 = vmatprep.subr.mxu0 0.0
  %347 = vmatpush1.msra.mxu0 0.0
  %348 = vmatprep.subr.mxu0 0.0
  %349 = vmatpush1.msra.mxu0 0.0
  %350 = vmatprep.subr.mxu0 0.0
  %351 = vmatpush1.msra.mxu0 0.0
  %352 = vmatprep.subr.mxu0 0.0
  %353 = vmatpush1.msra.mxu0 0.0
  %354 = vmatprep.subr.mxu0 0.0
  %355 = vmatpush1.msra.mxu0 0.0
  %356 = vmatprep.subr.mxu0 0.0
  %357 = vmatpush1.msra.mxu0 0.0
  %358 = vmatprep.subr.mxu0 0.0
  %359 = vmatpush1.msra.mxu0 0.0
  %360 = vmatprep.subr.mxu0 0.0
  %361 = vmatpush1.msra.mxu0 0.0
  %362 = vmatprep.subr.mxu0 0.0
  %363 = vmatpush1.msra.mxu0 0.0
  %364 = vmatprep.subr.mxu0 0.0
  %365 = vmatpush1.msra.mxu0 0.0
  %366 = vmatprep.subr.mxu0 0.0
  %367 = vmatpush1.msra.mxu0 0.0
  %368 = vmatprep.subr.mxu0 0.0
  %369 = vmatpush1.msra.mxu0 0.0
  %370 = vmatprep.subr.mxu0 0.0
  %371 = vmatpush1.msra.mxu0 0.0
  %372 = vmatprep.subr.mxu0 0.0
  %373 = vmatpush1.msra.mxu0 0.0
  %374 = vmatprep.subr.mxu0 0.0
  %375 = vmatpush1.msra.mxu0 0.0
  %376 = vmatprep.mubr.f32.mxu0 0.0
  %v377 = vand.u32 %v14, 4294901760
  %v378 = vsub.f32 %v14, %v377
  %379 = vmatmul.mubr.f32.gmra.mrb[0].mxu0 %v378
  %v380 = vpop.f32.mrb[0].mxu0
  %v381 = vadd.f32 %v277, %v380
  %v382 = vpop.f32.mrb[0].mxu0
  %383 = vdwg.mxu0
  %384 = vmatprep.subr.mxu0 0.0
  %v385 = vand.u32 %v15, 4294901760
  %386 = vmatpush1.msra.mxu0 %v385
  %387 = vmatprep.subr.mxu0 0.0
  %v388 = vand.u32 %v16, 4294901760
  %389 = vmatpush1.msra.mxu0 %v388
  %390 = vmatprep.subr.mxu0 0.0
  %v391 = vand.u32 %v17, 4294901760
  %392 = vmatpush1.msra.mxu0 %v391
  %393 = vmatprep.subr.mxu0 0.0
  %v394 = vand.u32 %v18, 4294901760
  %395 = vmatpush1.msra.mxu0 %v394
  %396 = vmatprep.subr.mxu0 0.0
  %v397 = vand.u32 %v19, 4294901760
  %398 = vmatpush1.msra.mxu0 %v397
  %399 = vmatprep.subr.mxu0 0.0
  %v400 = vand.u32 %v20, 4294901760
  %401 = vmatpush1.msra.mxu0 %v400
  %402 = vmatprep.subr.mxu0 0.0
  %v403 = vand.u32 %v21, 4294901760
  %404 = vmatpush1.msra.mxu0 %v403
  %405 = vmatprep.subr.mxu0 0.0
  %v406 = vand.u32 %v22, 4294901760
  %407 = vmatpush1.msra.mxu0 %v406
  %408 = vmatprep.subr.mxu0 0.0
  %v409 = vand.u32 %v23, 4294901760
  %410 = vmatpush1.msra.mxu0 %v409
  %411 = vmatprep.subr.mxu0 0.0
  %v412 = vand.u32 %v24, 4294901760
  %413 = vmatpush1.msra.mxu0 %v412
  %414 = vmatprep.subr.mxu0 0.0
  %v415 = vand.u32 %v25, 4294901760
  %416 = vmatpush1.msra.mxu0 %v415
  %417 = vmatprep.subr.mxu0 0.0
  %v418 = vand.u32 %v26, 4294901760
  %419 = vmatpush1.msra.mxu0 %v418
  %420 = vmatprep.subr.mxu0 0.0
  %v421 = vand.u32 %v27, 4294901760
  %422 = vmatpush1.msra.mxu0 %v421
  %423 = vmatprep.subr.mxu0 0.0
  %v424 = vand.u32 %v28, 4294901760
  %425 = vmatpush1.msra.mxu0 %v424
  %426 = vmatprep.subr.mxu0 0.0
  %v427 = vand.u32 %v29, 4294901760
  %428 = vmatpush1.msra.mxu0 %v427
  %429 = vmatprep.subr.mxu0 0.0
  %v430 = vand.u32 %v30, 4294901760
  %431 = vmatpush1.msra.mxu0 %v430
  %432 = vmatprep.subr.mxu0 0.0
  %433 = vmatpush1.msra.mxu0 0.0
  %434 = vmatprep.subr.mxu0 0.0
  %435 = vmatpush1.msra.mxu0 0.0
  %436 = vmatprep.subr.mxu0 0.0
  %437 = vmatpush1.msra.mxu0 0.0
  %438 = vmatprep.subr.mxu0 0.0
  %439 = vmatpush1.msra.mxu0 0.0
  %440 = vmatprep.subr.mxu0 0.0
  %441 = vmatpush1.msra.mxu0 0.0
  %442 = vmatprep.subr.mxu0 0.0
  %443 = vmatpush1.msra.mxu0 0.0
  %444 = vmatprep.subr.mxu0 0.0
  %445 = vmatpush1.msra.mxu0 0.0
  %446 = vmatprep.subr.mxu0 0.0
  %447 = vmatpush1.msra.mxu0 0.0
  %448 = vmatprep.subr.mxu0 0.0
  %449 = vmatpush1.msra.mxu0 0.0
  %450 = vmatprep.subr.mxu0 0.0
  %451 = vmatpush1.msra.mxu0 0.0
  %452 = vmatprep.subr.mxu0 0.0
  %453 = vmatpush1.msra.mxu0 0.0
  %454 = vmatprep.subr.mxu0 0.0
  %455 = vmatpush1.msra.mxu0 0.0
  %456 = vmatprep.subr.mxu0 0.0
  %457 = vmatpush1.msra.mxu0 0.0
  %458 = vmatprep.subr.mxu0 0.0
  %459 = vmatpush1.msra.mxu0 0.0
  %460 = vmatprep.subr.mxu0 0.0
  %461 = vmatpush1.msra.mxu0 0.0
  %462 = vmatprep.subr.mxu0 0.0
  %463 = vmatpush1.msra.mxu0 0.0
  %464 = vmatprep.mubr.f32.mxu0 0.0
  %v465 = vand.u32 %v14, 4294901760
  %v466 = vsub.f32 %v14, %v465
  %v467 = vand.u32 %v466, 4294901760
  %468 = vmatmul.mubr.f32.gmra.mrb[0].mxu0 %v467
  %v469 = vpop.f32.mrb[0].mxu0
  %v470 = vadd.f32 %v381, %v469
  %v471 = vpop.f32.mrb[0].mxu0
  %472 = vdwg.mxu0
  %473 = vmatprep.subr.mxu0 0.0
  %v474 = vand.u32 %v15, 4294901760
  %v475 = vsub.f32 %v15, %v474
  %v476 = vand.u32 %v475, 4294901760
  %477 = vmatpush1.msra.mxu0 %v476
  %478 = vmatprep.subr.mxu0 0.0
  %v479 = vand.u32 %v16, 4294901760
  %v480 = vsub.f32 %v16, %v479
  %v481 = vand.u32 %v480, 4294901760
  %482 = vmatpush1.msra.mxu0 %v481
  %483 = vmatprep.subr.mxu0 0.0
  %v484 = vand.u32 %v17, 4294901760
  %v485 = vsub.f32 %v17, %v484
  %v486 = vand.u32 %v485, 4294901760
  %487 = vmatpush1.msra.mxu0 %v486
  %488 = vmatprep.subr.mxu0 0.0
  %v489 = vand.u32 %v18, 4294901760
  %v490 = vsub.f32 %v18, %v489
  %v491 = vand.u32 %v490, 4294901760
  %492 = vmatpush1.msra.mxu0 %v491
  %493 = vmatprep.subr.mxu0 0.0
  %v494 = vand.u32 %v19, 4294901760
  %v495 = vsub.f32 %v19, %v494
  %v496 = vand.u32 %v495, 4294901760
  %497 = vmatpush1.msra.mxu0 %v496
  %498 = vmatprep.subr.mxu0 0.0
  %v499 = vand.u32 %v20, 4294901760
  %v500 = vsub.f32 %v20, %v499
  %v501 = vand.u32 %v500, 4294901760
  %502 = vmatpush1.msra.mxu0 %v501
  %503 = vmatprep.subr.mxu0 0.0
  %v504 = vand.u32 %v21, 4294901760
  %v505 = vsub.f32 %v21, %v504
  %v506 = vand.u32 %v505, 4294901760
  %507 = vmatpush1.msra.mxu0 %v506
  %508 = vmatprep.subr.mxu0 0.0
  %v509 = vand.u32 %v22, 4294901760
  %v510 = vsub.f32 %v22, %v509
  %v511 = vand.u32 %v510, 4294901760
  %512 = vmatpush1.msra.mxu0 %v511
  %513 = vmatprep.subr.mxu0 0.0
  %v514 = vand.u32 %v23, 4294901760
  %v515 = vsub.f32 %v23, %v514
  %v516 = vand.u32 %v515, 4294901760
  %517 = vmatpush1.msra.mxu0 %v516
  %518 = vmatprep.subr.mxu0 0.0
  %v519 = vand.u32 %v24, 4294901760
  %v520 = vsub.f32 %v24, %v519
  %v521 = vand.u32 %v520, 4294901760
  %522 = vmatpush1.msra.mxu0 %v521
  %523 = vmatprep.subr.mxu0 0.0
  %v524 = vand.u32 %v25, 4294901760
  %v525 = vsub.f32 %v25, %v524
  %v526 = vand.u32 %v525, 4294901760
  %527 = vmatpush1.msra.mxu0 %v526
  %528 = vmatprep.subr.mxu0 0.0
  %v529 = vand.u32 %v26, 4294901760
  %v530 = vsub.f32 %v26, %v529
  %v531 = vand.u32 %v530, 4294901760
  %532 = vmatpush1.msra.mxu0 %v531
  %533 = vmatprep.subr.mxu0 0.0
  %v534 = vand.u32 %v27, 4294901760
  %v535 = vsub.f32 %v27, %v534
  %v536 = vand.u32 %v535, 4294901760
  %537 = vmatpush1.msra.mxu0 %v536
  %538 = vmatprep.subr.mxu0 0.0
  %v539 = vand.u32 %v28, 4294901760
  %v540 = vsub.f32 %v28, %v539
  %v541 = vand.u32 %v540, 4294901760
  %542 = vmatpush1.msra.mxu0 %v541
  %543 = vmatprep.subr.mxu0 0.0
  %v544 = vand.u32 %v29, 4294901760
  %v545 = vsub.f32 %v29, %v544
  %v546 = vand.u32 %v545, 4294901760
  %547 = vmatpush1.msra.mxu0 %v546
  %548 = vmatprep.subr.mxu0 0.0
  %v549 = vand.u32 %v30, 4294901760
  %v550 = vsub.f32 %v30, %v549
  %v551 = vand.u32 %v550, 4294901760
  %552 = vmatpush1.msra.mxu0 %v551
  %553 = vmatprep.subr.mxu0 0.0
  %554 = vmatpush1.msra.mxu0 0.0
  %555 = vmatprep.subr.mxu0 0.0
  %556 = vmatpush1.msra.mxu0 0.0
  %557 = vmatprep.subr.mxu0 0.0
  %558 = vmatpush1.msra.mxu0 0.0
  %559 = vmatprep.subr.mxu0 0.0
  %560 = vmatpush1.msra.mxu0 0.0
  %561 = vmatprep.subr.mxu0 0.0
  %562 = vmatpush1.msra.mxu0 0.0
  %563 = vmatprep.subr.mxu0 0.0
  %564 = vmatpush1.msra.mxu0 0.0
  %565 = vmatprep.subr.mxu0 0.0
  %566 = vmatpush1.msra.mxu0 0.0
  %567 = vmatprep.subr.mxu0 0.0
  %568 = vmatpush1.msra.mxu0 0.0
  %569 = vmatprep.subr.mxu0 0.0
  %570 = vmatpush1.msra.mxu0 0.0
  %571 = vmatprep.subr.mxu0 0.0
  %572 = vmatpush1.msra.mxu0 0.0
  %573 = vmatprep.subr.mxu0 0.0
  %574 = vmatpush1.msra.mxu0 0.0
  %575 = vmatprep.subr.mxu0 0.0
  %576 = vmatpush1.msra.mxu0 0.0
  %577 = vmatprep.subr.mxu0 0.0
  %578 = vmatpush1.msra.mxu0 0.0
  %579 = vmatprep.subr.mxu0 0.0
  %580 = vmatpush1.msra.mxu0 0.0
  %581 = vmatprep.subr.mxu0 0.0
  %582 = vmatpush1.msra.mxu0 0.0
  %583 = vmatprep.subr.mxu0 0.0
  %584 = vmatpush1.msra.mxu0 0.0
  %585 = vmatprep.mubr.f32.mxu0 0.0
  %v586 = vand.u32 %v14, 4294901760
  %587 = vmatmul.mubr.f32.gmra.mrb[0].mxu0 %v586
  %v588 = vpop.f32.mrb[0].mxu0
  %v589 = vadd.f32 %v470, %v588
  %v590 = vpop.f32.mrb[0].mxu0
  %591 = vdwg.mxu0
  %592 = vmatprep.subr.mxu0 0.0
  %v593 = vand.u32 %v15, 4294901760
  %594 = vmatpush1.msra.mxu0 %v593
  %595 = vmatprep.subr.mxu0 0.0
  %v596 = vand.u32 %v16, 4294901760
  %597 = vmatpush1.msra.mxu0 %v596
  %598 = vmatprep.subr.mxu0 0.0
  %v599 = vand.u32 %v17, 4294901760
  %600 = vmatpush1.msra.mxu0 %v599
  %601 = vmatprep.subr.mxu0 0.0
  %v602 = vand.u32 %v18, 4294901760
  %603 = vmatpush1.msra.mxu0 %v602
  %604 = vmatprep.subr.mxu0 0.0
  %v605 = vand.u32 %v19, 4294901760
  %606 = vmatpush1.msra.mxu0 %v605
  %607 = vmatprep.subr.mxu0 0.0
  %v608 = vand.u32 %v20, 4294901760
  %609 = vmatpush1.msra.mxu0 %v608
  %610 = vmatprep.subr.mxu0 0.0
  %v611 = vand.u32 %v21, 4294901760
  %612 = vmatpush1.msra.mxu0 %v611
  %613 = vmatprep.subr.mxu0 0.0
  %v614 = vand.u32 %v22, 4294901760
  %615 = vmatpush1.msra.mxu0 %v614
  %616 = vmatprep.subr.mxu0 0.0
  %v617 = vand.u32 %v23, 4294901760
  %618 = vmatpush1.msra.mxu0 %v617
  %619 = vmatprep.subr.mxu0 0.0
  %v620 = vand.u32 %v24, 4294901760
  %621 = vmatpush1.msra.mxu0 %v620
  %622 = vmatprep.subr.mxu0 0.0
  %v623 = vand.u32 %v25, 4294901760
  %624 = vmatpush1.msra.mxu0 %v623
  %625 = vmatprep.subr.mxu0 0.0
  %v626 = vand.u32 %v26, 4294901760
  %627 = vmatpush1.msra.mxu0 %v626
  %628 = vmatprep.subr.mxu0 0.0
  %v629 = vand.u32 %v27, 4294901760
  %630 = vmatpush1.msra.mxu0 %v629
  %631 = vmatprep.subr.mxu0 0.0
  %v632 = vand.u32 %v28, 4294901760
  %633 = vmatpush1.msra.mxu0 %v632
  %634 = vmatprep.subr.mxu0 0.0
  %v635 = vand.u32 %v29, 4294901760
  %636 = vmatpush1.msra.mxu0 %v635
  %637 = vmatprep.subr.mxu0 0.0
  %v638 = vand.u32 %v30, 4294901760
  %639 = vmatpush1.msra.mxu0 %v638
  %640 = vmatprep.subr.mxu0 0.0
  %641 = vmatpush1.msra.mxu0 0.0
  %642 = vmatprep.subr.mxu0 0.0
  %643 = vmatpush1.msra.mxu0 0.0
  %644 = vmatprep.subr.mxu0 0.0
  %645 = vmatpush1.msra.mxu0 0.0
  %646 = vmatprep.subr.mxu0 0.0
  %647 = vmatpush1.msra.mxu0 0.0
  %648 = vmatprep.subr.mxu0 0.0
  %649 = vmatpush1.msra.mxu0 0.0
  %650 = vmatprep.subr.mxu0 0.0
  %651 = vmatpush1.msra.mxu0 0.0
  %652 = vmatprep.subr.mxu0 0.0
  %653 = vmatpush1.msra.mxu0 0.0
  %654 = vmatprep.subr.mxu0 0.0
  %655 = vmatpush1.msra.mxu0 0.0
  %656 = vmatprep.subr.mxu0 0.0
  %657 = vmatpush1.msra.mxu0 0.0
  %658 = vmatprep.subr.mxu0 0.0
  %659 = vmatpush1.msra.mxu0 0.0
  %660 = vmatprep.subr.mxu0 0.0
  %661 = vmatpush1.msra.mxu0 0.0
  %662 = vmatprep.subr.mxu0 0.0
  %663 = vmatpush1.msra.mxu0 0.0
  %664 = vmatprep.subr.mxu0 0.0
  %665 = vmatpush1.msra.mxu0 0.0
  %666 = vmatprep.subr.mxu0 0.0
  %667 = vmatpush1.msra.mxu0 0.0
  %668 = vmatprep.subr.mxu0 0.0
  %669 = vmatpush1.msra.mxu0 0.0
  %670 = vmatprep.subr.mxu0 0.0
  %671 = vmatpush1.msra.mxu0 0.0
  %672 = vmatprep.mubr.f32.mxu0 0.0
  %v673 = vand.u32 %v14, 4294901760
  %674 = vmatmul.mubr.f32.gmra.mrb[0].mxu0 %v673
  %v675 = vpop.f32.mrb[0].mxu0
  %v676 = vadd.f32 %v589, %v675
  %v677 = vpop.f32.mrb[0].mxu0
  %678 = vdwg.mxu0
  %v679 = vxor.u32 %v676, 2147483648
  %v680 = vmul.f32 %v679, 1.442695
  %v681 = vpow.pop %v680
  %v682 = vadd.f32 %v681, 1.0
  %v683 = vrcp.pop %v682
  %v684 = vmul.f32 1.0, %v683
  %v685 = vmul.f32 %v676, %v684
  %s686 = scalar_lea.vmem %s1, 128
  %v687 = vld [vmem:[%s686] sm:$0xff]
  %v688 = vld [vmem:[%s686 + $0x8] sm:$0xff]
  %v689 = vld [vmem:[%s686 + $0x10] sm:$0xff]
  %v690 = vld [vmem:[%s686 + $0x18] sm:$0xff]
  %v691 = vld [vmem:[%s686 + $0x20] sm:$0xff]
  %v692 = vld [vmem:[%s686 + $0x28] sm:$0xff]
  %v693 = vld [vmem:[%s686 + $0x30] sm:$0xff]
  %v694 = vld [vmem:[%s686 + $0x38] sm:$0xff]
  %v695 = vld [vmem:[%s686 + $0x40] sm:$0xff]
  %v696 = vld [vmem:[%s686 + $0x48] sm:$0xff]
  %v697 = vld [vmem:[%s686 + $0x50] sm:$0xff]
  %v698 = vld [vmem:[%s686 + $0x58] sm:$0xff]
  %v699 = vld [vmem:[%s686 + $0x60] sm:$0xff]
  %v700 = vld [vmem:[%s686 + $0x68] sm:$0xff]
  %v701 = vld [vmem:[%s686 + $0x70] sm:$0xff]
  %v702 = vld [vmem:[%s686 + $0x78] sm:$0xff]
  %s703 = scalar_lea.vmem %s2, 1
  %v704 = vld [vmem:[%s703] sm:$0x1]
  %v706 = vlaneseq
  %v707 = vshrl.u32 %v706, 7
  %v708 = vsub.s32 0, %v707
  %v709 = vrot.slane %v704, %v708
  %711 = vmatprep.subr.mxu0 0.0
  %v712 = vand.u32 %v687, 4294901760
  %713 = vmatpush1.msra.mxu0 %v712
  %714 = vmatprep.subr.mxu0 0.0
  %v715 = vand.u32 %v688, 4294901760
  %716 = vmatpush1.msra.mxu0 %v715
  %717 = vmatprep.subr.mxu0 0.0
  %v718 = vand.u32 %v689, 4294901760
  %719 = vmatpush1.msra.mxu0 %v718
  %720 = vmatprep.subr.mxu0 0.0
  %v721 = vand.u32 %v690, 4294901760
  %722 = vmatpush1.msra.mxu0 %v721
  %723 = vmatprep.subr.mxu0 0.0
  %v724 = vand.u32 %v691, 4294901760
  %725 = vmatpush1.msra.mxu0 %v724
  %726 = vmatprep.subr.mxu0 0.0
  %v727 = vand.u32 %v692, 4294901760
  %728 = vmatpush1.msra.mxu0 %v727
  %729 = vmatprep.subr.mxu0 0.0
  %v730 = vand.u32 %v693, 4294901760
  %731 = vmatpush1.msra.mxu0 %v730
  %732 = vmatprep.subr.mxu0 0.0
  %v733 = vand.u32 %v694, 4294901760
  %734 = vmatpush1.msra.mxu0 %v733
  %735 = vmatprep.subr.mxu0 0.0
  %v736 = vand.u32 %v695, 4294901760
  %737 = vmatpush1.msra.mxu0 %v736
  %738 = vmatprep.subr.mxu0 0.0
  %v739 = vand.u32 %v696, 4294901760
  %740 = vmatpush1.msra.mxu0 %v739
  %741 = vmatprep.subr.mxu0 0.0
  %v742 = vand.u32 %v697, 4294901760
  %743 = vmatpush1.msra.mxu0 %v742
  %744 = vmatprep.subr.mxu0 0.0
  %v745 = vand.u32 %v698, 4294901760
  %746 = vmatpush1.msra.mxu0 %v745
  %747 = vmatprep.subr.mxu0 0.0
  %v748 = vand.u32 %v699, 4294901760
  %749 = vmatpush1.msra.mxu0 %v748
  %750 = vmatprep.subr.mxu0 0.0
  %v751 = vand.u32 %v700, 4294901760
  %752 = vmatpush1.msra.mxu0 %v751
  %753 = vmatprep.subr.mxu0 0.0
  %v754 = vand.u32 %v701, 4294901760
  %755 = vmatpush1.msra.mxu0 %v754
  %756 = vmatprep.subr.mxu0 0.0
  %v757 = vand.u32 %v702, 4294901760
  %758 = vmatpush1.msra.mxu0 %v757
  %759 = vmatprep.subr.mxu0 0.0
  %760 = vmatpush1.msra.mxu0 0.0
  %761 = vmatprep.subr.mxu0 0.0
  %762 = vmatpush1.msra.mxu0 0.0
  %763 = vmatprep.subr.mxu0 0.0
  %764 = vmatpush1.msra.mxu0 0.0
  %765 = vmatprep.subr.mxu0 0.0
  %766 = vmatpush1.msra.mxu0 0.0
  %767 = vmatprep.subr.mxu0 0.0
  %768 = vmatpush1.msra.mxu0 0.0
  %769 = vmatprep.subr.mxu0 0.0
  %770 = vmatpush1.msra.mxu0 0.0
  %771 = vmatprep.subr.mxu0 0.0
  %772 = vmatpush1.msra.mxu0 0.0
  %773 = vmatprep.subr.mxu0 0.0
  %774 = vmatpush1.msra.mxu0 0.0
  %775 = vmatprep.subr.mxu0 0.0
  %776 = vmatpush1.msra.mxu0 0.0
  %777 = vmatprep.subr.mxu0 0.0
  %778 = vmatpush1.msra.mxu0 0.0
  %779 = vmatprep.subr.mxu0 0.0
  %780 = vmatpush1.msra.mxu0 0.0
  %781 = vmatprep.subr.mxu0 0.0
  %782 = vmatpush1.msra.mxu0 0.0
  %783 = vmatprep.subr.mxu0 0.0
  %784 = vmatpush1.msra.mxu0 0.0
  %785 = vmatprep.subr.mxu0 0.0
  %786 = vmatpush1.msra.mxu0 0.0
  %787 = vmatprep.subr.mxu0 0.0
  %788 = vmatpush1.msra.mxu0 0.0
  %789 = vmatprep.subr.mxu0 0.0
  %790 = vmatpush1.msra.mxu0 0.0
  %791 = vmatprep.mubr.f32.mxu0 0.0
  %v792 = vand.u32 %v685, 4294901760
  %v793 = vsub.f32 %v685, %v792
  %v794 = vand.u32 %v793, 4294901760
  %v795 = vsub.f32 %v793, %v794
  %v796 = vand.u32 %v795, 4294901760
  %797 = vmatmul.mubr.f32.gmra.mrb[0].mxu0 %v796
  %v798 = vpop.f32.mrb[0].mxu0
  %v799 = vadd.f32 %v709, %v798
  %v800 = vpop.f32.mrb[0].mxu0
  %801 = vdwg.mxu0
  %802 = vmatprep.subr.mxu0 0.0
  %v803 = vand.u32 %v687, 4294901760
  %v804 = vsub.f32 %v687, %v803
  %v805 = vand.u32 %v804, 4294901760
  %v806 = vsub.f32 %v804, %v805
  %v807 = vand.u32 %v806, 4294901760
  %808 = vmatpush1.msra.mxu0 %v807
  %809 = vmatprep.subr.mxu0 0.0
  %v810 = vand.u32 %v688, 4294901760
  %v811 = vsub.f32 %v688, %v810
  %v812 = vand.u32 %v811, 4294901760
  %v813 = vsub.f32 %v811, %v812
  %v814 = vand.u32 %v813, 4294901760
  %815 = vmatpush1.msra.mxu0 %v814
  %816 = vmatprep.subr.mxu0 0.0
  %v817 = vand.u32 %v689, 4294901760
  %v818 = vsub.f32 %v689, %v817
  %v819 = vand.u32 %v818, 4294901760
  %v820 = vsub.f32 %v818, %v819
  %v821 = vand.u32 %v820, 4294901760
  %822 = vmatpush1.msra.mxu0 %v821
  %823 = vmatprep.subr.mxu0 0.0
  %v824 = vand.u32 %v690, 4294901760
  %v825 = vsub.f32 %v690, %v824
  %v826 = vand.u32 %v825, 4294901760
  %v827 = vsub.f32 %v825, %v826
  %v828 = vand.u32 %v827, 4294901760
  %829 = vmatpush1.msra.mxu0 %v828
  %830 = vmatprep.subr.mxu0 0.0
  %v831 = vand.u32 %v691, 4294901760
  %v832 = vsub.f32 %v691, %v831
  %v833 = vand.u32 %v832, 4294901760
  %v834 = vsub.f32 %v832, %v833
  %v835 = vand.u32 %v834, 4294901760
  %836 = vmatpush1.msra.mxu0 %v835
  %837 = vmatprep.subr.mxu0 0.0
  %v838 = vand.u32 %v692, 4294901760
  %v839 = vsub.f32 %v692, %v838
  %v840 = vand.u32 %v839, 4294901760
  %v841 = vsub.f32 %v839, %v840
  %v842 = vand.u32 %v841, 4294901760
  %843 = vmatpush1.msra.mxu0 %v842
  %844 = vmatprep.subr.mxu0 0.0
  %v845 = vand.u32 %v693, 4294901760
  %v846 = vsub.f32 %v693, %v845
  %v847 = vand.u32 %v846, 4294901760
  %v848 = vsub.f32 %v846, %v847
  %v849 = vand.u32 %v848, 4294901760
  %850 = vmatpush1.msra.mxu0 %v849
  %851 = vmatprep.subr.mxu0 0.0
  %v852 = vand.u32 %v694, 4294901760
  %v853 = vsub.f32 %v694, %v852
  %v854 = vand.u32 %v853, 4294901760
  %v855 = vsub.f32 %v853, %v854
  %v856 = vand.u32 %v855, 4294901760
  %857 = vmatpush1.msra.mxu0 %v856
  %858 = vmatprep.subr.mxu0 0.0
  %v859 = vand.u32 %v695, 4294901760
  %v860 = vsub.f32 %v695, %v859
  %v861 = vand.u32 %v860, 4294901760
  %v862 = vsub.f32 %v860, %v861
  %v863 = vand.u32 %v862, 4294901760
  %864 = vmatpush1.msra.mxu0 %v863
  %865 = vmatprep.subr.mxu0 0.0
  %v866 = vand.u32 %v696, 4294901760
  %v867 = vsub.f32 %v696, %v866
  %v868 = vand.u32 %v867, 4294901760
  %v869 = vsub.f32 %v867, %v868
  %v870 = vand.u32 %v869, 4294901760
  %871 = vmatpush1.msra.mxu0 %v870
  %872 = vmatprep.subr.mxu0 0.0
  %v873 = vand.u32 %v697, 4294901760
  %v874 = vsub.f32 %v697, %v873
  %v875 = vand.u32 %v874, 4294901760
  %v876 = vsub.f32 %v874, %v875
  %v877 = vand.u32 %v876, 4294901760
  %878 = vmatpush1.msra.mxu0 %v877
  %879 = vmatprep.subr.mxu0 0.0
  %v880 = vand.u32 %v698, 4294901760
  %v881 = vsub.f32 %v698, %v880
  %v882 = vand.u32 %v881, 4294901760
  %v883 = vsub.f32 %v881, %v882
  %v884 = vand.u32 %v883, 4294901760
  %885 = vmatpush1.msra.mxu0 %v884
  %886 = vmatprep.subr.mxu0 0.0
  %v887 = vand.u32 %v699, 4294901760
  %v888 = vsub.f32 %v699, %v887
  %v889 = vand.u32 %v888, 4294901760
  %v890 = vsub.f32 %v888, %v889
  %v891 = vand.u32 %v890, 4294901760
  %892 = vmatpush1.msra.mxu0 %v891
  %893 = vmatprep.subr.mxu0 0.0
  %v894 = vand.u32 %v700, 4294901760
  %v895 = vsub.f32 %v700, %v894
  %v896 = vand.u32 %v895, 4294901760
  %v897 = vsub.f32 %v895, %v896
  %v898 = vand.u32 %v897, 4294901760
  %899 = vmatpush1.msra.mxu0 %v898
  %900 = vmatprep.subr.mxu0 0.0
  %v901 = vand.u32 %v701, 4294901760
  %v902 = vsub.f32 %v701, %v901
  %v903 = vand.u32 %v902, 4294901760
  %v904 = vsub.f32 %v902, %v903
  %v905 = vand.u32 %v904, 4294901760
  %906 = vmatpush1.msra.mxu0 %v905
  %907 = vmatprep.subr.mxu0 0.0
  %v908 = vand.u32 %v702, 4294901760
  %v909 = vsub.f32 %v702, %v908
  %v910 = vand.u32 %v909, 4294901760
  %v911 = vsub.f32 %v909, %v910
  %v912 = vand.u32 %v911, 4294901760
  %913 = vmatpush1.msra.mxu0 %v912
  %914 = vmatprep.subr.mxu0 0.0
  %915 = vmatpush1.msra.mxu0 0.0
  %916 = vmatprep.subr.mxu0 0.0
  %917 = vmatpush1.msra.mxu0 0.0
  %918 = vmatprep.subr.mxu0 0.0
  %919 = vmatpush1.msra.mxu0 0.0
  %920 = vmatprep.subr.mxu0 0.0
  %921 = vmatpush1.msra.mxu0 0.0
  %922 = vmatprep.subr.mxu0 0.0
  %923 = vmatpush1.msra.mxu0 0.0
  %924 = vmatprep.subr.mxu0 0.0
  %925 = vmatpush1.msra.mxu0 0.0
  %926 = vmatprep.subr.mxu0 0.0
  %927 = vmatpush1.msra.mxu0 0.0
  %928 = vmatprep.subr.mxu0 0.0
  %929 = vmatpush1.msra.mxu0 0.0
  %930 = vmatprep.subr.mxu0 0.0
  %931 = vmatpush1.msra.mxu0 0.0
  %932 = vmatprep.subr.mxu0 0.0
  %933 = vmatpush1.msra.mxu0 0.0
  %934 = vmatprep.subr.mxu0 0.0
  %935 = vmatpush1.msra.mxu0 0.0
  %936 = vmatprep.subr.mxu0 0.0
  %937 = vmatpush1.msra.mxu0 0.0
  %938 = vmatprep.subr.mxu0 0.0
  %939 = vmatpush1.msra.mxu0 0.0
  %940 = vmatprep.subr.mxu0 0.0
  %941 = vmatpush1.msra.mxu0 0.0
  %942 = vmatprep.subr.mxu0 0.0
  %943 = vmatpush1.msra.mxu0 0.0
  %944 = vmatprep.subr.mxu0 0.0
  %945 = vmatpush1.msra.mxu0 0.0
  %946 = vmatprep.mubr.f32.mxu0 0.0
  %v947 = vand.u32 %v685, 4294901760
  %948 = vmatmul.mubr.f32.gmra.mrb[0].mxu0 %v947
  %v949 = vpop.f32.mrb[0].mxu0
  %v950 = vadd.f32 %v799, %v949
  %v951 = vpop.f32.mrb[0].mxu0
  %952 = vdwg.mxu0
  %953 = vmatprep.subr.mxu0 0.0
  %v954 = vand.u32 %v687, 4294901760
  %v955 = vsub.f32 %v687, %v954
  %956 = vmatpush1.msra.mxu0 %v955
  %957 = vmatprep.subr.mxu0 0.0
  %v958 = vand.u32 %v688, 4294901760
  %v959 = vsub.f32 %v688, %v958
  %960 = vmatpush1.msra.mxu0 %v959
  %961 = vmatprep.subr.mxu0 0.0
  %v962 = vand.u32 %v689, 4294901760
  %v963 = vsub.f32 %v689, %v962
  %964 = vmatpush1.msra.mxu0 %v963
  %965 = vmatprep.subr.mxu0 0.0
  %v966 = vand.u32 %v690, 4294901760
  %v967 = vsub.f32 %v690, %v966
  %968 = vmatpush1.msra.mxu0 %v967
  %969 = vmatprep.subr.mxu0 0.0
  %v970 = vand.u32 %v691, 4294901760
  %v971 = vsub.f32 %v691, %v970
  %972 = vmatpush1.msra.mxu0 %v971
  %973 = vmatprep.subr.mxu0 0.0
  %v974 = vand.u32 %v692, 4294901760
  %v975 = vsub.f32 %v692, %v974
  %976 = vmatpush1.msra.mxu0 %v975
  %977 = vmatprep.subr.mxu0 0.0
  %v978 = vand.u32 %v693, 4294901760
  %v979 = vsub.f32 %v693, %v978
  %980 = vmatpush1.msra.mxu0 %v979
  %981 = vmatprep.subr.mxu0 0.0
  %v982 = vand.u32 %v694, 4294901760
  %v983 = vsub.f32 %v694, %v982
  %984 = vmatpush1.msra.mxu0 %v983
  %985 = vmatprep.subr.mxu0 0.0
  %v986 = vand.u32 %v695, 4294901760
  %v987 = vsub.f32 %v695, %v986
  %988 = vmatpush1.msra.mxu0 %v987
  %989 = vmatprep.subr.mxu0 0.0
  %v990 = vand.u32 %v696, 4294901760
  %v991 = vsub.f32 %v696, %v990
  %992 = vmatpush1.msra.mxu0 %v991
  %993 = vmatprep.subr.mxu0 0.0
  %v994 = vand.u32 %v697, 4294901760
  %v995 = vsub.f32 %v697, %v994
  %996 = vmatpush1.msra.mxu0 %v995
  %997 = vmatprep.subr.mxu0 0.0
  %v998 = vand.u32 %v698, 4294901760
  %v999 = vsub.f32 %v698, %v998
  %1000 = vmatpush1.msra.mxu0 %v999
  %1001 = vmatprep.subr.mxu0 0.0
  %v1002 = vand.u32 %v699, 4294901760
  %v1003 = vsub.f32 %v699, %v1002
  %1004 = vmatpush1.msra.mxu0 %v1003
  %1005 = vmatprep.subr.mxu0 0.0
  %v1006 = vand.u32 %v700, 4294901760
  %v1007 = vsub.f32 %v700, %v1006
  %1008 = vmatpush1.msra.mxu0 %v1007
  %1009 = vmatprep.subr.mxu0 0.0
  %v1010 = vand.u32 %v701, 4294901760
  %v1011 = vsub.f32 %v701, %v1010
  %1012 = vmatpush1.msra.mxu0 %v1011
  %1013 = vmatprep.subr.mxu0 0.0
  %v1014 = vand.u32 %v702, 4294901760
  %v1015 = vsub.f32 %v702, %v1014
  %1016 = vmatpush1.msra.mxu0 %v1015
  %1017 = vmatprep.subr.mxu0 0.0
  %1018 = vmatpush1.msra.mxu0 0.0
  %1019 = vmatprep.subr.mxu0 0.0
  %1020 = vmatpush1.msra.mxu0 0.0
  %1021 = vmatprep.subr.mxu0 0.0
  %1022 = vmatpush1.msra.mxu0 0.0
  %1023 = vmatprep.subr.mxu0 0.0
  %1024 = vmatpush1.msra.mxu0 0.0
  %1025 = vmatprep.subr.mxu0 0.0
  %1026 = vmatpush1.msra.mxu0 0.0
  %1027 = vmatprep.subr.mxu0 0.0
  %1028 = vmatpush1.msra.mxu0 0.0
  %1029 = vmatprep.subr.mxu0 0.0
  %1030 = vmatpush1.msra.mxu0 0.0
  %1031 = vmatprep.subr.mxu0 0.0
  %1032 = vmatpush1.msra.mxu0 0.0
  %1033 = vmatprep.subr.mxu0 0.0
  %1034 = vmatpush1.msra.mxu0 0.0
  %1035 = vmatprep.subr.mxu0 0.0
  %1036 = vmatpush1.msra.mxu0 0.0
  %1037 = vmatprep.subr.mxu0 0.0
  %1038 = vmatpush1.msra.mxu0 0.0
  %1039 = vmatprep.subr.mxu0 0.0
  %1040 = vmatpush1.msra.mxu0 0.0
  %1041 = vmatprep.subr.mxu0 0.0
  %1042 = vmatpush1.msra.mxu0 0.0
  %1043 = vmatprep.subr.mxu0 0.0
  %1044 = vmatpush1.msra.mxu0 0.0
  %1045 = vmatprep.subr.mxu0 0.0
  %1046 = vmatpush1.msra.mxu0 0.0
  %1047 = vmatprep.subr.mxu0 0.0
  %1048 = vmatpush1.msra.mxu0 0.0
  %1049 = vmatprep.mubr.f32.mxu0 0.0
  %v1050 = vand.u32 %v685, 4294901760
  %v1051 = vsub.f32 %v685, %v1050
  %1052 = vmatmul.mubr.f32.gmra.mrb[0].mxu0 %v1051
  %v1053 = vpop.f32.mrb[0].mxu0
  %v1054 = vadd.f32 %v950, %v1053
  %v1055 = vpop.f32.mrb[0].mxu0
  %1056 = vdwg.mxu0
  %1057 = vmatprep.subr.mxu0 0.0
  %v1058 = vand.u32 %v687, 4294901760
  %1059 = vmatpush1.msra.mxu0 %v1058
  %1060 = vmatprep.subr.mxu0 0.0
  %v1061 = vand.u32 %v688, 4294901760
  %1062 = vmatpush1.msra.mxu0 %v1061
  %1063 = vmatprep.subr.mxu0 0.0
  %v1064 = vand.u32 %v689, 4294901760
  %1065 = vmatpush1.msra.mxu0 %v1064
  %1066 = vmatprep.subr.mxu0 0.0
  %v1067 = vand.u32 %v690, 4294901760
  %1068 = vmatpush1.msra.mxu0 %v1067
  %1069 = vmatprep.subr.mxu0 0.0
  %v1070 = vand.u32 %v691, 4294901760
  %1071 = vmatpush1.msra.mxu0 %v1070
  %1072 = vmatprep.subr.mxu0 0.0
  %v1073 = vand.u32 %v692, 4294901760
  %1074 = vmatpush1.msra.mxu0 %v1073
  %1075 = vmatprep.subr.mxu0 0.0
  %v1076 = vand.u32 %v693, 4294901760
  %1077 = vmatpush1.msra.mxu0 %v1076
  %1078 = vmatprep.subr.mxu0 0.0
  %v1079 = vand.u32 %v694, 4294901760
  %1080 = vmatpush1.msra.mxu0 %v1079
  %1081 = vmatprep.subr.mxu0 0.0
  %v1082 = vand.u32 %v695, 4294901760
  %1083 = vmatpush1.msra.mxu0 %v1082
  %1084 = vmatprep.subr.mxu0 0.0
  %v1085 = vand.u32 %v696, 4294901760
  %1086 = vmatpush1.msra.mxu0 %v1085
  %1087 = vmatprep.subr.mxu0 0.0
  %v1088 = vand.u32 %v697, 4294901760
  %1089 = vmatpush1.msra.mxu0 %v1088
  %1090 = vmatprep.subr.mxu0 0.0
  %v1091 = vand.u32 %v698, 4294901760
  %1092 = vmatpush1.msra.mxu0 %v1091
  %1093 = vmatprep.subr.mxu0 0.0
  %v1094 = vand.u32 %v699, 4294901760
  %1095 = vmatpush1.msra.mxu0 %v1094
  %1096 = vmatprep.subr.mxu0 0.0
  %v1097 = vand.u32 %v700, 4294901760
  %1098 = vmatpush1.msra.mxu0 %v1097
  %1099 = vmatprep.subr.mxu0 0.0
  %v1100 = vand.u32 %v701, 4294901760
  %1101 = vmatpush1.msra.mxu0 %v1100
  %1102 = vmatprep.subr.mxu0 0.0
  %v1103 = vand.u32 %v702, 4294901760
  %1104 = vmatpush1.msra.mxu0 %v1103
  %1105 = vmatprep.subr.mxu0 0.0
  %1106 = vmatpush1.msra.mxu0 0.0
  %1107 = vmatprep.subr.mxu0 0.0
  %1108 = vmatpush1.msra.mxu0 0.0
  %1109 = vmatprep.subr.mxu0 0.0
  %1110 = vmatpush1.msra.mxu0 0.0
  %1111 = vmatprep.subr.mxu0 0.0
  %1112 = vmatpush1.msra.mxu0 0.0
  %1113 = vmatprep.subr.mxu0 0.0
  %1114 = vmatpush1.msra.mxu0 0.0
  %1115 = vmatprep.subr.mxu0 0.0
  %1116 = vmatpush1.msra.mxu0 0.0
  %1117 = vmatprep.subr.mxu0 0.0
  %1118 = vmatpush1.msra.mxu0 0.0
  %1119 = vmatprep.subr.mxu0 0.0
  %1120 = vmatpush1.msra.mxu0 0.0
  %1121 = vmatprep.subr.mxu0 0.0
  %1122 = vmatpush1.msra.mxu0 0.0
  %1123 = vmatprep.subr.mxu0 0.0
  %1124 = vmatpush1.msra.mxu0 0.0
  %1125 = vmatprep.subr.mxu0 0.0
  %1126 = vmatpush1.msra.mxu0 0.0
  %1127 = vmatprep.subr.mxu0 0.0
  %1128 = vmatpush1.msra.mxu0 0.0
  %1129 = vmatprep.subr.mxu0 0.0
  %1130 = vmatpush1.msra.mxu0 0.0
  %1131 = vmatprep.subr.mxu0 0.0
  %1132 = vmatpush1.msra.mxu0 0.0
  %1133 = vmatprep.subr.mxu0 0.0
  %1134 = vmatpush1.msra.mxu0 0.0
  %1135 = vmatprep.subr.mxu0 0.0
  %1136 = vmatpush1.msra.mxu0 0.0
  %1137 = vmatprep.mubr.f32.mxu0 0.0
  %v1138 = vand.u32 %v685, 4294901760
  %v1139 = vsub.f32 %v685, %v1138
  %v1140 = vand.u32 %v1139, 4294901760
  %1141 = vmatmul.mubr.f32.gmra.mrb[0].mxu0 %v1140
  %v1142 = vpop.f32.mrb[0].mxu0
  %v1143 = vadd.f32 %v1054, %v1142
  %v1144 = vpop.f32.mrb[0].mxu0
  %1145 = vdwg.mxu0
  %1146 = vmatprep.subr.mxu0 0.0
  %v1147 = vand.u32 %v687, 4294901760
  %v1148 = vsub.f32 %v687, %v1147
  %v1149 = vand.u32 %v1148, 4294901760
  %1150 = vmatpush1.msra.mxu0 %v1149
  %1151 = vmatprep.subr.mxu0 0.0
  %v1152 = vand.u32 %v688, 4294901760
  %v1153 = vsub.f32 %v688, %v1152
  %v1154 = vand.u32 %v1153, 4294901760
  %1155 = vmatpush1.msra.mxu0 %v1154
  %1156 = vmatprep.subr.mxu0 0.0
  %v1157 = vand.u32 %v689, 4294901760
  %v1158 = vsub.f32 %v689, %v1157
  %v1159 = vand.u32 %v1158, 4294901760
  %1160 = vmatpush1.msra.mxu0 %v1159
  %1161 = vmatprep.subr.mxu0 0.0
  %v1162 = vand.u32 %v690, 4294901760
  %v1163 = vsub.f32 %v690, %v1162
  %v1164 = vand.u32 %v1163, 4294901760
  %1165 = vmatpush1.msra.mxu0 %v1164
  %1166 = vmatprep.subr.mxu0 0.0
  %v1167 = vand.u32 %v691, 4294901760
  %v1168 = vsub.f32 %v691, %v1167
  %v1169 = vand.u32 %v1168, 4294901760
  %1170 = vmatpush1.msra.mxu0 %v1169
  %1171 = vmatprep.subr.mxu0 0.0
  %v1172 = vand.u32 %v692, 4294901760
  %v1173 = vsub.f32 %v692, %v1172
  %v1174 = vand.u32 %v1173, 4294901760
  %1175 = vmatpush1.msra.mxu0 %v1174
  %1176 = vmatprep.subr.mxu0 0.0
  %v1177 = vand.u32 %v693, 4294901760
  %v1178 = vsub.f32 %v693, %v1177
  %v1179 = vand.u32 %v1178, 4294901760
  %1180 = vmatpush1.msra.mxu0 %v1179
  %1181 = vmatprep.subr.mxu0 0.0
  %v1182 = vand.u32 %v694, 4294901760
  %v1183 = vsub.f32 %v694, %v1182
  %v1184 = vand.u32 %v1183, 4294901760
  %1185 = vmatpush1.msra.mxu0 %v1184
  %1186 = vmatprep.subr.mxu0 0.0
  %v1187 = vand.u32 %v695, 4294901760
  %v1188 = vsub.f32 %v695, %v1187
  %v1189 = vand.u32 %v1188, 4294901760
  %1190 = vmatpush1.msra.mxu0 %v1189
  %1191 = vmatprep.subr.mxu0 0.0
  %v1192 = vand.u32 %v696, 4294901760
  %v1193 = vsub.f32 %v696, %v1192
  %v1194 = vand.u32 %v1193, 4294901760
  %1195 = vmatpush1.msra.mxu0 %v1194
  %1196 = vmatprep.subr.mxu0 0.0
  %v1197 = vand.u32 %v697, 4294901760
  %v1198 = vsub.f32 %v697, %v1197
  %v1199 = vand.u32 %v1198, 4294901760
  %1200 = vmatpush1.msra.mxu0 %v1199
  %1201 = vmatprep.subr.mxu0 0.0
  %v1202 = vand.u32 %v698, 4294901760
  %v1203 = vsub.f32 %v698, %v1202
  %v1204 = vand.u32 %v1203, 4294901760
  %1205 = vmatpush1.msra.mxu0 %v1204
  %1206 = vmatprep.subr.mxu0 0.0
  %v1207 = vand.u32 %v699, 4294901760
  %v1208 = vsub.f32 %v699, %v1207
  %v1209 = vand.u32 %v1208, 4294901760
  %1210 = vmatpush1.msra.mxu0 %v1209
  %1211 = vmatprep.subr.mxu0 0.0
  %v1212 = vand.u32 %v700, 4294901760
  %v1213 = vsub.f32 %v700, %v1212
  %v1214 = vand.u32 %v1213, 4294901760
  %1215 = vmatpush1.msra.mxu0 %v1214
  %1216 = vmatprep.subr.mxu0 0.0
  %v1217 = vand.u32 %v701, 4294901760
  %v1218 = vsub.f32 %v701, %v1217
  %v1219 = vand.u32 %v1218, 4294901760
  %1220 = vmatpush1.msra.mxu0 %v1219
  %1221 = vmatprep.subr.mxu0 0.0
  %v1222 = vand.u32 %v702, 4294901760
  %v1223 = vsub.f32 %v702, %v1222
  %v1224 = vand.u32 %v1223, 4294901760
  %1225 = vmatpush1.msra.mxu0 %v1224
  %1226 = vmatprep.subr.mxu0 0.0
  %1227 = vmatpush1.msra.mxu0 0.0
  %1228 = vmatprep.subr.mxu0 0.0
  %1229 = vmatpush1.msra.mxu0 0.0
  %1230 = vmatprep.subr.mxu0 0.0
  %1231 = vmatpush1.msra.mxu0 0.0
  %1232 = vmatprep.subr.mxu0 0.0
  %1233 = vmatpush1.msra.mxu0 0.0
  %1234 = vmatprep.subr.mxu0 0.0
  %1235 = vmatpush1.msra.mxu0 0.0
  %1236 = vmatprep.subr.mxu0 0.0
  %1237 = vmatpush1.msra.mxu0 0.0
  %1238 = vmatprep.subr.mxu0 0.0
  %1239 = vmatpush1.msra.mxu0 0.0
  %1240 = vmatprep.subr.mxu0 0.0
  %1241 = vmatpush1.msra.mxu0 0.0
  %1242 = vmatprep.subr.mxu0 0.0
  %1243 = vmatpush1.msra.mxu0 0.0
  %1244 = vmatprep.subr.mxu0 0.0
  %1245 = vmatpush1.msra.mxu0 0.0
  %1246 = vmatprep.subr.mxu0 0.0
  %1247 = vmatpush1.msra.mxu0 0.0
  %1248 = vmatprep.subr.mxu0 0.0
  %1249 = vmatpush1.msra.mxu0 0.0
  %1250 = vmatprep.subr.mxu0 0.0
  %1251 = vmatpush1.msra.mxu0 0.0
  %1252 = vmatprep.subr.mxu0 0.0
  %1253 = vmatpush1.msra.mxu0 0.0
  %1254 = vmatprep.subr.mxu0 0.0
  %1255 = vmatpush1.msra.mxu0 0.0
  %1256 = vmatprep.subr.mxu0 0.0
  %1257 = vmatpush1.msra.mxu0 0.0
  %1258 = vmatprep.mubr.f32.mxu0 0.0
  %v1259 = vand.u32 %v685, 4294901760
  %1260 = vmatmul.mubr.f32.gmra.mrb[0].mxu0 %v1259
  %v1261 = vpop.f32.mrb[0].mxu0
  %v1262 = vadd.f32 %v1143, %v1261
  %v1263 = vpop.f32.mrb[0].mxu0
  %1264 = vdwg.mxu0
  %1265 = vmatprep.subr.mxu0 0.0
  %v1266 = vand.u32 %v687, 4294901760
  %1267 = vmatpush1.msra.mxu0 %v1266
  %1268 = vmatprep.subr.mxu0 0.0
  %v1269 = vand.u32 %v688, 4294901760
  %1270 = vmatpush1.msra.mxu0 %v1269
  %1271 = vmatprep.subr.mxu0 0.0
  %v1272 = vand.u32 %v689, 4294901760
  %1273 = vmatpush1.msra.mxu0 %v1272
  %1274 = vmatprep.subr.mxu0 0.0
  %v1275 = vand.u32 %v690, 4294901760
  %1276 = vmatpush1.msra.mxu0 %v1275
  %1277 = vmatprep.subr.mxu0 0.0
  %v1278 = vand.u32 %v691, 4294901760
  %1279 = vmatpush1.msra.mxu0 %v1278
  %1280 = vmatprep.subr.mxu0 0.0
  %v1281 = vand.u32 %v692, 4294901760
  %1282 = vmatpush1.msra.mxu0 %v1281
  %1283 = vmatprep.subr.mxu0 0.0
  %v1284 = vand.u32 %v693, 4294901760
  %1285 = vmatpush1.msra.mxu0 %v1284
  %1286 = vmatprep.subr.mxu0 0.0
  %v1287 = vand.u32 %v694, 4294901760
  %1288 = vmatpush1.msra.mxu0 %v1287
  %1289 = vmatprep.subr.mxu0 0.0
  %v1290 = vand.u32 %v695, 4294901760
  %1291 = vmatpush1.msra.mxu0 %v1290
  %1292 = vmatprep.subr.mxu0 0.0
  %v1293 = vand.u32 %v696, 4294901760
  %1294 = vmatpush1.msra.mxu0 %v1293
  %1295 = vmatprep.subr.mxu0 0.0
  %v1296 = vand.u32 %v697, 4294901760
  %1297 = vmatpush1.msra.mxu0 %v1296
  %1298 = vmatprep.subr.mxu0 0.0
  %v1299 = vand.u32 %v698, 4294901760
  %1300 = vmatpush1.msra.mxu0 %v1299
  %1301 = vmatprep.subr.mxu0 0.0
  %v1302 = vand.u32 %v699, 4294901760
  %1303 = vmatpush1.msra.mxu0 %v1302
  %1304 = vmatprep.subr.mxu0 0.0
  %v1305 = vand.u32 %v700, 4294901760
  %1306 = vmatpush1.msra.mxu0 %v1305
  %1307 = vmatprep.subr.mxu0 0.0
  %v1308 = vand.u32 %v701, 4294901760
  %1309 = vmatpush1.msra.mxu0 %v1308
  %1310 = vmatprep.subr.mxu0 0.0
  %v1311 = vand.u32 %v702, 4294901760
  %1312 = vmatpush1.msra.mxu0 %v1311
  %1313 = vmatprep.subr.mxu0 0.0
  %1314 = vmatpush1.msra.mxu0 0.0
  %1315 = vmatprep.subr.mxu0 0.0
  %1316 = vmatpush1.msra.mxu0 0.0
  %1317 = vmatprep.subr.mxu0 0.0
  %1318 = vmatpush1.msra.mxu0 0.0
  %1319 = vmatprep.subr.mxu0 0.0
  %1320 = vmatpush1.msra.mxu0 0.0
  %1321 = vmatprep.subr.mxu0 0.0
  %1322 = vmatpush1.msra.mxu0 0.0
  %1323 = vmatprep.subr.mxu0 0.0
  %1324 = vmatpush1.msra.mxu0 0.0
  %1325 = vmatprep.subr.mxu0 0.0
  %1326 = vmatpush1.msra.mxu0 0.0
  %1327 = vmatprep.subr.mxu0 0.0
  %1328 = vmatpush1.msra.mxu0 0.0
  %1329 = vmatprep.subr.mxu0 0.0
  %1330 = vmatpush1.msra.mxu0 0.0
  %1331 = vmatprep.subr.mxu0 0.0
  %1332 = vmatpush1.msra.mxu0 0.0
  %1333 = vmatprep.subr.mxu0 0.0
  %1334 = vmatpush1.msra.mxu0 0.0
  %1335 = vmatprep.subr.mxu0 0.0
  %1336 = vmatpush1.msra.mxu0 0.0
  %1337 = vmatprep.subr.mxu0 0.0
  %1338 = vmatpush1.msra.mxu0 0.0
  %1339 = vmatprep.subr.mxu0 0.0
  %1340 = vmatpush1.msra.mxu0 0.0
  %1341 = vmatprep.subr.mxu0 0.0
  %1342 = vmatpush1.msra.mxu0 0.0
  %1343 = vmatprep.subr.mxu0 0.0
  %1344 = vmatpush1.msra.mxu0 0.0
  %1345 = vmatprep.mubr.f32.mxu0 0.0
  %v1346 = vand.u32 %v685, 4294901760
  %1347 = vmatmul.mubr.f32.gmra.mrb[0].mxu0 %v1346
  %v1348 = vpop.f32.mrb[0].mxu0
  %v1349 = vadd.f32 %v1262, %v1348
  %v1350 = vpop.f32.mrb[0].mxu0
  %1351 = vdwg.mxu0
  %v1352 = vxor.u32 %v1349, 2147483648
  %v1353 = vmul.f32 %v1352, 1.442695
  %v1354 = vpow.pop %v1353
  %v1355 = vadd.f32 %v1354, 1.0
  %v1356 = vrcp.pop %v1355
  %v1357 = vmul.f32 1.0, %v1356
  %v1358 = vmul.f32 %v1349, %v1357
  %s1359 = scalar_lea.vmem %s1, 256
  %v1360 = vld [vmem:[%s1359] sm:$0xff]
  %v1361 = vld [vmem:[%s1359 + $0x8] sm:$0xff]
  %v1362 = vld [vmem:[%s1359 + $0x10] sm:$0xff]
  %v1363 = vld [vmem:[%s1359 + $0x18] sm:$0xff]
  %v1364 = vld [vmem:[%s1359 + $0x20] sm:$0xff]
  %v1365 = vld [vmem:[%s1359 + $0x28] sm:$0xff]
  %v1366 = vld [vmem:[%s1359 + $0x30] sm:$0xff]
  %v1367 = vld [vmem:[%s1359 + $0x38] sm:$0xff]
  %v1368 = vld [vmem:[%s1359 + $0x40] sm:$0xff]
  %v1369 = vld [vmem:[%s1359 + $0x48] sm:$0xff]
  %v1370 = vld [vmem:[%s1359 + $0x50] sm:$0xff]
  %v1371 = vld [vmem:[%s1359 + $0x58] sm:$0xff]
  %v1372 = vld [vmem:[%s1359 + $0x60] sm:$0xff]
  %v1373 = vld [vmem:[%s1359 + $0x68] sm:$0xff]
  %v1374 = vld [vmem:[%s1359 + $0x70] sm:$0xff]
  %v1375 = vld [vmem:[%s1359 + $0x78] sm:$0xff]
  %s1376 = scalar_lea.vmem %s2, 2
  %v1377 = vld [vmem:[%s1376] sm:$0x1]
  %v1379 = vlaneseq
  %v1380 = vshrl.u32 %v1379, 7
  %v1381 = vsub.s32 0, %v1380
  %v1382 = vrot.slane %v1377, %v1381
  %1384 = vmatprep.subr.mxu0 0.0
  %v1385 = vand.u32 %v1360, 4294901760
  %1386 = vmatpush1.msra.mxu0 %v1385
  %1387 = vmatprep.subr.mxu0 0.0
  %v1388 = vand.u32 %v1361, 4294901760
  %1389 = vmatpush1.msra.mxu0 %v1388
  %1390 = vmatprep.subr.mxu0 0.0
  %v1391 = vand.u32 %v1362, 4294901760
  %1392 = vmatpush1.msra.mxu0 %v1391
  %1393 = vmatprep.subr.mxu0 0.0
  %v1394 = vand.u32 %v1363, 4294901760
  %1395 = vmatpush1.msra.mxu0 %v1394
  %1396 = vmatprep.subr.mxu0 0.0
  %v1397 = vand.u32 %v1364, 4294901760
  %1398 = vmatpush1.msra.mxu0 %v1397
  %1399 = vmatprep.subr.mxu0 0.0
  %v1400 = vand.u32 %v1365, 4294901760
  %1401 = vmatpush1.msra.mxu0 %v1400
  %1402 = vmatprep.subr.mxu0 0.0
  %v1403 = vand.u32 %v1366, 4294901760
  %1404 = vmatpush1.msra.mxu0 %v1403
  %1405 = vmatprep.subr.mxu0 0.0
  %v1406 = vand.u32 %v1367, 4294901760
  %1407 = vmatpush1.msra.mxu0 %v1406
  %1408 = vmatprep.subr.mxu0 0.0
  %v1409 = vand.u32 %v1368, 4294901760
  %1410 = vmatpush1.msra.mxu0 %v1409
  %1411 = vmatprep.subr.mxu0 0.0
  %v1412 = vand.u32 %v1369, 4294901760
  %1413 = vmatpush1.msra.mxu0 %v1412
  %1414 = vmatprep.subr.mxu0 0.0
  %v1415 = vand.u32 %v1370, 4294901760
  %1416 = vmatpush1.msra.mxu0 %v1415
  %1417 = vmatprep.subr.mxu0 0.0
  %v1418 = vand.u32 %v1371, 4294901760
  %1419 = vmatpush1.msra.mxu0 %v1418
  %1420 = vmatprep.subr.mxu0 0.0
  %v1421 = vand.u32 %v1372, 4294901760
  %1422 = vmatpush1.msra.mxu0 %v1421
  %1423 = vmatprep.subr.mxu0 0.0
  %v1424 = vand.u32 %v1373, 4294901760
  %1425 = vmatpush1.msra.mxu0 %v1424
  %1426 = vmatprep.subr.mxu0 0.0
  %v1427 = vand.u32 %v1374, 4294901760
  %1428 = vmatpush1.msra.mxu0 %v1427
  %1429 = vmatprep.subr.mxu0 0.0
  %v1430 = vand.u32 %v1375, 4294901760
  %1431 = vmatpush1.msra.mxu0 %v1430
  %1432 = vmatprep.subr.mxu0 0.0
  %1433 = vmatpush1.msra.mxu0 0.0
  %1434 = vmatprep.subr.mxu0 0.0
  %1435 = vmatpush1.msra.mxu0 0.0
  %1436 = vmatprep.subr.mxu0 0.0
  %1437 = vmatpush1.msra.mxu0 0.0
  %1438 = vmatprep.subr.mxu0 0.0
  %1439 = vmatpush1.msra.mxu0 0.0
  %1440 = vmatprep.subr.mxu0 0.0
  %1441 = vmatpush1.msra.mxu0 0.0
  %1442 = vmatprep.subr.mxu0 0.0
  %1443 = vmatpush1.msra.mxu0 0.0
  %1444 = vmatprep.subr.mxu0 0.0
  %1445 = vmatpush1.msra.mxu0 0.0
  %1446 = vmatprep.subr.mxu0 0.0
  %1447 = vmatpush1.msra.mxu0 0.0
  %1448 = vmatprep.subr.mxu0 0.0
  %1449 = vmatpush1.msra.mxu0 0.0
  %1450 = vmatprep.subr.mxu0 0.0
  %1451 = vmatpush1.msra.mxu0 0.0
  %1452 = vmatprep.subr.mxu0 0.0
  %1453 = vmatpush1.msra.mxu0 0.0
  %1454 = vmatprep.subr.mxu0 0.0
  %1455 = vmatpush1.msra.mxu0 0.0
  %1456 = vmatprep.subr.mxu0 0.0
  %1457 = vmatpush1.msra.mxu0 0.0
  %1458 = vmatprep.subr.mxu0 0.0
  %1459 = vmatpush1.msra.mxu0 0.0
  %1460 = vmatprep.subr.mxu0 0.0
  %1461 = vmatpush1.msra.mxu0 0.0
  %1462 = vmatprep.subr.mxu0 0.0
  %1463 = vmatpush1.msra.mxu0 0.0
  %1464 = vmatprep.mubr.f32.mxu0 0.0
  %v1465 = vand.u32 %v1358, 4294901760
  %v1466 = vsub.f32 %v1358, %v1465
  %v1467 = vand.u32 %v1466, 4294901760
  %v1468 = vsub.f32 %v1466, %v1467
  %v1469 = vand.u32 %v1468, 4294901760
  %1470 = vmatmul.mubr.f32.gmra.mrb[0].mxu0 %v1469
  %v1471 = vpop.f32.mrb[0].mxu0
  %v1472 = vadd.f32 %v1382, %v1471
  %v1473 = vpop.f32.mrb[0].mxu0
  %1474 = vdwg.mxu0
  %1475 = vmatprep.subr.mxu0 0.0
  %v1476 = vand.u32 %v1360, 4294901760
  %v1477 = vsub.f32 %v1360, %v1476
  %v1478 = vand.u32 %v1477, 4294901760
  %v1479 = vsub.f32 %v1477, %v1478
  %v1480 = vand.u32 %v1479, 4294901760
  %1481 = vmatpush1.msra.mxu0 %v1480
  %1482 = vmatprep.subr.mxu0 0.0
  %v1483 = vand.u32 %v1361, 4294901760
  %v1484 = vsub.f32 %v1361, %v1483
  %v1485 = vand.u32 %v1484, 4294901760
  %v1486 = vsub.f32 %v1484, %v1485
  %v1487 = vand.u32 %v1486, 4294901760
  %1488 = vmatpush1.msra.mxu0 %v1487
  %1489 = vmatprep.subr.mxu0 0.0
  %v1490 = vand.u32 %v1362, 4294901760
  %v1491 = vsub.f32 %v1362, %v1490
  %v1492 = vand.u32 %v1491, 4294901760
  %v1493 = vsub.f32 %v1491, %v1492
  %v1494 = vand.u32 %v1493, 4294901760
  %1495 = vmatpush1.msra.mxu0 %v1494
  %1496 = vmatprep.subr.mxu0 0.0
  %v1497 = vand.u32 %v1363, 4294901760
  %v1498 = vsub.f32 %v1363, %v1497
  %v1499 = vand.u32 %v1498, 4294901760
  %v1500 = vsub.f32 %v1498, %v1499
  %v1501 = vand.u32 %v1500, 4294901760
  %1502 = vmatpush1.msra.mxu0 %v1501
  %1503 = vmatprep.subr.mxu0 0.0
  %v1504 = vand.u32 %v1364, 4294901760
  %v1505 = vsub.f32 %v1364, %v1504
  %v1506 = vand.u32 %v1505, 4294901760
  %v1507 = vsub.f32 %v1505, %v1506
  %v1508 = vand.u32 %v1507, 4294901760
  %1509 = vmatpush1.msra.mxu0 %v1508
  %1510 = vmatprep.subr.mxu0 0.0
  %v1511 = vand.u32 %v1365, 4294901760
  %v1512 = vsub.f32 %v1365, %v1511
  %v1513 = vand.u32 %v1512, 4294901760
  %v1514 = vsub.f32 %v1512, %v1513
  %v1515 = vand.u32 %v1514, 4294901760
  %1516 = vmatpush1.msra.mxu0 %v1515
  %1517 = vmatprep.subr.mxu0 0.0
  %v1518 = vand.u32 %v1366, 4294901760
  %v1519 = vsub.f32 %v1366, %v1518
  %v1520 = vand.u32 %v1519, 4294901760
  %v1521 = vsub.f32 %v1519, %v1520
  %v1522 = vand.u32 %v1521, 4294901760
  %1523 = vmatpush1.msra.mxu0 %v1522
  %1524 = vmatprep.subr.mxu0 0.0
  %v1525 = vand.u32 %v1367, 4294901760
  %v1526 = vsub.f32 %v1367, %v1525
  %v1527 = vand.u32 %v1526, 4294901760
  %v1528 = vsub.f32 %v1526, %v1527
  %v1529 = vand.u32 %v1528, 4294901760
  %1530 = vmatpush1.msra.mxu0 %v1529
  %1531 = vmatprep.subr.mxu0 0.0
  %v1532 = vand.u32 %v1368, 4294901760
  %v1533 = vsub.f32 %v1368, %v1532
  %v1534 = vand.u32 %v1533, 4294901760
  %v1535 = vsub.f32 %v1533, %v1534
  %v1536 = vand.u32 %v1535, 4294901760
  %1537 = vmatpush1.msra.mxu0 %v1536
  %1538 = vmatprep.subr.mxu0 0.0
  %v1539 = vand.u32 %v1369, 4294901760
  %v1540 = vsub.f32 %v1369, %v1539
  %v1541 = vand.u32 %v1540, 4294901760
  %v1542 = vsub.f32 %v1540, %v1541
  %v1543 = vand.u32 %v1542, 4294901760
  %1544 = vmatpush1.msra.mxu0 %v1543
  %1545 = vmatprep.subr.mxu0 0.0
  %v1546 = vand.u32 %v1370, 4294901760
  %v1547 = vsub.f32 %v1370, %v1546
  %v1548 = vand.u32 %v1547, 4294901760
  %v1549 = vsub.f32 %v1547, %v1548
  %v1550 = vand.u32 %v1549, 4294901760
  %1551 = vmatpush1.msra.mxu0 %v1550
  %1552 = vmatprep.subr.mxu0 0.0
  %v1553 = vand.u32 %v1371, 4294901760
  %v1554 = vsub.f32 %v1371, %v1553
  %v1555 = vand.u32 %v1554, 4294901760
  %v1556 = vsub.f32 %v1554, %v1555
  %v1557 = vand.u32 %v1556, 4294901760
  %1558 = vmatpush1.msra.mxu0 %v1557
  %1559 = vmatprep.subr.mxu0 0.0
  %v1560 = vand.u32 %v1372, 4294901760
  %v1561 = vsub.f32 %v1372, %v1560
  %v1562 = vand.u32 %v1561, 4294901760
  %v1563 = vsub.f32 %v1561, %v1562
  %v1564 = vand.u32 %v1563, 4294901760
  %1565 = vmatpush1.msra.mxu0 %v1564
  %1566 = vmatprep.subr.mxu0 0.0
  %v1567 = vand.u32 %v1373, 4294901760
  %v1568 = vsub.f32 %v1373, %v1567
  %v1569 = vand.u32 %v1568, 4294901760
  %v1570 = vsub.f32 %v1568, %v1569
  %v1571 = vand.u32 %v1570, 4294901760
  %1572 = vmatpush1.msra.mxu0 %v1571
  %1573 = vmatprep.subr.mxu0 0.0
  %v1574 = vand.u32 %v1374, 4294901760
  %v1575 = vsub.f32 %v1374, %v1574
  %v1576 = vand.u32 %v1575, 4294901760
  %v1577 = vsub.f32 %v1575, %v1576
  %v1578 = vand.u32 %v1577, 4294901760
  %1579 = vmatpush1.msra.mxu0 %v1578
  %1580 = vmatprep.subr.mxu0 0.0
  %v1581 = vand.u32 %v1375, 4294901760
  %v1582 = vsub.f32 %v1375, %v1581
  %v1583 = vand.u32 %v1582, 4294901760
  %v1584 = vsub.f32 %v1582, %v1583
  %v1585 = vand.u32 %v1584, 4294901760
  %1586 = vmatpush1.msra.mxu0 %v1585
  %1587 = vmatprep.subr.mxu0 0.0
  %1588 = vmatpush1.msra.mxu0 0.0
  %1589 = vmatprep.subr.mxu0 0.0
  %1590 = vmatpush1.msra.mxu0 0.0
  %1591 = vmatprep.subr.mxu0 0.0
  %1592 = vmatpush1.msra.mxu0 0.0
  %1593 = vmatprep.subr.mxu0 0.0
  %1594 = vmatpush1.msra.mxu0 0.0
  %1595 = vmatprep.subr.mxu0 0.0
  %1596 = vmatpush1.msra.mxu0 0.0
  %1597 = vmatprep.subr.mxu0 0.0
  %1598 = vmatpush1.msra.mxu0 0.0
  %1599 = vmatprep.subr.mxu0 0.0
  %1600 = vmatpush1.msra.mxu0 0.0
  %1601 = vmatprep.subr.mxu0 0.0
  %1602 = vmatpush1.msra.mxu0 0.0
  %1603 = vmatprep.subr.mxu0 0.0
  %1604 = vmatpush1.msra.mxu0 0.0
  %1605 = vmatprep.subr.mxu0 0.0
  %1606 = vmatpush1.msra.mxu0 0.0
  %1607 = vmatprep.subr.mxu0 0.0
  %1608 = vmatpush1.msra.mxu0 0.0
  %1609 = vmatprep.subr.mxu0 0.0
  %1610 = vmatpush1.msra.mxu0 0.0
  %1611 = vmatprep.subr.mxu0 0.0
  %1612 = vmatpush1.msra.mxu0 0.0
  %1613 = vmatprep.subr.mxu0 0.0
  %1614 = vmatpush1.msra.mxu0 0.0
  %1615 = vmatprep.subr.mxu0 0.0
  %1616 = vmatpush1.msra.mxu0 0.0
  %1617 = vmatprep.subr.mxu0 0.0
  %1618 = vmatpush1.msra.mxu0 0.0
  %1619 = vmatprep.mubr.f32.mxu0 0.0
  %v1620 = vand.u32 %v1358, 4294901760
  %1621 = vmatmul.mubr.f32.gmra.mrb[0].mxu0 %v1620
  %v1622 = vpop.f32.mrb[0].mxu0
  %v1623 = vadd.f32 %v1472, %v1622
  %v1624 = vpop.f32.mrb[0].mxu0
  %1625 = vdwg.mxu0
  %1626 = vmatprep.subr.mxu0 0.0
  %v1627 = vand.u32 %v1360, 4294901760
  %v1628 = vsub.f32 %v1360, %v1627
  %1629 = vmatpush1.msra.mxu0 %v1628
  %1630 = vmatprep.subr.mxu0 0.0
  %v1631 = vand.u32 %v1361, 4294901760
  %v1632 = vsub.f32 %v1361, %v1631
  %1633 = vmatpush1.msra.mxu0 %v1632
  %1634 = vmatprep.subr.mxu0 0.0
  %v1635 = vand.u32 %v1362, 4294901760
  %v1636 = vsub.f32 %v1362, %v1635
  %1637 = vmatpush1.msra.mxu0 %v1636
  %1638 = vmatprep.subr.mxu0 0.0
  %v1639 = vand.u32 %v1363, 4294901760
  %v1640 = vsub.f32 %v1363, %v1639
  %1641 = vmatpush1.msra.mxu0 %v1640
  %1642 = vmatprep.subr.mxu0 0.0
  %v1643 = vand.u32 %v1364, 4294901760
  %v1644 = vsub.f32 %v1364, %v1643
  %1645 = vmatpush1.msra.mxu0 %v1644
  %1646 = vmatprep.subr.mxu0 0.0
  %v1647 = vand.u32 %v1365, 4294901760
  %v1648 = vsub.f32 %v1365, %v1647
  %1649 = vmatpush1.msra.mxu0 %v1648
  %1650 = vmatprep.subr.mxu0 0.0
  %v1651 = vand.u32 %v1366, 4294901760
  %v1652 = vsub.f32 %v1366, %v1651
  %1653 = vmatpush1.msra.mxu0 %v1652
  %1654 = vmatprep.subr.mxu0 0.0
  %v1655 = vand.u32 %v1367, 4294901760
  %v1656 = vsub.f32 %v1367, %v1655
  %1657 = vmatpush1.msra.mxu0 %v1656
  %1658 = vmatprep.subr.mxu0 0.0
  %v1659 = vand.u32 %v1368, 4294901760
  %v1660 = vsub.f32 %v1368, %v1659
  %1661 = vmatpush1.msra.mxu0 %v1660
  %1662 = vmatprep.subr.mxu0 0.0
  %v1663 = vand.u32 %v1369, 4294901760
  %v1664 = vsub.f32 %v1369, %v1663
  %1665 = vmatpush1.msra.mxu0 %v1664
  %1666 = vmatprep.subr.mxu0 0.0
  %v1667 = vand.u32 %v1370, 4294901760
  %v1668 = vsub.f32 %v1370, %v1667
  %1669 = vmatpush1.msra.mxu0 %v1668
  %1670 = vmatprep.subr.mxu0 0.0
  %v1671 = vand.u32 %v1371, 4294901760
  %v1672 = vsub.f32 %v1371, %v1671
  %1673 = vmatpush1.msra.mxu0 %v1672
  %1674 = vmatprep.subr.mxu0 0.0
  %v1675 = vand.u32 %v1372, 4294901760
  %v1676 = vsub.f32 %v1372, %v1675
  %1677 = vmatpush1.msra.mxu0 %v1676
  %1678 = vmatprep.subr.mxu0 0.0
  %v1679 = vand.u32 %v1373, 4294901760
  %v1680 = vsub.f32 %v1373, %v1679
  %1681 = vmatpush1.msra.mxu0 %v1680
  %1682 = vmatprep.subr.mxu0 0.0
  %v1683 = vand.u32 %v1374, 4294901760
  %v1684 = vsub.f32 %v1374, %v1683
  %1685 = vmatpush1.msra.mxu0 %v1684
  %1686 = vmatprep.subr.mxu0 0.0
  %v1687 = vand.u32 %v1375, 4294901760
  %v1688 = vsub.f32 %v1375, %v1687
  %1689 = vmatpush1.msra.mxu0 %v1688
  %1690 = vmatprep.subr.mxu0 0.0
  %1691 = vmatpush1.msra.mxu0 0.0
  %1692 = vmatprep.subr.mxu0 0.0
  %1693 = vmatpush1.msra.mxu0 0.0
  %1694 = vmatprep.subr.mxu0 0.0
  %1695 = vmatpush1.msra.mxu0 0.0
  %1696 = vmatprep.subr.mxu0 0.0
  %1697 = vmatpush1.msra.mxu0 0.0
  %1698 = vmatprep.subr.mxu0 0.0
  %1699 = vmatpush1.msra.mxu0 0.0
  %1700 = vmatprep.subr.mxu0 0.0
  %1701 = vmatpush1.msra.mxu0 0.0
  %1702 = vmatprep.subr.mxu0 0.0
  %1703 = vmatpush1.msra.mxu0 0.0
  %1704 = vmatprep.subr.mxu0 0.0
  %1705 = vmatpush1.msra.mxu0 0.0
  %1706 = vmatprep.subr.mxu0 0.0
  %1707 = vmatpush1.msra.mxu0 0.0
  %1708 = vmatprep.subr.mxu0 0.0
  %1709 = vmatpush1.msra.mxu0 0.0
  %1710 = vmatprep.subr.mxu0 0.0
  %1711 = vmatpush1.msra.mxu0 0.0
  %1712 = vmatprep.subr.mxu0 0.0
  %1713 = vmatpush1.msra.mxu0 0.0
  %1714 = vmatprep.subr.mxu0 0.0
  %1715 = vmatpush1.msra.mxu0 0.0
  %1716 = vmatprep.subr.mxu0 0.0
  %1717 = vmatpush1.msra.mxu0 0.0
  %1718 = vmatprep.subr.mxu0 0.0
  %1719 = vmatpush1.msra.mxu0 0.0
  %1720 = vmatprep.subr.mxu0 0.0
  %1721 = vmatpush1.msra.mxu0 0.0
  %1722 = vmatprep.mubr.f32.mxu0 0.0
  %v1723 = vand.u32 %v1358, 4294901760
  %v1724 = vsub.f32 %v1358, %v1723
  %1725 = vmatmul.mubr.f32.gmra.mrb[0].mxu0 %v1724
  %v1726 = vpop.f32.mrb[0].mxu0
  %v1727 = vadd.f32 %v1623, %v1726
  %v1728 = vpop.f32.mrb[0].mxu0
  %1729 = vdwg.mxu0
  %1730 = vmatprep.subr.mxu0 0.0
  %v1731 = vand.u32 %v1360, 4294901760
  %1732 = vmatpush1.msra.mxu0 %v1731
  %1733 = vmatprep.subr.mxu0 0.0
  %v1734 = vand.u32 %v1361, 4294901760
  %1735 = vmatpush1.msra.mxu0 %v1734
  %1736 = vmatprep.subr.mxu0 0.0
  %v1737 = vand.u32 %v1362, 4294901760
  %1738 = vmatpush1.msra.mxu0 %v1737
  %1739 = vmatprep.subr.mxu0 0.0
  %v1740 = vand.u32 %v1363, 4294901760
  %1741 = vmatpush1.msra.mxu0 %v1740
  %1742 = vmatprep.subr.mxu0 0.0
  %v1743 = vand.u32 %v1364, 4294901760
  %1744 = vmatpush1.msra.mxu0 %v1743
  %1745 = vmatprep.subr.mxu0 0.0
  %v1746 = vand.u32 %v1365, 4294901760
  %1747 = vmatpush1.msra.mxu0 %v1746
  %1748 = vmatprep.subr.mxu0 0.0
  %v1749 = vand.u32 %v1366, 4294901760
  %1750 = vmatpush1.msra.mxu0 %v1749
  %1751 = vmatprep.subr.mxu0 0.0
  %v1752 = vand.u32 %v1367, 4294901760
  %1753 = vmatpush1.msra.mxu0 %v1752
  %1754 = vmatprep.subr.mxu0 0.0
  %v1755 = vand.u32 %v1368, 4294901760
  %1756 = vmatpush1.msra.mxu0 %v1755
  %1757 = vmatprep.subr.mxu0 0.0
  %v1758 = vand.u32 %v1369, 4294901760
  %1759 = vmatpush1.msra.mxu0 %v1758
  %1760 = vmatprep.subr.mxu0 0.0
  %v1761 = vand.u32 %v1370, 4294901760
  %1762 = vmatpush1.msra.mxu0 %v1761
  %1763 = vmatprep.subr.mxu0 0.0
  %v1764 = vand.u32 %v1371, 4294901760
  %1765 = vmatpush1.msra.mxu0 %v1764
  %1766 = vmatprep.subr.mxu0 0.0
  %v1767 = vand.u32 %v1372, 4294901760
  %1768 = vmatpush1.msra.mxu0 %v1767
  %1769 = vmatprep.subr.mxu0 0.0
  %v1770 = vand.u32 %v1373, 4294901760
  %1771 = vmatpush1.msra.mxu0 %v1770
  %1772 = vmatprep.subr.mxu0 0.0
  %v1773 = vand.u32 %v1374, 4294901760
  %1774 = vmatpush1.msra.mxu0 %v1773
  %1775 = vmatprep.subr.mxu0 0.0
  %v1776 = vand.u32 %v1375, 4294901760
  %1777 = vmatpush1.msra.mxu0 %v1776
  %1778 = vmatprep.subr.mxu0 0.0
  %1779 = vmatpush1.msra.mxu0 0.0
  %1780 = vmatprep.subr.mxu0 0.0
  %1781 = vmatpush1.msra.mxu0 0.0
  %1782 = vmatprep.subr.mxu0 0.0
  %1783 = vmatpush1.msra.mxu0 0.0
  %1784 = vmatprep.subr.mxu0 0.0
  %1785 = vmatpush1.msra.mxu0 0.0
  %1786 = vmatprep.subr.mxu0 0.0
  %1787 = vmatpush1.msra.mxu0 0.0
  %1788 = vmatprep.subr.mxu0 0.0
  %1789 = vmatpush1.msra.mxu0 0.0
  %1790 = vmatprep.subr.mxu0 0.0
  %1791 = vmatpush1.msra.mxu0 0.0
  %1792 = vmatprep.subr.mxu0 0.0
  %1793 = vmatpush1.msra.mxu0 0.0
  %1794 = vmatprep.subr.mxu0 0.0
  %1795 = vmatpush1.msra.mxu0 0.0
  %1796 = vmatprep.subr.mxu0 0.0
  %1797 = vmatpush1.msra.mxu0 0.0
  %1798 = vmatprep.subr.mxu0 0.0
  %1799 = vmatpush1.msra.mxu0 0.0
  %1800 = vmatprep.subr.mxu0 0.0
  %1801 = vmatpush1.msra.mxu0 0.0
  %1802 = vmatprep.subr.mxu0 0.0
  %1803 = vmatpush1.msra.mxu0 0.0
  %1804 = vmatprep.subr.mxu0 0.0
  %1805 = vmatpush1.msra.mxu0 0.0
  %1806 = vmatprep.subr.mxu0 0.0
  %1807 = vmatpush1.msra.mxu0 0.0
  %1808 = vmatprep.subr.mxu0 0.0
  %1809 = vmatpush1.msra.mxu0 0.0
  %1810 = vmatprep.mubr.f32.mxu0 0.0
  %v1811 = vand.u32 %v1358, 4294901760
  %v1812 = vsub.f32 %v1358, %v1811
  %v1813 = vand.u32 %v1812, 4294901760
  %1814 = vmatmul.mubr.f32.gmra.mrb[0].mxu0 %v1813
  %v1815 = vpop.f32.mrb[0].mxu0
  %v1816 = vadd.f32 %v1727, %v1815
  %v1817 = vpop.f32.mrb[0].mxu0
  %1818 = vdwg.mxu0
  %1819 = vmatprep.subr.mxu0 0.0
  %v1820 = vand.u32 %v1360, 4294901760
  %v1821 = vsub.f32 %v1360, %v1820
  %v1822 = vand.u32 %v1821, 4294901760
  %1823 = vmatpush1.msra.mxu0 %v1822
  %1824 = vmatprep.subr.mxu0 0.0
  %v1825 = vand.u32 %v1361, 4294901760
  %v1826 = vsub.f32 %v1361, %v1825
  %v1827 = vand.u32 %v1826, 4294901760
  %1828 = vmatpush1.msra.mxu0 %v1827
  %1829 = vmatprep.subr.mxu0 0.0
  %v1830 = vand.u32 %v1362, 4294901760
  %v1831 = vsub.f32 %v1362, %v1830
  %v1832 = vand.u32 %v1831, 4294901760
  %1833 = vmatpush1.msra.mxu0 %v1832
  %1834 = vmatprep.subr.mxu0 0.0
  %v1835 = vand.u32 %v1363, 4294901760
  %v1836 = vsub.f32 %v1363, %v1835
  %v1837 = vand.u32 %v1836, 4294901760
  %1838 = vmatpush1.msra.mxu0 %v1837
  %1839 = vmatprep.subr.mxu0 0.0
  %v1840 = vand.u32 %v1364, 4294901760
  %v1841 = vsub.f32 %v1364, %v1840
  %v1842 = vand.u32 %v1841, 4294901760
  %1843 = vmatpush1.msra.mxu0 %v1842
  %1844 = vmatprep.subr.mxu0 0.0
  %v1845 = vand.u32 %v1365, 4294901760
  %v1846 = vsub.f32 %v1365, %v1845
  %v1847 = vand.u32 %v1846, 4294901760
  %1848 = vmatpush1.msra.mxu0 %v1847
  %1849 = vmatprep.subr.mxu0 0.0
  %v1850 = vand.u32 %v1366, 4294901760
  %v1851 = vsub.f32 %v1366, %v1850
  %v1852 = vand.u32 %v1851, 4294901760
  %1853 = vmatpush1.msra.mxu0 %v1852
  %1854 = vmatprep.subr.mxu0 0.0
  %v1855 = vand.u32 %v1367, 4294901760
  %v1856 = vsub.f32 %v1367, %v1855
  %v1857 = vand.u32 %v1856, 4294901760
  %1858 = vmatpush1.msra.mxu0 %v1857
  %1859 = vmatprep.subr.mxu0 0.0
  %v1860 = vand.u32 %v1368, 4294901760
  %v1861 = vsub.f32 %v1368, %v1860
  %v1862 = vand.u32 %v1861, 4294901760
  %1863 = vmatpush1.msra.mxu0 %v1862
  %1864 = vmatprep.subr.mxu0 0.0
  %v1865 = vand.u32 %v1369, 4294901760
  %v1866 = vsub.f32 %v1369, %v1865
  %v1867 = vand.u32 %v1866, 4294901760
  %1868 = vmatpush1.msra.mxu0 %v1867
  %1869 = vmatprep.subr.mxu0 0.0
  %v1870 = vand.u32 %v1370, 4294901760
  %v1871 = vsub.f32 %v1370, %v1870
  %v1872 = vand.u32 %v1871, 4294901760
  %1873 = vmatpush1.msra.mxu0 %v1872
  %1874 = vmatprep.subr.mxu0 0.0
  %v1875 = vand.u32 %v1371, 4294901760
  %v1876 = vsub.f32 %v1371, %v1875
  %v1877 = vand.u32 %v1876, 4294901760
  %1878 = vmatpush1.msra.mxu0 %v1877
  %1879 = vmatprep.subr.mxu0 0.0
  %v1880 = vand.u32 %v1372, 4294901760
  %v1881 = vsub.f32 %v1372, %v1880
  %v1882 = vand.u32 %v1881, 4294901760
  %1883 = vmatpush1.msra.mxu0 %v1882
  %1884 = vmatprep.subr.mxu0 0.0
  %v1885 = vand.u32 %v1373, 4294901760
  %v1886 = vsub.f32 %v1373, %v1885
  %v1887 = vand.u32 %v1886, 4294901760
  %1888 = vmatpush1.msra.mxu0 %v1887
  %1889 = vmatprep.subr.mxu0 0.0
  %v1890 = vand.u32 %v1374, 4294901760
  %v1891 = vsub.f32 %v1374, %v1890
  %v1892 = vand.u32 %v1891, 4294901760
  %1893 = vmatpush1.msra.mxu0 %v1892
  %1894 = vmatprep.subr.mxu0 0.0
  %v1895 = vand.u32 %v1375, 4294901760
  %v1896 = vsub.f32 %v1375, %v1895
  %v1897 = vand.u32 %v1896, 4294901760
  %1898 = vmatpush1.msra.mxu0 %v1897
  %1899 = vmatprep.subr.mxu0 0.0
  %1900 = vmatpush1.msra.mxu0 0.0
  %1901 = vmatprep.subr.mxu0 0.0
  %1902 = vmatpush1.msra.mxu0 0.0
  %1903 = vmatprep.subr.mxu0 0.0
  %1904 = vmatpush1.msra.mxu0 0.0
  %1905 = vmatprep.subr.mxu0 0.0
  %1906 = vmatpush1.msra.mxu0 0.0
  %1907 = vmatprep.subr.mxu0 0.0
  %1908 = vmatpush1.msra.mxu0 0.0
  %1909 = vmatprep.subr.mxu0 0.0
  %1910 = vmatpush1.msra.mxu0 0.0
  %1911 = vmatprep.subr.mxu0 0.0
  %1912 = vmatpush1.msra.mxu0 0.0
  %1913 = vmatprep.subr.mxu0 0.0
  %1914 = vmatpush1.msra.mxu0 0.0
  %1915 = vmatprep.subr.mxu0 0.0
  %1916 = vmatpush1.msra.mxu0 0.0
  %1917 = vmatprep.subr.mxu0 0.0
  %1918 = vmatpush1.msra.mxu0 0.0
  %1919 = vmatprep.subr.mxu0 0.0
  %1920 = vmatpush1.msra.mxu0 0.0
  %1921 = vmatprep.subr.mxu0 0.0
  %1922 = vmatpush1.msra.mxu0 0.0
  %1923 = vmatprep.subr.mxu0 0.0
  %1924 = vmatpush1.msra.mxu0 0.0
  %1925 = vmatprep.subr.mxu0 0.0
  %1926 = vmatpush1.msra.mxu0 0.0
  %1927 = vmatprep.subr.mxu0 0.0
  %1928 = vmatpush1.msra.mxu0 0.0
  %1929 = vmatprep.subr.mxu0 0.0
  %1930 = vmatpush1.msra.mxu0 0.0
  %1931 = vmatprep.mubr.f32.mxu0 0.0
  %v1932 = vand.u32 %v1358, 4294901760
  %1933 = vmatmul.mubr.f32.gmra.mrb[0].mxu0 %v1932
  %v1934 = vpop.f32.mrb[0].mxu0
  %v1935 = vadd.f32 %v1816, %v1934
  %v1936 = vpop.f32.mrb[0].mxu0
  %1937 = vdwg.mxu0
  %1938 = vmatprep.subr.mxu0 0.0
  %v1939 = vand.u32 %v1360, 4294901760
  %1940 = vmatpush1.msra.mxu0 %v1939
  %1941 = vmatprep.subr.mxu0 0.0
  %v1942 = vand.u32 %v1361, 4294901760
  %1943 = vmatpush1.msra.mxu0 %v1942
  %1944 = vmatprep.subr.mxu0 0.0
  %v1945 = vand.u32 %v1362, 4294901760
  %1946 = vmatpush1.msra.mxu0 %v1945
  %1947 = vmatprep.subr.mxu0 0.0
  %v1948 = vand.u32 %v1363, 4294901760
  %1949 = vmatpush1.msra.mxu0 %v1948
  %1950 = vmatprep.subr.mxu0 0.0
  %v1951 = vand.u32 %v1364, 4294901760
  %1952 = vmatpush1.msra.mxu0 %v1951
  %1953 = vmatprep.subr.mxu0 0.0
  %v1954 = vand.u32 %v1365, 4294901760
  %1955 = vmatpush1.msra.mxu0 %v1954
  %1956 = vmatprep.subr.mxu0 0.0
  %v1957 = vand.u32 %v1366, 4294901760
  %1958 = vmatpush1.msra.mxu0 %v1957
  %1959 = vmatprep.subr.mxu0 0.0
  %v1960 = vand.u32 %v1367, 4294901760
  %1961 = vmatpush1.msra.mxu0 %v1960
  %1962 = vmatprep.subr.mxu0 0.0
  %v1963 = vand.u32 %v1368, 4294901760
  %1964 = vmatpush1.msra.mxu0 %v1963
  %1965 = vmatprep.subr.mxu0 0.0
  %v1966 = vand.u32 %v1369, 4294901760
  %1967 = vmatpush1.msra.mxu0 %v1966
  %1968 = vmatprep.subr.mxu0 0.0
  %v1969 = vand.u32 %v1370, 4294901760
  %1970 = vmatpush1.msra.mxu0 %v1969
  %1971 = vmatprep.subr.mxu0 0.0
  %v1972 = vand.u32 %v1371, 4294901760
  %1973 = vmatpush1.msra.mxu0 %v1972
  %1974 = vmatprep.subr.mxu0 0.0
  %v1975 = vand.u32 %v1372, 4294901760
  %1976 = vmatpush1.msra.mxu0 %v1975
  %1977 = vmatprep.subr.mxu0 0.0
  %v1978 = vand.u32 %v1373, 4294901760
  %1979 = vmatpush1.msra.mxu0 %v1978
  %1980 = vmatprep.subr.mxu0 0.0
  %v1981 = vand.u32 %v1374, 4294901760
  %1982 = vmatpush1.msra.mxu0 %v1981
  %1983 = vmatprep.subr.mxu0 0.0
  %v1984 = vand.u32 %v1375, 4294901760
  %1985 = vmatpush1.msra.mxu0 %v1984
  %1986 = vmatprep.subr.mxu0 0.0
  %1987 = vmatpush1.msra.mxu0 0.0
  %1988 = vmatprep.subr.mxu0 0.0
  %1989 = vmatpush1.msra.mxu0 0.0
  %1990 = vmatprep.subr.mxu0 0.0
  %1991 = vmatpush1.msra.mxu0 0.0
  %1992 = vmatprep.subr.mxu0 0.0
  %1993 = vmatpush1.msra.mxu0 0.0
  %1994 = vmatprep.subr.mxu0 0.0
  %1995 = vmatpush1.msra.mxu0 0.0
  %1996 = vmatprep.subr.mxu0 0.0
  %1997 = vmatpush1.msra.mxu0 0.0
  %1998 = vmatprep.subr.mxu0 0.0
  %1999 = vmatpush1.msra.mxu0 0.0
  %2000 = vmatprep.subr.mxu0 0.0
  %2001 = vmatpush1.msra.mxu0 0.0
  %2002 = vmatprep.subr.mxu0 0.0
  %2003 = vmatpush1.msra.mxu0 0.0
  %2004 = vmatprep.subr.mxu0 0.0
  %2005 = vmatpush1.msra.mxu0 0.0
  %2006 = vmatprep.subr.mxu0 0.0
  %2007 = vmatpush1.msra.mxu0 0.0
  %2008 = vmatprep.subr.mxu0 0.0
  %2009 = vmatpush1.msra.mxu0 0.0
  %2010 = vmatprep.subr.mxu0 0.0
  %2011 = vmatpush1.msra.mxu0 0.0
  %2012 = vmatprep.subr.mxu0 0.0
  %2013 = vmatpush1.msra.mxu0 0.0
  %2014 = vmatprep.subr.mxu0 0.0
  %2015 = vmatpush1.msra.mxu0 0.0
  %2016 = vmatprep.subr.mxu0 0.0
  %2017 = vmatpush1.msra.mxu0 0.0
  %2018 = vmatprep.mubr.f32.mxu0 0.0
  %v2019 = vand.u32 %v1358, 4294901760
  %2020 = vmatmul.mubr.f32.gmra.mrb[0].mxu0 %v2019
  %v2021 = vpop.f32.mrb[0].mxu0
  %v2022 = vadd.f32 %v1935, %v2021
  %v2023 = vpop.f32.mrb[0].mxu0
  %2024 = vdwg.mxu0
  %v2025 = vxor.u32 %v2022, 2147483648
  %v2026 = vmul.f32 %v2025, 1.442695
  %v2027 = vpow.pop %v2026
  %v2028 = vadd.f32 %v2027, 1.0
  %v2029 = vrcp.pop %v2028
  %v2030 = vmul.f32 1.0, %v2029
  %v2031 = vmul.f32 %v2022, %v2030
  %s2032 = scalar_lea.vmem %s1, 384
  %v2033 = vld [vmem:[%s2032] sm:$0xff]
  %v2034 = vld [vmem:[%s2032 + $0x8] sm:$0xff]
  %v2035 = vld [vmem:[%s2032 + $0x10] sm:$0xff]
  %v2036 = vld [vmem:[%s2032 + $0x18] sm:$0xff]
  %v2037 = vld [vmem:[%s2032 + $0x20] sm:$0xff]
  %v2038 = vld [vmem:[%s2032 + $0x28] sm:$0xff]
  %v2039 = vld [vmem:[%s2032 + $0x30] sm:$0xff]
  %v2040 = vld [vmem:[%s2032 + $0x38] sm:$0xff]
  %v2041 = vld [vmem:[%s2032 + $0x40] sm:$0xff]
  %v2042 = vld [vmem:[%s2032 + $0x48] sm:$0xff]
  %v2043 = vld [vmem:[%s2032 + $0x50] sm:$0xff]
  %v2044 = vld [vmem:[%s2032 + $0x58] sm:$0xff]
  %v2045 = vld [vmem:[%s2032 + $0x60] sm:$0xff]
  %v2046 = vld [vmem:[%s2032 + $0x68] sm:$0xff]
  %v2047 = vld [vmem:[%s2032 + $0x70] sm:$0xff]
  %v2048 = vld [vmem:[%s2032 + $0x78] sm:$0xff]
  %s2049 = scalar_lea.vmem %s2, 3
  %v2050 = vld [vmem:[%s2049] sm:$0x1]
  %v2052 = vlaneseq
  %v2053 = vshrl.u32 %v2052, 7
  %v2054 = vsub.s32 0, %v2053
  %v2055 = vrot.slane %v2050, %v2054
  %2057 = vmatprep.subr.mxu0 0.0
  %v2058 = vand.u32 %v2033, 4294901760
  %2059 = vmatpush1.msra.mxu0 %v2058
  %2060 = vmatprep.subr.mxu0 0.0
  %v2061 = vand.u32 %v2034, 4294901760
  %2062 = vmatpush1.msra.mxu0 %v2061
  %2063 = vmatprep.subr.mxu0 0.0
  %v2064 = vand.u32 %v2035, 4294901760
  %2065 = vmatpush1.msra.mxu0 %v2064
  %2066 = vmatprep.subr.mxu0 0.0
  %v2067 = vand.u32 %v2036, 4294901760
  %2068 = vmatpush1.msra.mxu0 %v2067
  %2069 = vmatprep.subr.mxu0 0.0
  %v2070 = vand.u32 %v2037, 4294901760
  %2071 = vmatpush1.msra.mxu0 %v2070
  %2072 = vmatprep.subr.mxu0 0.0
  %v2073 = vand.u32 %v2038, 4294901760
  %2074 = vmatpush1.msra.mxu0 %v2073
  %2075 = vmatprep.subr.mxu0 0.0
  %v2076 = vand.u32 %v2039, 4294901760
  %2077 = vmatpush1.msra.mxu0 %v2076
  %2078 = vmatprep.subr.mxu0 0.0
  %v2079 = vand.u32 %v2040, 4294901760
  %2080 = vmatpush1.msra.mxu0 %v2079
  %2081 = vmatprep.subr.mxu0 0.0
  %v2082 = vand.u32 %v2041, 4294901760
  %2083 = vmatpush1.msra.mxu0 %v2082
  %2084 = vmatprep.subr.mxu0 0.0
  %v2085 = vand.u32 %v2042, 4294901760
  %2086 = vmatpush1.msra.mxu0 %v2085
  %2087 = vmatprep.subr.mxu0 0.0
  %v2088 = vand.u32 %v2043, 4294901760
  %2089 = vmatpush1.msra.mxu0 %v2088
  %2090 = vmatprep.subr.mxu0 0.0
  %v2091 = vand.u32 %v2044, 4294901760
  %2092 = vmatpush1.msra.mxu0 %v2091
  %2093 = vmatprep.subr.mxu0 0.0
  %v2094 = vand.u32 %v2045, 4294901760
  %2095 = vmatpush1.msra.mxu0 %v2094
  %2096 = vmatprep.subr.mxu0 0.0
  %v2097 = vand.u32 %v2046, 4294901760
  %2098 = vmatpush1.msra.mxu0 %v2097
  %2099 = vmatprep.subr.mxu0 0.0
  %v2100 = vand.u32 %v2047, 4294901760
  %2101 = vmatpush1.msra.mxu0 %v2100
  %2102 = vmatprep.subr.mxu0 0.0
  %v2103 = vand.u32 %v2048, 4294901760
  %2104 = vmatpush1.msra.mxu0 %v2103
  %2105 = vmatprep.subr.mxu0 0.0
  %2106 = vmatpush1.msra.mxu0 0.0
  %2107 = vmatprep.subr.mxu0 0.0
  %2108 = vmatpush1.msra.mxu0 0.0
  %2109 = vmatprep.subr.mxu0 0.0
  %2110 = vmatpush1.msra.mxu0 0.0
  %2111 = vmatprep.subr.mxu0 0.0
  %2112 = vmatpush1.msra.mxu0 0.0
  %2113 = vmatprep.subr.mxu0 0.0
  %2114 = vmatpush1.msra.mxu0 0.0
  %2115 = vmatprep.subr.mxu0 0.0
  %2116 = vmatpush1.msra.mxu0 0.0
  %2117 = vmatprep.subr.mxu0 0.0
  %2118 = vmatpush1.msra.mxu0 0.0
  %2119 = vmatprep.subr.mxu0 0.0
  %2120 = vmatpush1.msra.mxu0 0.0
  %2121 = vmatprep.subr.mxu0 0.0
  %2122 = vmatpush1.msra.mxu0 0.0
  %2123 = vmatprep.subr.mxu0 0.0
  %2124 = vmatpush1.msra.mxu0 0.0
  %2125 = vmatprep.subr.mxu0 0.0
  %2126 = vmatpush1.msra.mxu0 0.0
  %2127 = vmatprep.subr.mxu0 0.0
  %2128 = vmatpush1.msra.mxu0 0.0
  %2129 = vmatprep.subr.mxu0 0.0
  %2130 = vmatpush1.msra.mxu0 0.0
  %2131 = vmatprep.subr.mxu0 0.0
  %2132 = vmatpush1.msra.mxu0 0.0
  %2133 = vmatprep.subr.mxu0 0.0
  %2134 = vmatpush1.msra.mxu0 0.0
  %2135 = vmatprep.subr.mxu0 0.0
  %2136 = vmatpush1.msra.mxu0 0.0
  %2137 = vmatprep.mubr.f32.mxu0 0.0
  %v2138 = vand.u32 %v2031, 4294901760
  %v2139 = vsub.f32 %v2031, %v2138
  %v2140 = vand.u32 %v2139, 4294901760
  %v2141 = vsub.f32 %v2139, %v2140
  %v2142 = vand.u32 %v2141, 4294901760
  %2143 = vmatmul.mubr.f32.gmra.mrb[0].mxu0 %v2142
  %v2144 = vpop.f32.mrb[0].mxu0
  %v2145 = vadd.f32 %v2055, %v2144
  %v2146 = vpop.f32.mrb[0].mxu0
  %2147 = vdwg.mxu0
  %2148 = vmatprep.subr.mxu0 0.0
  %v2149 = vand.u32 %v2033, 4294901760
  %v2150 = vsub.f32 %v2033, %v2149
  %v2151 = vand.u32 %v2150, 4294901760
  %v2152 = vsub.f32 %v2150, %v2151
  %v2153 = vand.u32 %v2152, 4294901760
  %2154 = vmatpush1.msra.mxu0 %v2153
  %2155 = vmatprep.subr.mxu0 0.0
  %v2156 = vand.u32 %v2034, 4294901760
  %v2157 = vsub.f32 %v2034, %v2156
  %v2158 = vand.u32 %v2157, 4294901760
  %v2159 = vsub.f32 %v2157, %v2158
  %v2160 = vand.u32 %v2159, 4294901760
  %2161 = vmatpush1.msra.mxu0 %v2160
  %2162 = vmatprep.subr.mxu0 0.0
  %v2163 = vand.u32 %v2035, 4294901760
  %v2164 = vsub.f32 %v2035, %v2163
  %v2165 = vand.u32 %v2164, 4294901760
  %v2166 = vsub.f32 %v2164, %v2165
  %v2167 = vand.u32 %v2166, 4294901760
  %2168 = vmatpush1.msra.mxu0 %v2167
  %2169 = vmatprep.subr.mxu0 0.0
  %v2170 = vand.u32 %v2036, 4294901760
  %v2171 = vsub.f32 %v2036, %v2170
  %v2172 = vand.u32 %v2171, 4294901760
  %v2173 = vsub.f32 %v2171, %v2172
  %v2174 = vand.u32 %v2173, 4294901760
  %2175 = vmatpush1.msra.mxu0 %v2174
  %2176 = vmatprep.subr.mxu0 0.0
  %v2177 = vand.u32 %v2037, 4294901760
  %v2178 = vsub.f32 %v2037, %v2177
  %v2179 = vand.u32 %v2178, 4294901760
  %v2180 = vsub.f32 %v2178, %v2179
  %v2181 = vand.u32 %v2180, 4294901760
  %2182 = vmatpush1.msra.mxu0 %v2181
  %2183 = vmatprep.subr.mxu0 0.0
  %v2184 = vand.u32 %v2038, 4294901760
  %v2185 = vsub.f32 %v2038, %v2184
  %v2186 = vand.u32 %v2185, 4294901760
  %v2187 = vsub.f32 %v2185, %v2186
  %v2188 = vand.u32 %v2187, 4294901760
  %2189 = vmatpush1.msra.mxu0 %v2188
  %2190 = vmatprep.subr.mxu0 0.0
  %v2191 = vand.u32 %v2039, 4294901760
  %v2192 = vsub.f32 %v2039, %v2191
  %v2193 = vand.u32 %v2192, 4294901760
  %v2194 = vsub.f32 %v2192, %v2193
  %v2195 = vand.u32 %v2194, 4294901760
  %2196 = vmatpush1.msra.mxu0 %v2195
  %2197 = vmatprep.subr.mxu0 0.0
  %v2198 = vand.u32 %v2040, 4294901760
  %v2199 = vsub.f32 %v2040, %v2198
  %v2200 = vand.u32 %v2199, 4294901760
  %v2201 = vsub.f32 %v2199, %v2200
  %v2202 = vand.u32 %v2201, 4294901760
  %2203 = vmatpush1.msra.mxu0 %v2202
  %2204 = vmatprep.subr.mxu0 0.0
  %v2205 = vand.u32 %v2041, 4294901760
  %v2206 = vsub.f32 %v2041, %v2205
  %v2207 = vand.u32 %v2206, 4294901760
  %v2208 = vsub.f32 %v2206, %v2207
  %v2209 = vand.u32 %v2208, 4294901760
  %2210 = vmatpush1.msra.mxu0 %v2209
  %2211 = vmatprep.subr.mxu0 0.0
  %v2212 = vand.u32 %v2042, 4294901760
  %v2213 = vsub.f32 %v2042, %v2212
  %v2214 = vand.u32 %v2213, 4294901760
  %v2215 = vsub.f32 %v2213, %v2214
  %v2216 = vand.u32 %v2215, 4294901760
  %2217 = vmatpush1.msra.mxu0 %v2216
  %2218 = vmatprep.subr.mxu0 0.0
  %v2219 = vand.u32 %v2043, 4294901760
  %v2220 = vsub.f32 %v2043, %v2219
  %v2221 = vand.u32 %v2220, 4294901760
  %v2222 = vsub.f32 %v2220, %v2221
  %v2223 = vand.u32 %v2222, 4294901760
  %2224 = vmatpush1.msra.mxu0 %v2223
  %2225 = vmatprep.subr.mxu0 0.0
  %v2226 = vand.u32 %v2044, 4294901760
  %v2227 = vsub.f32 %v2044, %v2226
  %v2228 = vand.u32 %v2227, 4294901760
  %v2229 = vsub.f32 %v2227, %v2228
  %v2230 = vand.u32 %v2229, 4294901760
  %2231 = vmatpush1.msra.mxu0 %v2230
  %2232 = vmatprep.subr.mxu0 0.0
  %v2233 = vand.u32 %v2045, 4294901760
  %v2234 = vsub.f32 %v2045, %v2233
  %v2235 = vand.u32 %v2234, 4294901760
  %v2236 = vsub.f32 %v2234, %v2235
  %v2237 = vand.u32 %v2236, 4294901760
  %2238 = vmatpush1.msra.mxu0 %v2237
  %2239 = vmatprep.subr.mxu0 0.0
  %v2240 = vand.u32 %v2046, 4294901760
  %v2241 = vsub.f32 %v2046, %v2240
  %v2242 = vand.u32 %v2241, 4294901760
  %v2243 = vsub.f32 %v2241, %v2242
  %v2244 = vand.u32 %v2243, 4294901760
  %2245 = vmatpush1.msra.mxu0 %v2244
  %2246 = vmatprep.subr.mxu0 0.0
  %v2247 = vand.u32 %v2047, 4294901760
  %v2248 = vsub.f32 %v2047, %v2247
  %v2249 = vand.u32 %v2248, 4294901760
  %v2250 = vsub.f32 %v2248, %v2249
  %v2251 = vand.u32 %v2250, 4294901760
  %2252 = vmatpush1.msra.mxu0 %v2251
  %2253 = vmatprep.subr.mxu0 0.0
  %v2254 = vand.u32 %v2048, 4294901760
  %v2255 = vsub.f32 %v2048, %v2254
  %v2256 = vand.u32 %v2255, 4294901760
  %v2257 = vsub.f32 %v2255, %v2256
  %v2258 = vand.u32 %v2257, 4294901760
  %2259 = vmatpush1.msra.mxu0 %v2258
  %2260 = vmatprep.subr.mxu0 0.0
  %2261 = vmatpush1.msra.mxu0 0.0
  %2262 = vmatprep.subr.mxu0 0.0
  %2263 = vmatpush1.msra.mxu0 0.0
  %2264 = vmatprep.subr.mxu0 0.0
  %2265 = vmatpush1.msra.mxu0 0.0
  %2266 = vmatprep.subr.mxu0 0.0
  %2267 = vmatpush1.msra.mxu0 0.0
  %2268 = vmatprep.subr.mxu0 0.0
  %2269 = vmatpush1.msra.mxu0 0.0
  %2270 = vmatprep.subr.mxu0 0.0
  %2271 = vmatpush1.msra.mxu0 0.0
  %2272 = vmatprep.subr.mxu0 0.0
  %2273 = vmatpush1.msra.mxu0 0.0
  %2274 = vmatprep.subr.mxu0 0.0
  %2275 = vmatpush1.msra.mxu0 0.0
  %2276 = vmatprep.subr.mxu0 0.0
  %2277 = vmatpush1.msra.mxu0 0.0
  %2278 = vmatprep.subr.mxu0 0.0
  %2279 = vmatpush1.msra.mxu0 0.0
  %2280 = vmatprep.subr.mxu0 0.0
  %2281 = vmatpush1.msra.mxu0 0.0
  %2282 = vmatprep.subr.mxu0 0.0
  %2283 = vmatpush1.msra.mxu0 0.0
  %2284 = vmatprep.subr.mxu0 0.0
  %2285 = vmatpush1.msra.mxu0 0.0
  %2286 = vmatprep.subr.mxu0 0.0
  %2287 = vmatpush1.msra.mxu0 0.0
  %2288 = vmatprep.subr.mxu0 0.0
  %2289 = vmatpush1.msra.mxu0 0.0
  %2290 = vmatprep.subr.mxu0 0.0
  %2291 = vmatpush1.msra.mxu0 0.0
  %2292 = vmatprep.mubr.f32.mxu0 0.0
  %v2293 = vand.u32 %v2031, 4294901760
  %2294 = vmatmul.mubr.f32.gmra.mrb[0].mxu0 %v2293
  %v2295 = vpop.f32.mrb[0].mxu0
  %v2296 = vadd.f32 %v2145, %v2295
  %v2297 = vpop.f32.mrb[0].mxu0
  %2298 = vdwg.mxu0
  %2299 = vmatprep.subr.mxu0 0.0
  %v2300 = vand.u32 %v2033, 4294901760
  %v2301 = vsub.f32 %v2033, %v2300
  %2302 = vmatpush1.msra.mxu0 %v2301
  %2303 = vmatprep.subr.mxu0 0.0
  %v2304 = vand.u32 %v2034, 4294901760
  %v2305 = vsub.f32 %v2034, %v2304
  %2306 = vmatpush1.msra.mxu0 %v2305
  %2307 = vmatprep.subr.mxu0 0.0
  %v2308 = vand.u32 %v2035, 4294901760
  %v2309 = vsub.f32 %v2035, %v2308
  %2310 = vmatpush1.msra.mxu0 %v2309
  %2311 = vmatprep.subr.mxu0 0.0
  %v2312 = vand.u32 %v2036, 4294901760
  %v2313 = vsub.f32 %v2036, %v2312
  %2314 = vmatpush1.msra.mxu0 %v2313
  %2315 = vmatprep.subr.mxu0 0.0
  %v2316 = vand.u32 %v2037, 4294901760
  %v2317 = vsub.f32 %v2037, %v2316
  %2318 = vmatpush1.msra.mxu0 %v2317
  %2319 = vmatprep.subr.mxu0 0.0
  %v2320 = vand.u32 %v2038, 4294901760
  %v2321 = vsub.f32 %v2038, %v2320
  %2322 = vmatpush1.msra.mxu0 %v2321
  %2323 = vmatprep.subr.mxu0 0.0
  %v2324 = vand.u32 %v2039, 4294901760
  %v2325 = vsub.f32 %v2039, %v2324
  %2326 = vmatpush1.msra.mxu0 %v2325
  %2327 = vmatprep.subr.mxu0 0.0
  %v2328 = vand.u32 %v2040, 4294901760
  %v2329 = vsub.f32 %v2040, %v2328
  %2330 = vmatpush1.msra.mxu0 %v2329
  %2331 = vmatprep.subr.mxu0 0.0
  %v2332 = vand.u32 %v2041, 4294901760
  %v2333 = vsub.f32 %v2041, %v2332
  %2334 = vmatpush1.msra.mxu0 %v2333
  %2335 = vmatprep.subr.mxu0 0.0
  %v2336 = vand.u32 %v2042, 4294901760
  %v2337 = vsub.f32 %v2042, %v2336
  %2338 = vmatpush1.msra.mxu0 %v2337
  %2339 = vmatprep.subr.mxu0 0.0
  %v2340 = vand.u32 %v2043, 4294901760
  %v2341 = vsub.f32 %v2043, %v2340
  %2342 = vmatpush1.msra.mxu0 %v2341
  %2343 = vmatprep.subr.mxu0 0.0
  %v2344 = vand.u32 %v2044, 4294901760
  %v2345 = vsub.f32 %v2044, %v2344
  %2346 = vmatpush1.msra.mxu0 %v2345
  %2347 = vmatprep.subr.mxu0 0.0
  %v2348 = vand.u32 %v2045, 4294901760
  %v2349 = vsub.f32 %v2045, %v2348
  %2350 = vmatpush1.msra.mxu0 %v2349
  %2351 = vmatprep.subr.mxu0 0.0
  %v2352 = vand.u32 %v2046, 4294901760
  %v2353 = vsub.f32 %v2046, %v2352
  %2354 = vmatpush1.msra.mxu0 %v2353
  %2355 = vmatprep.subr.mxu0 0.0
  %v2356 = vand.u32 %v2047, 4294901760
  %v2357 = vsub.f32 %v2047, %v2356
  %2358 = vmatpush1.msra.mxu0 %v2357
  %2359 = vmatprep.subr.mxu0 0.0
  %v2360 = vand.u32 %v2048, 4294901760
  %v2361 = vsub.f32 %v2048, %v2360
  %2362 = vmatpush1.msra.mxu0 %v2361
  %2363 = vmatprep.subr.mxu0 0.0
  %2364 = vmatpush1.msra.mxu0 0.0
  %2365 = vmatprep.subr.mxu0 0.0
  %2366 = vmatpush1.msra.mxu0 0.0
  %2367 = vmatprep.subr.mxu0 0.0
  %2368 = vmatpush1.msra.mxu0 0.0
  %2369 = vmatprep.subr.mxu0 0.0
  %2370 = vmatpush1.msra.mxu0 0.0
  %2371 = vmatprep.subr.mxu0 0.0
  %2372 = vmatpush1.msra.mxu0 0.0
  %2373 = vmatprep.subr.mxu0 0.0
  %2374 = vmatpush1.msra.mxu0 0.0
  %2375 = vmatprep.subr.mxu0 0.0
  %2376 = vmatpush1.msra.mxu0 0.0
  %2377 = vmatprep.subr.mxu0 0.0
  %2378 = vmatpush1.msra.mxu0 0.0
  %2379 = vmatprep.subr.mxu0 0.0
  %2380 = vmatpush1.msra.mxu0 0.0
  %2381 = vmatprep.subr.mxu0 0.0
  %2382 = vmatpush1.msra.mxu0 0.0
  %2383 = vmatprep.subr.mxu0 0.0
  %2384 = vmatpush1.msra.mxu0 0.0
  %2385 = vmatprep.subr.mxu0 0.0
  %2386 = vmatpush1.msra.mxu0 0.0
  %2387 = vmatprep.subr.mxu0 0.0
  %2388 = vmatpush1.msra.mxu0 0.0
  %2389 = vmatprep.subr.mxu0 0.0
  %2390 = vmatpush1.msra.mxu0 0.0
  %2391 = vmatprep.subr.mxu0 0.0
  %2392 = vmatpush1.msra.mxu0 0.0
  %2393 = vmatprep.subr.mxu0 0.0
  %2394 = vmatpush1.msra.mxu0 0.0
  %2395 = vmatprep.mubr.f32.mxu0 0.0
  %v2396 = vand.u32 %v2031, 4294901760
  %v2397 = vsub.f32 %v2031, %v2396
  %2398 = vmatmul.mubr.f32.gmra.mrb[0].mxu0 %v2397
  %v2399 = vpop.f32.mrb[0].mxu0
  %v2400 = vadd.f32 %v2296, %v2399
  %v2401 = vpop.f32.mrb[0].mxu0
  %2402 = vdwg.mxu0
  %2403 = vmatprep.subr.mxu0 0.0
  %v2404 = vand.u32 %v2033, 4294901760
  %2405 = vmatpush1.msra.mxu0 %v2404
  %2406 = vmatprep.subr.mxu0 0.0
  %v2407 = vand.u32 %v2034, 4294901760
  %2408 = vmatpush1.msra.mxu0 %v2407
  %2409 = vmatprep.subr.mxu0 0.0
  %v2410 = vand.u32 %v2035, 4294901760
  %2411 = vmatpush1.msra.mxu0 %v2410
  %2412 = vmatprep.subr.mxu0 0.0
  %v2413 = vand.u32 %v2036, 4294901760
  %2414 = vmatpush1.msra.mxu0 %v2413
  %2415 = vmatprep.subr.mxu0 0.0
  %v2416 = vand.u32 %v2037, 4294901760
  %2417 = vmatpush1.msra.mxu0 %v2416
  %2418 = vmatprep.subr.mxu0 0.0
  %v2419 = vand.u32 %v2038, 4294901760
  %2420 = vmatpush1.msra.mxu0 %v2419
  %2421 = vmatprep.subr.mxu0 0.0
  %v2422 = vand.u32 %v2039, 4294901760
  %2423 = vmatpush1.msra.mxu0 %v2422
  %2424 = vmatprep.subr.mxu0 0.0
  %v2425 = vand.u32 %v2040, 4294901760
  %2426 = vmatpush1.msra.mxu0 %v2425
  %2427 = vmatprep.subr.mxu0 0.0
  %v2428 = vand.u32 %v2041, 4294901760
  %2429 = vmatpush1.msra.mxu0 %v2428
  %2430 = vmatprep.subr.mxu0 0.0
  %v2431 = vand.u32 %v2042, 4294901760
  %2432 = vmatpush1.msra.mxu0 %v2431
  %2433 = vmatprep.subr.mxu0 0.0
  %v2434 = vand.u32 %v2043, 4294901760
  %2435 = vmatpush1.msra.mxu0 %v2434
  %2436 = vmatprep.subr.mxu0 0.0
  %v2437 = vand.u32 %v2044, 4294901760
  %2438 = vmatpush1.msra.mxu0 %v2437
  %2439 = vmatprep.subr.mxu0 0.0
  %v2440 = vand.u32 %v2045, 4294901760
  %2441 = vmatpush1.msra.mxu0 %v2440
  %2442 = vmatprep.subr.mxu0 0.0
  %v2443 = vand.u32 %v2046, 4294901760
  %2444 = vmatpush1.msra.mxu0 %v2443
  %2445 = vmatprep.subr.mxu0 0.0
  %v2446 = vand.u32 %v2047, 4294901760
  %2447 = vmatpush1.msra.mxu0 %v2446
  %2448 = vmatprep.subr.mxu0 0.0
  %v2449 = vand.u32 %v2048, 4294901760
  %2450 = vmatpush1.msra.mxu0 %v2449
  %2451 = vmatprep.subr.mxu0 0.0
  %2452 = vmatpush1.msra.mxu0 0.0
  %2453 = vmatprep.subr.mxu0 0.0
  %2454 = vmatpush1.msra.mxu0 0.0
  %2455 = vmatprep.subr.mxu0 0.0
  %2456 = vmatpush1.msra.mxu0 0.0
  %2457 = vmatprep.subr.mxu0 0.0
  %2458 = vmatpush1.msra.mxu0 0.0
  %2459 = vmatprep.subr.mxu0 0.0
  %2460 = vmatpush1.msra.mxu0 0.0
  %2461 = vmatprep.subr.mxu0 0.0
  %2462 = vmatpush1.msra.mxu0 0.0
  %2463 = vmatprep.subr.mxu0 0.0
  %2464 = vmatpush1.msra.mxu0 0.0
  %2465 = vmatprep.subr.mxu0 0.0
  %2466 = vmatpush1.msra.mxu0 0.0
  %2467 = vmatprep.subr.mxu0 0.0
  %2468 = vmatpush1.msra.mxu0 0.0
  %2469 = vmatprep.subr.mxu0 0.0
  %2470 = vmatpush1.msra.mxu0 0.0
  %2471 = vmatprep.subr.mxu0 0.0
  %2472 = vmatpush1.msra.mxu0 0.0
  %2473 = vmatprep.subr.mxu0 0.0
  %2474 = vmatpush1.msra.mxu0 0.0
  %2475 = vmatprep.subr.mxu0 0.0
  %2476 = vmatpush1.msra.mxu0 0.0
  %2477 = vmatprep.subr.mxu0 0.0
  %2478 = vmatpush1.msra.mxu0 0.0
  %2479 = vmatprep.subr.mxu0 0.0
  %2480 = vmatpush1.msra.mxu0 0.0
  %2481 = vmatprep.subr.mxu0 0.0
  %2482 = vmatpush1.msra.mxu0 0.0
  %2483 = vmatprep.mubr.f32.mxu0 0.0
  %v2484 = vand.u32 %v2031, 4294901760
  %v2485 = vsub.f32 %v2031, %v2484
  %v2486 = vand.u32 %v2485, 4294901760
  %2487 = vmatmul.mubr.f32.gmra.mrb[0].mxu0 %v2486
  %v2488 = vpop.f32.mrb[0].mxu0
  %v2489 = vadd.f32 %v2400, %v2488
  %v2490 = vpop.f32.mrb[0].mxu0
  %2491 = vdwg.mxu0
  %2492 = vmatprep.subr.mxu0 0.0
  %v2493 = vand.u32 %v2033, 4294901760
  %v2494 = vsub.f32 %v2033, %v2493
  %v2495 = vand.u32 %v2494, 4294901760
  %2496 = vmatpush1.msra.mxu0 %v2495
  %2497 = vmatprep.subr.mxu0 0.0
  %v2498 = vand.u32 %v2034, 4294901760
  %v2499 = vsub.f32 %v2034, %v2498
  %v2500 = vand.u32 %v2499, 4294901760
  %2501 = vmatpush1.msra.mxu0 %v2500
  %2502 = vmatprep.subr.mxu0 0.0
  %v2503 = vand.u32 %v2035, 4294901760
  %v2504 = vsub.f32 %v2035, %v2503
  %v2505 = vand.u32 %v2504, 4294901760
  %2506 = vmatpush1.msra.mxu0 %v2505
  %2507 = vmatprep.subr.mxu0 0.0
  %v2508 = vand.u32 %v2036, 4294901760
  %v2509 = vsub.f32 %v2036, %v2508
  %v2510 = vand.u32 %v2509, 4294901760
  %2511 = vmatpush1.msra.mxu0 %v2510
  %2512 = vmatprep.subr.mxu0 0.0
  %v2513 = vand.u32 %v2037, 4294901760
  %v2514 = vsub.f32 %v2037, %v2513
  %v2515 = vand.u32 %v2514, 4294901760
  %2516 = vmatpush1.msra.mxu0 %v2515
  %2517 = vmatprep.subr.mxu0 0.0
  %v2518 = vand.u32 %v2038, 4294901760
  %v2519 = vsub.f32 %v2038, %v2518
  %v2520 = vand.u32 %v2519, 4294901760
  %2521 = vmatpush1.msra.mxu0 %v2520
  %2522 = vmatprep.subr.mxu0 0.0
  %v2523 = vand.u32 %v2039, 4294901760
  %v2524 = vsub.f32 %v2039, %v2523
  %v2525 = vand.u32 %v2524, 4294901760
  %2526 = vmatpush1.msra.mxu0 %v2525
  %2527 = vmatprep.subr.mxu0 0.0
  %v2528 = vand.u32 %v2040, 4294901760
  %v2529 = vsub.f32 %v2040, %v2528
  %v2530 = vand.u32 %v2529, 4294901760
  %2531 = vmatpush1.msra.mxu0 %v2530
  %2532 = vmatprep.subr.mxu0 0.0
  %v2533 = vand.u32 %v2041, 4294901760
  %v2534 = vsub.f32 %v2041, %v2533
  %v2535 = vand.u32 %v2534, 4294901760
  %2536 = vmatpush1.msra.mxu0 %v2535
  %2537 = vmatprep.subr.mxu0 0.0
  %v2538 = vand.u32 %v2042, 4294901760
  %v2539 = vsub.f32 %v2042, %v2538
  %v2540 = vand.u32 %v2539, 4294901760
  %2541 = vmatpush1.msra.mxu0 %v2540
  %2542 = vmatprep.subr.mxu0 0.0
  %v2543 = vand.u32 %v2043, 4294901760
  %v2544 = vsub.f32 %v2043, %v2543
  %v2545 = vand.u32 %v2544, 4294901760
  %2546 = vmatpush1.msra.mxu0 %v2545
  %2547 = vmatprep.subr.mxu0 0.0
  %v2548 = vand.u32 %v2044, 4294901760
  %v2549 = vsub.f32 %v2044, %v2548
  %v2550 = vand.u32 %v2549, 4294901760
  %2551 = vmatpush1.msra.mxu0 %v2550
  %2552 = vmatprep.subr.mxu0 0.0
  %v2553 = vand.u32 %v2045, 4294901760
  %v2554 = vsub.f32 %v2045, %v2553
  %v2555 = vand.u32 %v2554, 4294901760
  %2556 = vmatpush1.msra.mxu0 %v2555
  %2557 = vmatprep.subr.mxu0 0.0
  %v2558 = vand.u32 %v2046, 4294901760
  %v2559 = vsub.f32 %v2046, %v2558
  %v2560 = vand.u32 %v2559, 4294901760
  %2561 = vmatpush1.msra.mxu0 %v2560
  %2562 = vmatprep.subr.mxu0 0.0
  %v2563 = vand.u32 %v2047, 4294901760
  %v2564 = vsub.f32 %v2047, %v2563
  %v2565 = vand.u32 %v2564, 4294901760
  %2566 = vmatpush1.msra.mxu0 %v2565
  %2567 = vmatprep.subr.mxu0 0.0
  %v2568 = vand.u32 %v2048, 4294901760
  %v2569 = vsub.f32 %v2048, %v2568
  %v2570 = vand.u32 %v2569, 4294901760
  %2571 = vmatpush1.msra.mxu0 %v2570
  %2572 = vmatprep.subr.mxu0 0.0
  %2573 = vmatpush1.msra.mxu0 0.0
  %2574 = vmatprep.subr.mxu0 0.0
  %2575 = vmatpush1.msra.mxu0 0.0
  %2576 = vmatprep.subr.mxu0 0.0
  %2577 = vmatpush1.msra.mxu0 0.0
  %2578 = vmatprep.subr.mxu0 0.0
  %2579 = vmatpush1.msra.mxu0 0.0
  %2580 = vmatprep.subr.mxu0 0.0
  %2581 = vmatpush1.msra.mxu0 0.0
  %2582 = vmatprep.subr.mxu0 0.0
  %2583 = vmatpush1.msra.mxu0 0.0
  %2584 = vmatprep.subr.mxu0 0.0
  %2585 = vmatpush1.msra.mxu0 0.0
  %2586 = vmatprep.subr.mxu0 0.0
  %2587 = vmatpush1.msra.mxu0 0.0
  %2588 = vmatprep.subr.mxu0 0.0
  %2589 = vmatpush1.msra.mxu0 0.0
  %2590 = vmatprep.subr.mxu0 0.0
  %2591 = vmatpush1.msra.mxu0 0.0
  %2592 = vmatprep.subr.mxu0 0.0
  %2593 = vmatpush1.msra.mxu0 0.0
  %2594 = vmatprep.subr.mxu0 0.0
  %2595 = vmatpush1.msra.mxu0 0.0
  %2596 = vmatprep.subr.mxu0 0.0
  %2597 = vmatpush1.msra.mxu0 0.0
  %2598 = vmatprep.subr.mxu0 0.0
  %2599 = vmatpush1.msra.mxu0 0.0
  %2600 = vmatprep.subr.mxu0 0.0
  %2601 = vmatpush1.msra.mxu0 0.0
  %2602 = vmatprep.subr.mxu0 0.0
  %2603 = vmatpush1.msra.mxu0 0.0
  %2604 = vmatprep.mubr.f32.mxu0 0.0
  %v2605 = vand.u32 %v2031, 4294901760
  %2606 = vmatmul.mubr.f32.gmra.mrb[0].mxu0 %v2605
  %v2607 = vpop.f32.mrb[0].mxu0
  %v2608 = vadd.f32 %v2489, %v2607
  %v2609 = vpop.f32.mrb[0].mxu0
  %2610 = vdwg.mxu0
  %2611 = vmatprep.subr.mxu0 0.0
  %v2612 = vand.u32 %v2033, 4294901760
  %2613 = vmatpush1.msra.mxu0 %v2612
  %2614 = vmatprep.subr.mxu0 0.0
  %v2615 = vand.u32 %v2034, 4294901760
  %2616 = vmatpush1.msra.mxu0 %v2615
  %2617 = vmatprep.subr.mxu0 0.0
  %v2618 = vand.u32 %v2035, 4294901760
  %2619 = vmatpush1.msra.mxu0 %v2618
  %2620 = vmatprep.subr.mxu0 0.0
  %v2621 = vand.u32 %v2036, 4294901760
  %2622 = vmatpush1.msra.mxu0 %v2621
  %2623 = vmatprep.subr.mxu0 0.0
  %v2624 = vand.u32 %v2037, 4294901760
  %2625 = vmatpush1.msra.mxu0 %v2624
  %2626 = vmatprep.subr.mxu0 0.0
  %v2627 = vand.u32 %v2038, 4294901760
  %2628 = vmatpush1.msra.mxu0 %v2627
  %2629 = vmatprep.subr.mxu0 0.0
  %v2630 = vand.u32 %v2039, 4294901760
  %2631 = vmatpush1.msra.mxu0 %v2630
  %2632 = vmatprep.subr.mxu0 0.0
  %v2633 = vand.u32 %v2040, 4294901760
  %2634 = vmatpush1.msra.mxu0 %v2633
  %2635 = vmatprep.subr.mxu0 0.0
  %v2636 = vand.u32 %v2041, 4294901760
  %2637 = vmatpush1.msra.mxu0 %v2636
  %2638 = vmatprep.subr.mxu0 0.0
  %v2639 = vand.u32 %v2042, 4294901760
  %2640 = vmatpush1.msra.mxu0 %v2639
  %2641 = vmatprep.subr.mxu0 0.0
  %v2642 = vand.u32 %v2043, 4294901760
  %2643 = vmatpush1.msra.mxu0 %v2642
  %2644 = vmatprep.subr.mxu0 0.0
  %v2645 = vand.u32 %v2044, 4294901760
  %2646 = vmatpush1.msra.mxu0 %v2645
  %2647 = vmatprep.subr.mxu0 0.0
  %v2648 = vand.u32 %v2045, 4294901760
  %2649 = vmatpush1.msra.mxu0 %v2648
  %2650 = vmatprep.subr.mxu0 0.0
  %v2651 = vand.u32 %v2046, 4294901760
  %2652 = vmatpush1.msra.mxu0 %v2651
  %2653 = vmatprep.subr.mxu0 0.0
  %v2654 = vand.u32 %v2047, 4294901760
  %2655 = vmatpush1.msra.mxu0 %v2654
  %2656 = vmatprep.subr.mxu0 0.0
  %v2657 = vand.u32 %v2048, 4294901760
  %2658 = vmatpush1.msra.mxu0 %v2657
  %2659 = vmatprep.subr.mxu0 0.0
  %2660 = vmatpush1.msra.mxu0 0.0
  %2661 = vmatprep.subr.mxu0 0.0
  %2662 = vmatpush1.msra.mxu0 0.0
  %2663 = vmatprep.subr.mxu0 0.0
  %2664 = vmatpush1.msra.mxu0 0.0
  %2665 = vmatprep.subr.mxu0 0.0
  %2666 = vmatpush1.msra.mxu0 0.0
  %2667 = vmatprep.subr.mxu0 0.0
  %2668 = vmatpush1.msra.mxu0 0.0
  %2669 = vmatprep.subr.mxu0 0.0
  %2670 = vmatpush1.msra.mxu0 0.0
  %2671 = vmatprep.subr.mxu0 0.0
  %2672 = vmatpush1.msra.mxu0 0.0
  %2673 = vmatprep.subr.mxu0 0.0
  %2674 = vmatpush1.msra.mxu0 0.0
  %2675 = vmatprep.subr.mxu0 0.0
  %2676 = vmatpush1.msra.mxu0 0.0
  %2677 = vmatprep.subr.mxu0 0.0
  %2678 = vmatpush1.msra.mxu0 0.0
  %2679 = vmatprep.subr.mxu0 0.0
  %2680 = vmatpush1.msra.mxu0 0.0
  %2681 = vmatprep.subr.mxu0 0.0
  %2682 = vmatpush1.msra.mxu0 0.0
  %2683 = vmatprep.subr.mxu0 0.0
  %2684 = vmatpush1.msra.mxu0 0.0
  %2685 = vmatprep.subr.mxu0 0.0
  %2686 = vmatpush1.msra.mxu0 0.0
  %2687 = vmatprep.subr.mxu0 0.0
  %2688 = vmatpush1.msra.mxu0 0.0
  %2689 = vmatprep.subr.mxu0 0.0
  %2690 = vmatpush1.msra.mxu0 0.0
  %2691 = vmatprep.mubr.f32.mxu0 0.0
  %v2692 = vand.u32 %v2031, 4294901760
  %2693 = vmatmul.mubr.f32.gmra.mrb[0].mxu0 %v2692
  %v2694 = vpop.f32.mrb[0].mxu0
  %v2695 = vadd.f32 %v2608, %v2694
  %v2696 = vpop.f32.mrb[0].mxu0
  %2697 = vdwg.mxu0
  %v2698 = vxor.u32 %v2695, 2147483648
  %v2699 = vmul.f32 %v2698, 1.442695
  %v2700 = vpow.pop %v2699
  %v2701 = vadd.f32 %v2700, 1.0
  %v2702 = vrcp.pop %v2701
  %v2703 = vmul.f32 1.0, %v2702
  %v2704 = vmul.f32 %v2695, %v2703
  %s2705 = scalar_lea.vmem %s1, 512
  %v2706 = vld [vmem:[%s2705] sm:$0xff]
  %v2707 = vld [vmem:[%s2705 + $0x8] sm:$0xff]
  %v2708 = vld [vmem:[%s2705 + $0x10] sm:$0xff]
  %v2709 = vld [vmem:[%s2705 + $0x18] sm:$0xff]
  %v2710 = vld [vmem:[%s2705 + $0x20] sm:$0xff]
  %v2711 = vld [vmem:[%s2705 + $0x28] sm:$0xff]
  %v2712 = vld [vmem:[%s2705 + $0x30] sm:$0xff]
  %v2713 = vld [vmem:[%s2705 + $0x38] sm:$0xff]
  %v2714 = vld [vmem:[%s2705 + $0x40] sm:$0xff]
  %v2715 = vld [vmem:[%s2705 + $0x48] sm:$0xff]
  %v2716 = vld [vmem:[%s2705 + $0x50] sm:$0xff]
  %v2717 = vld [vmem:[%s2705 + $0x58] sm:$0xff]
  %v2718 = vld [vmem:[%s2705 + $0x60] sm:$0xff]
  %v2719 = vld [vmem:[%s2705 + $0x68] sm:$0xff]
  %v2720 = vld [vmem:[%s2705 + $0x70] sm:$0xff]
  %v2721 = vld [vmem:[%s2705 + $0x78] sm:$0xff]
  %s2722 = scalar_lea.vmem %s2, 4
  %v2723 = vld [vmem:[%s2722] sm:$0x1]
  %v2725 = vlaneseq
  %v2726 = vshrl.u32 %v2725, 7
  %v2727 = vsub.s32 0, %v2726
  %v2728 = vrot.slane %v2723, %v2727
  %2730 = vmatprep.subr.mxu0 0.0
  %v2731 = vand.u32 %v2706, 4294901760
  %2732 = vmatpush1.msra.mxu0 %v2731
  %2733 = vmatprep.subr.mxu0 0.0
  %v2734 = vand.u32 %v2707, 4294901760
  %2735 = vmatpush1.msra.mxu0 %v2734
  %2736 = vmatprep.subr.mxu0 0.0
  %v2737 = vand.u32 %v2708, 4294901760
  %2738 = vmatpush1.msra.mxu0 %v2737
  %2739 = vmatprep.subr.mxu0 0.0
  %v2740 = vand.u32 %v2709, 4294901760
  %2741 = vmatpush1.msra.mxu0 %v2740
  %2742 = vmatprep.subr.mxu0 0.0
  %v2743 = vand.u32 %v2710, 4294901760
  %2744 = vmatpush1.msra.mxu0 %v2743
  %2745 = vmatprep.subr.mxu0 0.0
  %v2746 = vand.u32 %v2711, 4294901760
  %2747 = vmatpush1.msra.mxu0 %v2746
  %2748 = vmatprep.subr.mxu0 0.0
  %v2749 = vand.u32 %v2712, 4294901760
  %2750 = vmatpush1.msra.mxu0 %v2749
  %2751 = vmatprep.subr.mxu0 0.0
  %v2752 = vand.u32 %v2713, 4294901760
  %2753 = vmatpush1.msra.mxu0 %v2752
  %2754 = vmatprep.subr.mxu0 0.0
  %v2755 = vand.u32 %v2714, 4294901760
  %2756 = vmatpush1.msra.mxu0 %v2755
  %2757 = vmatprep.subr.mxu0 0.0
  %v2758 = vand.u32 %v2715, 4294901760
  %2759 = vmatpush1.msra.mxu0 %v2758
  %2760 = vmatprep.subr.mxu0 0.0
  %v2761 = vand.u32 %v2716, 4294901760
  %2762 = vmatpush1.msra.mxu0 %v2761
  %2763 = vmatprep.subr.mxu0 0.0
  %v2764 = vand.u32 %v2717, 4294901760
  %2765 = vmatpush1.msra.mxu0 %v2764
  %2766 = vmatprep.subr.mxu0 0.0
  %v2767 = vand.u32 %v2718, 4294901760
  %2768 = vmatpush1.msra.mxu0 %v2767
  %2769 = vmatprep.subr.mxu0 0.0
  %v2770 = vand.u32 %v2719, 4294901760
  %2771 = vmatpush1.msra.mxu0 %v2770
  %2772 = vmatprep.subr.mxu0 0.0
  %v2773 = vand.u32 %v2720, 4294901760
  %2774 = vmatpush1.msra.mxu0 %v2773
  %2775 = vmatprep.subr.mxu0 0.0
  %v2776 = vand.u32 %v2721, 4294901760
  %2777 = vmatpush1.msra.mxu0 %v2776
  %2778 = vmatprep.subr.mxu0 0.0
  %2779 = vmatpush1.msra.mxu0 0.0
  %2780 = vmatprep.subr.mxu0 0.0
  %2781 = vmatpush1.msra.mxu0 0.0
  %2782 = vmatprep.subr.mxu0 0.0
  %2783 = vmatpush1.msra.mxu0 0.0
  %2784 = vmatprep.subr.mxu0 0.0
  %2785 = vmatpush1.msra.mxu0 0.0
  %2786 = vmatprep.subr.mxu0 0.0
  %2787 = vmatpush1.msra.mxu0 0.0
  %2788 = vmatprep.subr.mxu0 0.0
  %2789 = vmatpush1.msra.mxu0 0.0
  %2790 = vmatprep.subr.mxu0 0.0
  %2791 = vmatpush1.msra.mxu0 0.0
  %2792 = vmatprep.subr.mxu0 0.0
  %2793 = vmatpush1.msra.mxu0 0.0
  %2794 = vmatprep.subr.mxu0 0.0
  %2795 = vmatpush1.msra.mxu0 0.0
  %2796 = vmatprep.subr.mxu0 0.0
  %2797 = vmatpush1.msra.mxu0 0.0
  %2798 = vmatprep.subr.mxu0 0.0
  %2799 = vmatpush1.msra.mxu0 0.0
  %2800 = vmatprep.subr.mxu0 0.0
  %2801 = vmatpush1.msra.mxu0 0.0
  %2802 = vmatprep.subr.mxu0 0.0
  %2803 = vmatpush1.msra.mxu0 0.0
  %2804 = vmatprep.subr.mxu0 0.0
  %2805 = vmatpush1.msra.mxu0 0.0
  %2806 = vmatprep.subr.mxu0 0.0
  %2807 = vmatpush1.msra.mxu0 0.0
  %2808 = vmatprep.subr.mxu0 0.0
  %2809 = vmatpush1.msra.mxu0 0.0
  %2810 = vmatprep.mubr.f32.mxu0 0.0
  %v2811 = vand.u32 %v2704, 4294901760
  %v2812 = vsub.f32 %v2704, %v2811
  %v2813 = vand.u32 %v2812, 4294901760
  %v2814 = vsub.f32 %v2812, %v2813
  %v2815 = vand.u32 %v2814, 4294901760
  %2816 = vmatmul.mubr.f32.gmra.mrb[0].mxu0 %v2815
  %v2817 = vpop.f32.mrb[0].mxu0
  %v2818 = vadd.f32 %v2728, %v2817
  %v2819 = vpop.f32.mrb[0].mxu0
  %2820 = vdwg.mxu0
  %2821 = vmatprep.subr.mxu0 0.0
  %v2822 = vand.u32 %v2706, 4294901760
  %v2823 = vsub.f32 %v2706, %v2822
  %v2824 = vand.u32 %v2823, 4294901760
  %v2825 = vsub.f32 %v2823, %v2824
  %v2826 = vand.u32 %v2825, 4294901760
  %2827 = vmatpush1.msra.mxu0 %v2826
  %2828 = vmatprep.subr.mxu0 0.0
  %v2829 = vand.u32 %v2707, 4294901760
  %v2830 = vsub.f32 %v2707, %v2829
  %v2831 = vand.u32 %v2830, 4294901760
  %v2832 = vsub.f32 %v2830, %v2831
  %v2833 = vand.u32 %v2832, 4294901760
  %2834 = vmatpush1.msra.mxu0 %v2833
  %2835 = vmatprep.subr.mxu0 0.0
  %v2836 = vand.u32 %v2708, 4294901760
  %v2837 = vsub.f32 %v2708, %v2836
  %v2838 = vand.u32 %v2837, 4294901760
  %v2839 = vsub.f32 %v2837, %v2838
  %v2840 = vand.u32 %v2839, 4294901760
  %2841 = vmatpush1.msra.mxu0 %v2840
  %2842 = vmatprep.subr.mxu0 0.0
  %v2843 = vand.u32 %v2709, 4294901760
  %v2844 = vsub.f32 %v2709, %v2843
  %v2845 = vand.u32 %v2844, 4294901760
  %v2846 = vsub.f32 %v2844, %v2845
  %v2847 = vand.u32 %v2846, 4294901760
  %2848 = vmatpush1.msra.mxu0 %v2847
  %2849 = vmatprep.subr.mxu0 0.0
  %v2850 = vand.u32 %v2710, 4294901760
  %v2851 = vsub.f32 %v2710, %v2850
  %v2852 = vand.u32 %v2851, 4294901760
  %v2853 = vsub.f32 %v2851, %v2852
  %v2854 = vand.u32 %v2853, 4294901760
  %2855 = vmatpush1.msra.mxu0 %v2854
  %2856 = vmatprep.subr.mxu0 0.0
  %v2857 = vand.u32 %v2711, 4294901760
  %v2858 = vsub.f32 %v2711, %v2857
  %v2859 = vand.u32 %v2858, 4294901760
  %v2860 = vsub.f32 %v2858, %v2859
  %v2861 = vand.u32 %v2860, 4294901760
  %2862 = vmatpush1.msra.mxu0 %v2861
  %2863 = vmatprep.subr.mxu0 0.0
  %v2864 = vand.u32 %v2712, 4294901760
  %v2865 = vsub.f32 %v2712, %v2864
  %v2866 = vand.u32 %v2865, 4294901760
  %v2867 = vsub.f32 %v2865, %v2866
  %v2868 = vand.u32 %v2867, 4294901760
  %2869 = vmatpush1.msra.mxu0 %v2868
  %2870 = vmatprep.subr.mxu0 0.0
  %v2871 = vand.u32 %v2713, 4294901760
  %v2872 = vsub.f32 %v2713, %v2871
  %v2873 = vand.u32 %v2872, 4294901760
  %v2874 = vsub.f32 %v2872, %v2873
  %v2875 = vand.u32 %v2874, 4294901760
  %2876 = vmatpush1.msra.mxu0 %v2875
  %2877 = vmatprep.subr.mxu0 0.0
  %v2878 = vand.u32 %v2714, 4294901760
  %v2879 = vsub.f32 %v2714, %v2878
  %v2880 = vand.u32 %v2879, 4294901760
  %v2881 = vsub.f32 %v2879, %v2880
  %v2882 = vand.u32 %v2881, 4294901760
  %2883 = vmatpush1.msra.mxu0 %v2882
  %2884 = vmatprep.subr.mxu0 0.0
  %v2885 = vand.u32 %v2715, 4294901760
  %v2886 = vsub.f32 %v2715, %v2885
  %v2887 = vand.u32 %v2886, 4294901760
  %v2888 = vsub.f32 %v2886, %v2887
  %v2889 = vand.u32 %v2888, 4294901760
  %2890 = vmatpush1.msra.mxu0 %v2889
  %2891 = vmatprep.subr.mxu0 0.0
  %v2892 = vand.u32 %v2716, 4294901760
  %v2893 = vsub.f32 %v2716, %v2892
  %v2894 = vand.u32 %v2893, 4294901760
  %v2895 = vsub.f32 %v2893, %v2894
  %v2896 = vand.u32 %v2895, 4294901760
  %2897 = vmatpush1.msra.mxu0 %v2896
  %2898 = vmatprep.subr.mxu0 0.0
  %v2899 = vand.u32 %v2717, 4294901760
  %v2900 = vsub.f32 %v2717, %v2899
  %v2901 = vand.u32 %v2900, 4294901760
  %v2902 = vsub.f32 %v2900, %v2901
  %v2903 = vand.u32 %v2902, 4294901760
  %2904 = vmatpush1.msra.mxu0 %v2903
  %2905 = vmatprep.subr.mxu0 0.0
  %v2906 = vand.u32 %v2718, 4294901760
  %v2907 = vsub.f32 %v2718, %v2906
  %v2908 = vand.u32 %v2907, 4294901760
  %v2909 = vsub.f32 %v2907, %v2908
  %v2910 = vand.u32 %v2909, 4294901760
  %2911 = vmatpush1.msra.mxu0 %v2910
  %2912 = vmatprep.subr.mxu0 0.0
  %v2913 = vand.u32 %v2719, 4294901760
  %v2914 = vsub.f32 %v2719, %v2913
  %v2915 = vand.u32 %v2914, 4294901760
  %v2916 = vsub.f32 %v2914, %v2915
  %v2917 = vand.u32 %v2916, 4294901760
  %2918 = vmatpush1.msra.mxu0 %v2917
  %2919 = vmatprep.subr.mxu0 0.0
  %v2920 = vand.u32 %v2720, 4294901760
  %v2921 = vsub.f32 %v2720, %v2920
  %v2922 = vand.u32 %v2921, 4294901760
  %v2923 = vsub.f32 %v2921, %v2922
  %v2924 = vand.u32 %v2923, 4294901760
  %2925 = vmatpush1.msra.mxu0 %v2924
  %2926 = vmatprep.subr.mxu0 0.0
  %v2927 = vand.u32 %v2721, 4294901760
  %v2928 = vsub.f32 %v2721, %v2927
  %v2929 = vand.u32 %v2928, 4294901760
  %v2930 = vsub.f32 %v2928, %v2929
  %v2931 = vand.u32 %v2930, 4294901760
  %2932 = vmatpush1.msra.mxu0 %v2931
  %2933 = vmatprep.subr.mxu0 0.0
  %2934 = vmatpush1.msra.mxu0 0.0
  %2935 = vmatprep.subr.mxu0 0.0
  %2936 = vmatpush1.msra.mxu0 0.0
  %2937 = vmatprep.subr.mxu0 0.0
  %2938 = vmatpush1.msra.mxu0 0.0
  %2939 = vmatprep.subr.mxu0 0.0
  %2940 = vmatpush1.msra.mxu0 0.0
  %2941 = vmatprep.subr.mxu0 0.0
  %2942 = vmatpush1.msra.mxu0 0.0
  %2943 = vmatprep.subr.mxu0 0.0
  %2944 = vmatpush1.msra.mxu0 0.0
  %2945 = vmatprep.subr.mxu0 0.0
  %2946 = vmatpush1.msra.mxu0 0.0
  %2947 = vmatprep.subr.mxu0 0.0
  %2948 = vmatpush1.msra.mxu0 0.0
  %2949 = vmatprep.subr.mxu0 0.0
  %2950 = vmatpush1.msra.mxu0 0.0
  %2951 = vmatprep.subr.mxu0 0.0
  %2952 = vmatpush1.msra.mxu0 0.0
  %2953 = vmatprep.subr.mxu0 0.0
  %2954 = vmatpush1.msra.mxu0 0.0
  %2955 = vmatprep.subr.mxu0 0.0
  %2956 = vmatpush1.msra.mxu0 0.0
  %2957 = vmatprep.subr.mxu0 0.0
  %2958 = vmatpush1.msra.mxu0 0.0
  %2959 = vmatprep.subr.mxu0 0.0
  %2960 = vmatpush1.msra.mxu0 0.0
  %2961 = vmatprep.subr.mxu0 0.0
  %2962 = vmatpush1.msra.mxu0 0.0
  %2963 = vmatprep.subr.mxu0 0.0
  %2964 = vmatpush1.msra.mxu0 0.0
  %2965 = vmatprep.mubr.f32.mxu0 0.0
  %v2966 = vand.u32 %v2704, 4294901760
  %2967 = vmatmul.mubr.f32.gmra.mrb[0].mxu0 %v2966
  %v2968 = vpop.f32.mrb[0].mxu0
  %v2969 = vadd.f32 %v2818, %v2968
  %v2970 = vpop.f32.mrb[0].mxu0
  %2971 = vdwg.mxu0
  %2972 = vmatprep.subr.mxu0 0.0
  %v2973 = vand.u32 %v2706, 4294901760
  %v2974 = vsub.f32 %v2706, %v2973
  %2975 = vmatpush1.msra.mxu0 %v2974
  %2976 = vmatprep.subr.mxu0 0.0
  %v2977 = vand.u32 %v2707, 4294901760
  %v2978 = vsub.f32 %v2707, %v2977
  %2979 = vmatpush1.msra.mxu0 %v2978
  %2980 = vmatprep.subr.mxu0 0.0
  %v2981 = vand.u32 %v2708, 4294901760
  %v2982 = vsub.f32 %v2708, %v2981
  %2983 = vmatpush1.msra.mxu0 %v2982
  %2984 = vmatprep.subr.mxu0 0.0
  %v2985 = vand.u32 %v2709, 4294901760
  %v2986 = vsub.f32 %v2709, %v2985
  %2987 = vmatpush1.msra.mxu0 %v2986
  %2988 = vmatprep.subr.mxu0 0.0
  %v2989 = vand.u32 %v2710, 4294901760
  %v2990 = vsub.f32 %v2710, %v2989
  %2991 = vmatpush1.msra.mxu0 %v2990
  %2992 = vmatprep.subr.mxu0 0.0
  %v2993 = vand.u32 %v2711, 4294901760
  %v2994 = vsub.f32 %v2711, %v2993
  %2995 = vmatpush1.msra.mxu0 %v2994
  %2996 = vmatprep.subr.mxu0 0.0
  %v2997 = vand.u32 %v2712, 4294901760
  %v2998 = vsub.f32 %v2712, %v2997
  %2999 = vmatpush1.msra.mxu0 %v2998
  %3000 = vmatprep.subr.mxu0 0.0
  %v3001 = vand.u32 %v2713, 4294901760
  %v3002 = vsub.f32 %v2713, %v3001
  %3003 = vmatpush1.msra.mxu0 %v3002
  %3004 = vmatprep.subr.mxu0 0.0
  %v3005 = vand.u32 %v2714, 4294901760
  %v3006 = vsub.f32 %v2714, %v3005
  %3007 = vmatpush1.msra.mxu0 %v3006
  %3008 = vmatprep.subr.mxu0 0.0
  %v3009 = vand.u32 %v2715, 4294901760
  %v3010 = vsub.f32 %v2715, %v3009
  %3011 = vmatpush1.msra.mxu0 %v3010
  %3012 = vmatprep.subr.mxu0 0.0
  %v3013 = vand.u32 %v2716, 4294901760
  %v3014 = vsub.f32 %v2716, %v3013
  %3015 = vmatpush1.msra.mxu0 %v3014
  %3016 = vmatprep.subr.mxu0 0.0
  %v3017 = vand.u32 %v2717, 4294901760
  %v3018 = vsub.f32 %v2717, %v3017
  %3019 = vmatpush1.msra.mxu0 %v3018
  %3020 = vmatprep.subr.mxu0 0.0
  %v3021 = vand.u32 %v2718, 4294901760
  %v3022 = vsub.f32 %v2718, %v3021
  %3023 = vmatpush1.msra.mxu0 %v3022
  %3024 = vmatprep.subr.mxu0 0.0
  %v3025 = vand.u32 %v2719, 4294901760
  %v3026 = vsub.f32 %v2719, %v3025
  %3027 = vmatpush1.msra.mxu0 %v3026
  %3028 = vmatprep.subr.mxu0 0.0
  %v3029 = vand.u32 %v2720, 4294901760
  %v3030 = vsub.f32 %v2720, %v3029
  %3031 = vmatpush1.msra.mxu0 %v3030
  %3032 = vmatprep.subr.mxu0 0.0
  %v3033 = vand.u32 %v2721, 4294901760
  %v3034 = vsub.f32 %v2721, %v3033
  %3035 = vmatpush1.msra.mxu0 %v3034
  %3036 = vmatprep.subr.mxu0 0.0
  %3037 = vmatpush1.msra.mxu0 0.0
  %3038 = vmatprep.subr.mxu0 0.0
  %3039 = vmatpush1.msra.mxu0 0.0
  %3040 = vmatprep.subr.mxu0 0.0
  %3041 = vmatpush1.msra.mxu0 0.0
  %3042 = vmatprep.subr.mxu0 0.0
  %3043 = vmatpush1.msra.mxu0 0.0
  %3044 = vmatprep.subr.mxu0 0.0
  %3045 = vmatpush1.msra.mxu0 0.0
  %3046 = vmatprep.subr.mxu0 0.0
  %3047 = vmatpush1.msra.mxu0 0.0
  %3048 = vmatprep.subr.mxu0 0.0
  %3049 = vmatpush1.msra.mxu0 0.0
  %3050 = vmatprep.subr.mxu0 0.0
  %3051 = vmatpush1.msra.mxu0 0.0
  %3052 = vmatprep.subr.mxu0 0.0
  %3053 = vmatpush1.msra.mxu0 0.0
  %3054 = vmatprep.subr.mxu0 0.0
  %3055 = vmatpush1.msra.mxu0 0.0
  %3056 = vmatprep.subr.mxu0 0.0
  %3057 = vmatpush1.msra.mxu0 0.0
  %3058 = vmatprep.subr.mxu0 0.0
  %3059 = vmatpush1.msra.mxu0 0.0
  %3060 = vmatprep.subr.mxu0 0.0
  %3061 = vmatpush1.msra.mxu0 0.0
  %3062 = vmatprep.subr.mxu0 0.0
  %3063 = vmatpush1.msra.mxu0 0.0
  %3064 = vmatprep.subr.mxu0 0.0
  %3065 = vmatpush1.msra.mxu0 0.0
  %3066 = vmatprep.subr.mxu0 0.0
  %3067 = vmatpush1.msra.mxu0 0.0
  %3068 = vmatprep.mubr.f32.mxu0 0.0
  %v3069 = vand.u32 %v2704, 4294901760
  %v3070 = vsub.f32 %v2704, %v3069
  %3071 = vmatmul.mubr.f32.gmra.mrb[0].mxu0 %v3070
  %v3072 = vpop.f32.mrb[0].mxu0
  %v3073 = vadd.f32 %v2969, %v3072
  %v3074 = vpop.f32.mrb[0].mxu0
  %3075 = vdwg.mxu0
  %3076 = vmatprep.subr.mxu0 0.0
  %v3077 = vand.u32 %v2706, 4294901760
  %3078 = vmatpush1.msra.mxu0 %v3077
  %3079 = vmatprep.subr.mxu0 0.0
  %v3080 = vand.u32 %v2707, 4294901760
  %3081 = vmatpush1.msra.mxu0 %v3080
  %3082 = vmatprep.subr.mxu0 0.0
  %v3083 = vand.u32 %v2708, 4294901760
  %3084 = vmatpush1.msra.mxu0 %v3083
  %3085 = vmatprep.subr.mxu0 0.0
  %v3086 = vand.u32 %v2709, 4294901760
  %3087 = vmatpush1.msra.mxu0 %v3086
  %3088 = vmatprep.subr.mxu0 0.0
  %v3089 = vand.u32 %v2710, 4294901760
  %3090 = vmatpush1.msra.mxu0 %v3089
  %3091 = vmatprep.subr.mxu0 0.0
  %v3092 = vand.u32 %v2711, 4294901760
  %3093 = vmatpush1.msra.mxu0 %v3092
  %3094 = vmatprep.subr.mxu0 0.0
  %v3095 = vand.u32 %v2712, 4294901760
  %3096 = vmatpush1.msra.mxu0 %v3095
  %3097 = vmatprep.subr.mxu0 0.0
  %v3098 = vand.u32 %v2713, 4294901760
  %3099 = vmatpush1.msra.mxu0 %v3098
  %3100 = vmatprep.subr.mxu0 0.0
  %v3101 = vand.u32 %v2714, 4294901760
  %3102 = vmatpush1.msra.mxu0 %v3101
  %3103 = vmatprep.subr.mxu0 0.0
  %v3104 = vand.u32 %v2715, 4294901760
  %3105 = vmatpush1.msra.mxu0 %v3104
  %3106 = vmatprep.subr.mxu0 0.0
  %v3107 = vand.u32 %v2716, 4294901760
  %3108 = vmatpush1.msra.mxu0 %v3107
  %3109 = vmatprep.subr.mxu0 0.0
  %v3110 = vand.u32 %v2717, 4294901760
  %3111 = vmatpush1.msra.mxu0 %v3110
  %3112 = vmatprep.subr.mxu0 0.0
  %v3113 = vand.u32 %v2718, 4294901760
  %3114 = vmatpush1.msra.mxu0 %v3113
  %3115 = vmatprep.subr.mxu0 0.0
  %v3116 = vand.u32 %v2719, 4294901760
  %3117 = vmatpush1.msra.mxu0 %v3116
  %3118 = vmatprep.subr.mxu0 0.0
  %v3119 = vand.u32 %v2720, 4294901760
  %3120 = vmatpush1.msra.mxu0 %v3119
  %3121 = vmatprep.subr.mxu0 0.0
  %v3122 = vand.u32 %v2721, 4294901760
  %3123 = vmatpush1.msra.mxu0 %v3122
  %3124 = vmatprep.subr.mxu0 0.0
  %3125 = vmatpush1.msra.mxu0 0.0
  %3126 = vmatprep.subr.mxu0 0.0
  %3127 = vmatpush1.msra.mxu0 0.0
  %3128 = vmatprep.subr.mxu0 0.0
  %3129 = vmatpush1.msra.mxu0 0.0
  %3130 = vmatprep.subr.mxu0 0.0
  %3131 = vmatpush1.msra.mxu0 0.0
  %3132 = vmatprep.subr.mxu0 0.0
  %3133 = vmatpush1.msra.mxu0 0.0
  %3134 = vmatprep.subr.mxu0 0.0
  %3135 = vmatpush1.msra.mxu0 0.0
  %3136 = vmatprep.subr.mxu0 0.0
  %3137 = vmatpush1.msra.mxu0 0.0
  %3138 = vmatprep.subr.mxu0 0.0
  %3139 = vmatpush1.msra.mxu0 0.0
  %3140 = vmatprep.subr.mxu0 0.0
  %3141 = vmatpush1.msra.mxu0 0.0
  %3142 = vmatprep.subr.mxu0 0.0
  %3143 = vmatpush1.msra.mxu0 0.0
  %3144 = vmatprep.subr.mxu0 0.0
  %3145 = vmatpush1.msra.mxu0 0.0
  %3146 = vmatprep.subr.mxu0 0.0
  %3147 = vmatpush1.msra.mxu0 0.0
  %3148 = vmatprep.subr.mxu0 0.0
  %3149 = vmatpush1.msra.mxu0 0.0
  %3150 = vmatprep.subr.mxu0 0.0
  %3151 = vmatpush1.msra.mxu0 0.0
  %3152 = vmatprep.subr.mxu0 0.0
  %3153 = vmatpush1.msra.mxu0 0.0
  %3154 = vmatprep.subr.mxu0 0.0
  %3155 = vmatpush1.msra.mxu0 0.0
  %3156 = vmatprep.mubr.f32.mxu0 0.0
  %v3157 = vand.u32 %v2704, 4294901760
  %v3158 = vsub.f32 %v2704, %v3157
  %v3159 = vand.u32 %v3158, 4294901760
  %3160 = vmatmul.mubr.f32.gmra.mrb[0].mxu0 %v3159
  %v3161 = vpop.f32.mrb[0].mxu0
  %v3162 = vadd.f32 %v3073, %v3161
  %v3163 = vpop.f32.mrb[0].mxu0
  %3164 = vdwg.mxu0
  %3165 = vmatprep.subr.mxu0 0.0
  %v3166 = vand.u32 %v2706, 4294901760
  %v3167 = vsub.f32 %v2706, %v3166
  %v3168 = vand.u32 %v3167, 4294901760
  %3169 = vmatpush1.msra.mxu0 %v3168
  %3170 = vmatprep.subr.mxu0 0.0
  %v3171 = vand.u32 %v2707, 4294901760
  %v3172 = vsub.f32 %v2707, %v3171
  %v3173 = vand.u32 %v3172, 4294901760
  %3174 = vmatpush1.msra.mxu0 %v3173
  %3175 = vmatprep.subr.mxu0 0.0
  %v3176 = vand.u32 %v2708, 4294901760
  %v3177 = vsub.f32 %v2708, %v3176
  %v3178 = vand.u32 %v3177, 4294901760
  %3179 = vmatpush1.msra.mxu0 %v3178
  %3180 = vmatprep.subr.mxu0 0.0
  %v3181 = vand.u32 %v2709, 4294901760
  %v3182 = vsub.f32 %v2709, %v3181
  %v3183 = vand.u32 %v3182, 4294901760
  %3184 = vmatpush1.msra.mxu0 %v3183
  %3185 = vmatprep.subr.mxu0 0.0
  %v3186 = vand.u32 %v2710, 4294901760
  %v3187 = vsub.f32 %v2710, %v3186
  %v3188 = vand.u32 %v3187, 4294901760
  %3189 = vmatpush1.msra.mxu0 %v3188
  %3190 = vmatprep.subr.mxu0 0.0
  %v3191 = vand.u32 %v2711, 4294901760
  %v3192 = vsub.f32 %v2711, %v3191
  %v3193 = vand.u32 %v3192, 4294901760
  %3194 = vmatpush1.msra.mxu0 %v3193
  %3195 = vmatprep.subr.mxu0 0.0
  %v3196 = vand.u32 %v2712, 4294901760
  %v3197 = vsub.f32 %v2712, %v3196
  %v3198 = vand.u32 %v3197, 4294901760
  %3199 = vmatpush1.msra.mxu0 %v3198
  %3200 = vmatprep.subr.mxu0 0.0
  %v3201 = vand.u32 %v2713, 4294901760
  %v3202 = vsub.f32 %v2713, %v3201
  %v3203 = vand.u32 %v3202, 4294901760
  %3204 = vmatpush1.msra.mxu0 %v3203
  %3205 = vmatprep.subr.mxu0 0.0
  %v3206 = vand.u32 %v2714, 4294901760
  %v3207 = vsub.f32 %v2714, %v3206
  %v3208 = vand.u32 %v3207, 4294901760
  %3209 = vmatpush1.msra.mxu0 %v3208
  %3210 = vmatprep.subr.mxu0 0.0
  %v3211 = vand.u32 %v2715, 4294901760
  %v3212 = vsub.f32 %v2715, %v3211
  %v3213 = vand.u32 %v3212, 4294901760
  %3214 = vmatpush1.msra.mxu0 %v3213
  %3215 = vmatprep.subr.mxu0 0.0
  %v3216 = vand.u32 %v2716, 4294901760
  %v3217 = vsub.f32 %v2716, %v3216
  %v3218 = vand.u32 %v3217, 4294901760
  %3219 = vmatpush1.msra.mxu0 %v3218
  %3220 = vmatprep.subr.mxu0 0.0
  %v3221 = vand.u32 %v2717, 4294901760
  %v3222 = vsub.f32 %v2717, %v3221
  %v3223 = vand.u32 %v3222, 4294901760
  %3224 = vmatpush1.msra.mxu0 %v3223
  %3225 = vmatprep.subr.mxu0 0.0
  %v3226 = vand.u32 %v2718, 4294901760
  %v3227 = vsub.f32 %v2718, %v3226
  %v3228 = vand.u32 %v3227, 4294901760
  %3229 = vmatpush1.msra.mxu0 %v3228
  %3230 = vmatprep.subr.mxu0 0.0
  %v3231 = vand.u32 %v2719, 4294901760
  %v3232 = vsub.f32 %v2719, %v3231
  %v3233 = vand.u32 %v3232, 4294901760
  %3234 = vmatpush1.msra.mxu0 %v3233
  %3235 = vmatprep.subr.mxu0 0.0
  %v3236 = vand.u32 %v2720, 4294901760
  %v3237 = vsub.f32 %v2720, %v3236
  %v3238 = vand.u32 %v3237, 4294901760
  %3239 = vmatpush1.msra.mxu0 %v3238
  %3240 = vmatprep.subr.mxu0 0.0
  %v3241 = vand.u32 %v2721, 4294901760
  %v3242 = vsub.f32 %v2721, %v3241
  %v3243 = vand.u32 %v3242, 4294901760
  %3244 = vmatpush1.msra.mxu0 %v3243
  %3245 = vmatprep.subr.mxu0 0.0
  %3246 = vmatpush1.msra.mxu0 0.0
  %3247 = vmatprep.subr.mxu0 0.0
  %3248 = vmatpush1.msra.mxu0 0.0
  %3249 = vmatprep.subr.mxu0 0.0
  %3250 = vmatpush1.msra.mxu0 0.0
  %3251 = vmatprep.subr.mxu0 0.0
  %3252 = vmatpush1.msra.mxu0 0.0
  %3253 = vmatprep.subr.mxu0 0.0
  %3254 = vmatpush1.msra.mxu0 0.0
  %3255 = vmatprep.subr.mxu0 0.0
  %3256 = vmatpush1.msra.mxu0 0.0
  %3257 = vmatprep.subr.mxu0 0.0
  %3258 = vmatpush1.msra.mxu0 0.0
  %3259 = vmatprep.subr.mxu0 0.0
  %3260 = vmatpush1.msra.mxu0 0.0
  %3261 = vmatprep.subr.mxu0 0.0
  %3262 = vmatpush1.msra.mxu0 0.0
  %3263 = vmatprep.subr.mxu0 0.0
  %3264 = vmatpush1.msra.mxu0 0.0
  %3265 = vmatprep.subr.mxu0 0.0
  %3266 = vmatpush1.msra.mxu0 0.0
  %3267 = vmatprep.subr.mxu0 0.0
  %3268 = vmatpush1.msra.mxu0 0.0
  %3269 = vmatprep.subr.mxu0 0.0
  %3270 = vmatpush1.msra.mxu0 0.0
  %3271 = vmatprep.subr.mxu0 0.0
  %3272 = vmatpush1.msra.mxu0 0.0
  %3273 = vmatprep.subr.mxu0 0.0
  %3274 = vmatpush1.msra.mxu0 0.0
  %3275 = vmatprep.subr.mxu0 0.0
  %3276 = vmatpush1.msra.mxu0 0.0
  %3277 = vmatprep.mubr.f32.mxu0 0.0
  %v3278 = vand.u32 %v2704, 4294901760
  %3279 = vmatmul.mubr.f32.gmra.mrb[0].mxu0 %v3278
  %v3280 = vpop.f32.mrb[0].mxu0
  %v3281 = vadd.f32 %v3162, %v3280
  %v3282 = vpop.f32.mrb[0].mxu0
  %3283 = vdwg.mxu0
  %3284 = vmatprep.subr.mxu0 0.0
  %v3285 = vand.u32 %v2706, 4294901760
  %3286 = vmatpush1.msra.mxu0 %v3285
  %3287 = vmatprep.subr.mxu0 0.0
  %v3288 = vand.u32 %v2707, 4294901760
  %3289 = vmatpush1.msra.mxu0 %v3288
  %3290 = vmatprep.subr.mxu0 0.0
  %v3291 = vand.u32 %v2708, 4294901760
  %3292 = vmatpush1.msra.mxu0 %v3291
  %3293 = vmatprep.subr.mxu0 0.0
  %v3294 = vand.u32 %v2709, 4294901760
  %3295 = vmatpush1.msra.mxu0 %v3294
  %3296 = vmatprep.subr.mxu0 0.0
  %v3297 = vand.u32 %v2710, 4294901760
  %3298 = vmatpush1.msra.mxu0 %v3297
  %3299 = vmatprep.subr.mxu0 0.0
  %v3300 = vand.u32 %v2711, 4294901760
  %3301 = vmatpush1.msra.mxu0 %v3300
  %3302 = vmatprep.subr.mxu0 0.0
  %v3303 = vand.u32 %v2712, 4294901760
  %3304 = vmatpush1.msra.mxu0 %v3303
  %3305 = vmatprep.subr.mxu0 0.0
  %v3306 = vand.u32 %v2713, 4294901760
  %3307 = vmatpush1.msra.mxu0 %v3306
  %3308 = vmatprep.subr.mxu0 0.0
  %v3309 = vand.u32 %v2714, 4294901760
  %3310 = vmatpush1.msra.mxu0 %v3309
  %3311 = vmatprep.subr.mxu0 0.0
  %v3312 = vand.u32 %v2715, 4294901760
  %3313 = vmatpush1.msra.mxu0 %v3312
  %3314 = vmatprep.subr.mxu0 0.0
  %v3315 = vand.u32 %v2716, 4294901760
  %3316 = vmatpush1.msra.mxu0 %v3315
  %3317 = vmatprep.subr.mxu0 0.0
  %v3318 = vand.u32 %v2717, 4294901760
  %3319 = vmatpush1.msra.mxu0 %v3318
  %3320 = vmatprep.subr.mxu0 0.0
  %v3321 = vand.u32 %v2718, 4294901760
  %3322 = vmatpush1.msra.mxu0 %v3321
  %3323 = vmatprep.subr.mxu0 0.0
  %v3324 = vand.u32 %v2719, 4294901760
  %3325 = vmatpush1.msra.mxu0 %v3324
  %3326 = vmatprep.subr.mxu0 0.0
  %v3327 = vand.u32 %v2720, 4294901760
  %3328 = vmatpush1.msra.mxu0 %v3327
  %3329 = vmatprep.subr.mxu0 0.0
  %v3330 = vand.u32 %v2721, 4294901760
  %3331 = vmatpush1.msra.mxu0 %v3330
  %3332 = vmatprep.subr.mxu0 0.0
  %3333 = vmatpush1.msra.mxu0 0.0
  %3334 = vmatprep.subr.mxu0 0.0
  %3335 = vmatpush1.msra.mxu0 0.0
  %3336 = vmatprep.subr.mxu0 0.0
  %3337 = vmatpush1.msra.mxu0 0.0
  %3338 = vmatprep.subr.mxu0 0.0
  %3339 = vmatpush1.msra.mxu0 0.0
  %3340 = vmatprep.subr.mxu0 0.0
  %3341 = vmatpush1.msra.mxu0 0.0
  %3342 = vmatprep.subr.mxu0 0.0
  %3343 = vmatpush1.msra.mxu0 0.0
  %3344 = vmatprep.subr.mxu0 0.0
  %3345 = vmatpush1.msra.mxu0 0.0
  %3346 = vmatprep.subr.mxu0 0.0
  %3347 = vmatpush1.msra.mxu0 0.0
  %3348 = vmatprep.subr.mxu0 0.0
  %3349 = vmatpush1.msra.mxu0 0.0
  %3350 = vmatprep.subr.mxu0 0.0
  %3351 = vmatpush1.msra.mxu0 0.0
  %3352 = vmatprep.subr.mxu0 0.0
  %3353 = vmatpush1.msra.mxu0 0.0
  %3354 = vmatprep.subr.mxu0 0.0
  %3355 = vmatpush1.msra.mxu0 0.0
  %3356 = vmatprep.subr.mxu0 0.0
  %3357 = vmatpush1.msra.mxu0 0.0
  %3358 = vmatprep.subr.mxu0 0.0
  %3359 = vmatpush1.msra.mxu0 0.0
  %3360 = vmatprep.subr.mxu0 0.0
  %3361 = vmatpush1.msra.mxu0 0.0
  %3362 = vmatprep.subr.mxu0 0.0
  %3363 = vmatpush1.msra.mxu0 0.0
  %3364 = vmatprep.mubr.f32.mxu0 0.0
  %v3365 = vand.u32 %v2704, 4294901760
  %3366 = vmatmul.mubr.f32.gmra.mrb[0].mxu0 %v3365
  %v3367 = vpop.f32.mrb[0].mxu0
  %v3368 = vadd.f32 %v3281, %v3367
  %v3369 = vpop.f32.mrb[0].mxu0
  %3370 = vdwg.mxu0
  %v3371 = vxor.u32 %v3368, 2147483648
  %v3372 = vmul.f32 %v3371, 1.442695
  %v3373 = vpow.pop %v3372
  %v3374 = vadd.f32 %v3373, 1.0
  %v3375 = vrcp.pop %v3374
  %v3376 = vmul.f32 1.0, %v3375
  %v3377 = vmul.f32 %v3368, %v3376
  %3378 = vst [vmem:[%s3] sm:$0xff] %v3377
  // Predicated region
  $region14: #{nlin_core_forward.1} parent=0 // pred_check
    _
  $region15: #{nlin_core_forward.1} parent=0 // pred_check_branch
    %3380 = sbr.rel (0) target = $region17
  $region16: #{nlin_core_forward.1} parent=0 // pred_region
    _
  $region17: #{nlin_core_forward.1} parent=0 // pred_fallthru
    _
  // Predicated region
  $region18: #{nlin_core_forward.1} parent=0 // pred_check
    _
  $region19: #{nlin_core_forward.1} parent=0 // pred_check_branch
    %3382 = sbr.rel (0) target = $region21
  $region20: #{nlin_core_forward.1} parent=0 // pred_region
    _
  $region21: #{nlin_core_forward.1} parent=0 // pred_fallthru
    _

</llo_original>
